<compile_context>
chip_gen: v6e
topology: v6e:2x2x1
jax: 0.10.0
libtpu: 0.0.40
codegen_flags: <defaults>
</compile_context>

<pallas_src>
import numpy as np
import jax
import jax.numpy as jnp
from jax.experimental import pallas as pl
from jax.experimental.pallas import tpu as pltpu

N, C_IN, H, W = 2, 4, 14, 14           # small synthetic shapes (inCH = 4)
POOL_K, POOL_S = 5, 3
OH = (H - POOL_K) // POOL_S + 1        # 4
OW = (W - POOL_K) // POOL_S + 1        # 4
S = OH * OW                            # 16 pooled spatial positions
C_MID = 128
FC1_OUT = 1024
FC2_OUT = 10
BN_EPS = 1e-5

S_BLK = 8                              # spatial positions per "arbitrary" step
N_SBLK = S // S_BLK                    # 2 reduction steps
J_BLK = 512                            # fc1 output columns per "parallel" step
N_JBLK = FC1_OUT // J_BLK              # 2 (one per v7x TensorCore)


def fc1_stage_kernel(x_ref, pool_ref, convw_ref, shift_ref, w1_ref, b1_ref,
                     h1_ref, y_sc, acc_sc):
    # grid = (j: fc1-output half, parallel) x (i: spatial block, arbitrary)
    i = pl.program_id(1)

    @pl.when(i == 0)
    def _prologue():
        # avg-pool (as a matmul with a constant pooling matrix), 1x1 conv with
        # folded BN, and ReLU -- batched over all 16 spatial positions.
        poolm = pool_ref[...]                       # [16, 196]
        convw = convw_ref[...]                      # [C, 128]  (BN scale folded)
        shift = shift_ref[...]                      # [1, 128]  (conv bias + BN shift)
        for n in range(N):                          # N = 2, static unroll
            pooled = jnp.dot(poolm, x_ref[n],       # [16, C]
                             preferred_element_type=jnp.float32)
            y = jnp.dot(pooled, convw,              # [16, 128]
                        preferred_element_type=jnp.float32)
            y_sc[n] = jnp.maximum(y + shift, 0.0)
        acc_sc[...] = jnp.zeros_like(acc_sc)

    # fc1 partial product for this (spatial block, output half): contract the
    # streamed bf16 weight block [S_BLK, 128, J_BLK] against the cached
    # activations, accumulating in f32.
    s0 = pl.multiple_of(i * S_BLK, S_BLK)
    y_blk = y_sc[:, pl.ds(s0, S_BLK), :]            # [N, S_BLK, 128] f32
    acc = acc_sc[...]
    for t in range(S_BLK):                          # static unroll
        acc = acc + jnp.dot(y_blk[:, t, :].astype(jnp.bfloat16), w1_ref[t],
                            preferred_element_type=jnp.float32)
    acc_sc[...] = acc

    @pl.when(i == N_SBLK - 1)
    def _epilogue():
        # relu(fc1(.)); the following Dropout(0.5) is eval-mode identity.
        # TODO(synk): training-mode dropout RNG masking not reproduced.
        h1_ref[...] = jnp.maximum(acc_sc[...] + b1_ref[...], 0.0)


def fc2_kernel(h1_ref, w2_ref, b2_ref, out_ref):
    out_ref[...] = (jnp.dot(h1_ref[...], w2_ref[...],
                            preferred_element_type=jnp.float32) + b2_ref[...])


def _full_spec(shape):
    nd = len(shape)
    return pl.BlockSpec(shape, lambda *args, _nd=nd: (0,) * _nd)


def aux_classifier(x, pool_mat, conv_w_f, conv_shift, fc1_w_s, fc1_b,
                   fc2_w_t, fc2_b):
    # Layout plumbing only: channel-last view of x so pool/conv are lane-dense.
    x_t = jnp.transpose(x.reshape(N, C_IN, H * W), (0, 2, 1))   # [N, H*W, C]
    shift2 = conv_shift.reshape(1, C_MID)
    b1 = fc1_b.reshape(1, FC1_OUT)
    b2 = fc2_b.reshape(1, FC2_OUT)

    h1 = pl.pallas_call(
        fc1_stage_kernel,
        out_shape=jax.ShapeDtypeStruct((N, FC1_OUT), jnp.float32),
        grid_spec=pltpu.PrefetchScalarGridSpec(
            num_scalar_prefetch=0,
            grid=(N_JBLK, N_SBLK),
            in_specs=[
                _full_spec((N, H * W, C_IN)),                  # x (resident)
                _full_spec((S, H * W)),                        # pooling matrix
                _full_spec((C_IN, C_MID)),                     # folded conv weight
                _full_spec((1, C_MID)),                        # folded conv/BN shift
                pl.BlockSpec((S_BLK, C_MID, J_BLK),
                             lambda j, i: (i, 0, j)),          # fc1 weight stream
                pl.BlockSpec((1, J_BLK), lambda j, i: (0, j)), # fc1 bias block
            ],
            out_specs=pl.BlockSpec((N, J_BLK), lambda j, i: (0, j)),
            scratch_shapes=[
                pltpu.VMEM((N, S, C_MID), jnp.float32),        # cached conv acts
                pltpu.VMEM((N, J_BLK), jnp.float32),           # fc1 accumulator
            ],
        ),
        compiler_params=pltpu.CompilerParams(
            dimension_semantics=("parallel", "arbitrary"),
            vmem_limit_bytes=32 * 1024 * 1024,
        ),
    )(x_t, pool_mat, conv_w_f, shift2, fc1_w_s, b1)

    out = pl.pallas_call(
        fc2_kernel,
        out_shape=jax.ShapeDtypeStruct((N, FC2_OUT), jnp.float32),
        grid=(1,),
        in_specs=[_full_spec((N, FC1_OUT)),
                  _full_spec((FC1_OUT, FC2_OUT)),
                  _full_spec((1, FC2_OUT))],
        out_specs=_full_spec((N, FC2_OUT)),
        compiler_params=pltpu.CompilerParams(vmem_limit_bytes=32 * 1024 * 1024),
    )(h1, fc2_w_t, b2)
    return out


def build_pool_matrix():
    """[16, 196] matrix: row s holds 1/25 on the 5x5 window of pooled pos s."""
    pm = np.zeros((S, H * W), np.float32)
    inv = 1.0 / (POOL_K * POOL_K)
    for s in range(S):
        oi, oj = divmod(s, OW)
        for di in range(POOL_K):
            for dj in range(POOL_K):
                pm[s, (oi * POOL_S + di) * W + (oj * POOL_S + dj)] = inv
    return jnp.asarray(pm)


def reference(x, conv_w, conv_b, gamma, beta, rm, rv, fc1_w, fc1_b, fc2_w, fc2_b):
    """Pure-JAX reference matching the PyTorch module in eval mode."""
    pooled = jax.lax.reduce_window(x, 0.0, jax.lax.add,
                                   (1, 1, POOL_K, POOL_K),
                                   (1, 1, POOL_S, POOL_S), "VALID") / (POOL_K * POOL_K)
    y = jnp.einsum("nchw,oc->nohw", pooled, conv_w) + conv_b[None, :, None, None]
    y = (y - rm[None, :, None, None]) / jnp.sqrt(rv[None, :, None, None] + BN_EPS)
    y = y * gamma[None, :, None, None] + beta[None, :, None, None]
    y = jnp.maximum(y, 0.0)
    flat = y.reshape(x.shape[0], -1)                 # NCHW flatten: C-major
    h1 = jnp.maximum(flat @ fc1_w.T + fc1_b, 0.0)
    return h1 @ fc2_w.T + fc2_b


if __name__ == "__main__":
    key = jax.random.PRNGKey(0)
    keys = jax.random.split(key, 12)

    x = jax.random.normal(keys[0], (N, C_IN, H, W), jnp.float32)

    # Deterministic synthetic parameters (shapes from the module's __init__).
    conv_w = jax.random.normal(keys[1], (C_MID, C_IN), jnp.float32) * 0.1  # Conv2d(1x1) [128,C,1,1] squeezed
    conv_b = jax.random.normal(keys[2], (C_MID,), jnp.float32) * 0.1
    gamma = 1.0 + 0.1 * jax.random.normal(keys[3], (C_MID,), jnp.float32)  # BatchNorm2d(128)
    beta = 0.1 * jax.random.normal(keys[4], (C_MID,), jnp.float32)
    run_mean = 0.1 * jax.random.normal(keys[5], (C_MID,), jnp.float32)
    run_var = 1.0 + 0.1 * jnp.abs(jax.random.normal(keys[6], (C_MID,), jnp.float32))
    fc1_w = jax.random.normal(keys[7], (FC1_OUT, S * C_MID), jnp.float32) * 0.02
    fc1_b = jax.random.normal(keys[8], (FC1_OUT,), jnp.float32) * 0.02
    fc2_w = jax.random.normal(keys[9], (FC2_OUT, FC1_OUT), jnp.float32) * 0.02
    fc2_b = jax.random.normal(keys[10], (FC2_OUT,), jnp.float32) * 0.02

    # Fold BN (eval mode) into the 1x1 conv: y = pooled @ conv_w_f + conv_shift.
    bn_scale = gamma / jnp.sqrt(run_var + BN_EPS)
    bn_shift = beta - run_mean * bn_scale
    conv_w_f = conv_w.T * bn_scale[None, :]          # [C, 128]
    conv_shift = conv_b * bn_scale + bn_shift        # [128]

    # fc1.weight.T has feature index f = o*16 + s (NCHW flatten of [N,128,4,4]).
    # Re-arrange to [s, o, :] so each grid step streams a contiguous block,
    # and store in bf16 (MXU-native, f32 accumulation) to halve HBM traffic.
    fc1_w_s = (fc1_w.T.reshape(C_MID, S, FC1_OUT)
               .transpose(1, 0, 2).astype(jnp.bfloat16))   # [16, 128, 1024]
    fc2_w_t = fc2_w.T                                       # [1024, 10]

    pool_mat = build_pool_matrix()

    out = aux_classifier(x, pool_mat, conv_w_f, conv_shift, fc1_w_s, fc1_b,
                         fc2_w_t, fc2_b)
    out = jax.block_until_ready(out)

    ref = reference(x, conv_w, conv_b, gamma, beta, run_mean, run_var,
                    fc1_w, fc1_b, fc2_w, fc2_b)
    assert out.shape == (N, FC2_OUT)
    err = jnp.max(jnp.abs(out - ref))
    # bf16 fc1 weights/activations (f32 accumulation) -> ~1e-3-level error.
    assert jnp.allclose(out, ref, rtol=1e-2, atol=1e-2), f"max abs err {err}"

    print("KERNEL_OK")
</pallas_src>

<mosaic_0001>
module attributes {stable_mosaic.version = 11 : i64} {
  func.func @fc1_stage_kernel(%arg0: i32, %arg1: i32, %arg2: memref<2x196x4xf32, #tpu.memory_space<vmem>>, %arg3: memref<16x196xf32, #tpu.memory_space<vmem>>, %arg4: memref<4x128xf32, #tpu.memory_space<vmem>>, %arg5: memref<1x128xf32, #tpu.memory_space<vmem>>, %arg6: memref<8x128x512xbf16, #tpu.memory_space<vmem>>, %arg7: memref<1x512xf32, #tpu.memory_space<vmem>>, %arg8: memref<2x512xf32, #tpu.memory_space<vmem>>, %arg9: memref<2x16x128xf32, #tpu.memory_space<vmem>>, %arg10: memref<2x512xf32, #tpu.memory_space<vmem>>) attributes {dimension_semantics = [#tpu.dimension_semantics<parallel>, #tpu.dimension_semantics<arbitrary>], iteration_bounds = array<i64: 2, 2>, scalar_prefetch = 0 : i64, scratch_operands = 2 : i64, tpu.core_type = #tpu.core_type<tc>, window_params = [{pipeline_mode = #tpu.pipeline_mode<synchronous>, transform_indices = @transform_0, window_bounds = array<i64: 2, 196, 4>}, {pipeline_mode = #tpu.pipeline_mode<synchronous>, transform_indices = @transform_1, window_bounds = array<i64: 16, 196>}, {pipeline_mode = #tpu.pipeline_mode<synchronous>, transform_indices = @transform_2, window_bounds = array<i64: 4, 128>}, {pipeline_mode = #tpu.pipeline_mode<synchronous>, transform_indices = @transform_3, window_bounds = array<i64: 1, 128>}, {transform_indices = @transform_4, window_bounds = array<i64: 8, 128, 512>}, {transform_indices = @transform_5, window_bounds = array<i64: 1, 512>}, {transform_indices = @transform_6, window_bounds = array<i64: 2, 512>}]} {
    %c0_i32 = arith.constant 0 : i32
    %0 = arith.cmpi eq, %arg1, %c0_i32 : i32
    %1 = arith.extui %0 : i1 to i32
    %c0_i32_0 = arith.constant 0 : i32
    %2 = arith.cmpi ne, %1, %c0_i32_0 : i32
    scf.if %2 {
      %c0_31 = arith.constant 0 : index
      %c0_32 = arith.constant 0 : index
      %68 = vector.load %arg3[%c0_31, %c0_32] : memref<16x196xf32, #tpu.memory_space<vmem>>, vector<16x196xf32>
      %c0_33 = arith.constant 0 : index
      %c0_34 = arith.constant 0 : index
      %69 = vector.load %arg4[%c0_33, %c0_34] : memref<4x128xf32, #tpu.memory_space<vmem>>, vector<4x128xf32>
      %c0_35 = arith.constant 0 : index
      %c0_36 = arith.constant 0 : index
      %70 = vector.load %arg5[%c0_35, %c0_36] : memref<1x128xf32, #tpu.memory_space<vmem>>, vector<1x128xf32>
      %c0_37 = arith.constant 0 : index
      %c0_38 = arith.constant 0 : index
      %c0_39 = arith.constant 0 : index
      %71 = vector.load %arg2[%c0_37, %c0_38, %c0_39] : memref<2x196x4xf32, #tpu.memory_space<vmem>>, vector<1x196x4xf32>
      %72 = vector.shape_cast %71 : vector<1x196x4xf32> to vector<196x4xf32>
      %cst_40 = arith.constant dense<0.000000e+00> : vector<16x4xf32>
      %73 = tpu.matmul %68, %72, %cst_40 {dimension_numbers = #tpu.dot_dimension_numbers<[1], [0], [0], [1], [0, 0, 1, 1], [], []>} : vector<16x196xf32>, vector<196x4xf32>, vector<16x4xf32> -> vector<16x4xf32>
      %cst_41 = arith.constant dense<0.000000e+00> : vector<16x128xf32>
      %74 = tpu.matmul %73, %69, %cst_41 {dimension_numbers = #tpu.dot_dimension_numbers<[1], [0], [0], [1], [0, 0, 1, 1], [], []>} : vector<16x4xf32>, vector<4x128xf32>, vector<16x128xf32> -> vector<16x128xf32>
      %75 = vector.broadcast %70 : vector<1x128xf32> to vector<16x128xf32>
      %76 = arith.addf %74, %75 : vector<16x128xf32>
      %cst_42 = arith.constant 0.000000e+00 : f32
      %77 = vector.broadcast %cst_42 : f32 to vector<16x128xf32>
      %78 = arith.maximumf %76, %77 : vector<16x128xf32>
      %c0_43 = arith.constant 0 : index
      %c0_44 = arith.constant 0 : index
      %c0_45 = arith.constant 0 : index
      %79 = vector.load %arg9[%c0_43, %c0_44, %c0_45] : memref<2x16x128xf32, #tpu.memory_space<vmem>>, vector<1x16x128xf32>
      %80 = vector.shape_cast %79 : vector<1x16x128xf32> to vector<16x128xf32>
      %81 = vector.shape_cast %78 : vector<16x128xf32> to vector<1x16x128xf32>
      tpu.vector_store %arg9[%c0_43, %c0_44, %c0_45], %81 {strides = array<i32>} : memref<2x16x128xf32, #tpu.memory_space<vmem>>, vector<1x16x128xf32>,
      %c1_46 = arith.constant 1 : index
      %c0_47 = arith.constant 0 : index
      %c0_48 = arith.constant 0 : index
      %82 = vector.load %arg2[%c1_46, %c0_47, %c0_48] : memref<2x196x4xf32, #tpu.memory_space<vmem>>, vector<1x196x4xf32>
      %83 = vector.shape_cast %82 : vector<1x196x4xf32> to vector<196x4xf32>
      %cst_49 = arith.constant dense<0.000000e+00> : vector<16x4xf32>
      %84 = tpu.matmul %68, %83, %cst_49 {dimension_numbers = #tpu.dot_dimension_numbers<[1], [0], [0], [1], [0, 0, 1, 1], [], []>} : vector<16x196xf32>, vector<196x4xf32>, vector<16x4xf32> -> vector<16x4xf32>
      %cst_50 = arith.constant dense<0.000000e+00> : vector<16x128xf32>
      %85 = tpu.matmul %84, %69, %cst_50 {dimension_numbers = #tpu.dot_dimension_numbers<[1], [0], [0], [1], [0, 0, 1, 1], [], []>} : vector<16x4xf32>, vector<4x128xf32>, vector<16x128xf32> -> vector<16x128xf32>
      %86 = vector.broadcast %70 : vector<1x128xf32> to vector<16x128xf32>
      %87 = arith.addf %85, %86 : vector<16x128xf32>
      %cst_51 = arith.constant 0.000000e+00 : f32
      %88 = vector.broadcast %cst_51 : f32 to vector<16x128xf32>
      %89 = arith.maximumf %87, %88 : vector<16x128xf32>
      %c1_52 = arith.constant 1 : index
      %c0_53 = arith.constant 0 : index
      %c0_54 = arith.constant 0 : index
      %90 = vector.load %arg9[%c1_52, %c0_53, %c0_54] : memref<2x16x128xf32, #tpu.memory_space<vmem>>, vector<1x16x128xf32>
      %91 = vector.shape_cast %90 : vector<1x16x128xf32> to vector<16x128xf32>
      %92 = vector.shape_cast %89 : vector<16x128xf32> to vector<1x16x128xf32>
      tpu.vector_store %arg9[%c1_52, %c0_53, %c0_54], %92 {strides = array<i32>} : memref<2x16x128xf32, #tpu.memory_space<vmem>>, vector<1x16x128xf32>,
      %cst_55 = arith.constant 0.000000e+00 : f32
      %93 = vector.broadcast %cst_55 : f32 to vector<2x512xf32>
      %c0_56 = arith.constant 0 : index
      %c0_57 = arith.constant 0 : index
      %94 = vector.load %arg10[%c0_56, %c0_57] : memref<2x512xf32, #tpu.memory_space<vmem>>, vector<2x512xf32>
      tpu.vector_store %arg10[%c0_56, %c0_57], %93 {strides = array<i32>} : memref<2x512xf32, #tpu.memory_space<vmem>>, vector<2x512xf32>,
    } else {
    }
    %c8_i32 = arith.constant 8 : i32
    %3 = arith.muli %arg1, %c8_i32 : i32
    %4 = tpu.assume_multiple %3, 8 : i32
    %c0 = arith.constant 0 : index
    %5 = arith.index_cast %4 : i32 to index
    %c0_1 = arith.constant 0 : index
    %6 = vector.load %arg9[%c0, %5, %c0_1] : memref<2x16x128xf32, #tpu.memory_space<vmem>>, vector<2x8x128xf32>
    %c0_2 = arith.constant 0 : index
    %c0_3 = arith.constant 0 : index
    %7 = vector.load %arg10[%c0_2, %c0_3] : memref<2x512xf32, #tpu.memory_space<vmem>>, vector<2x512xf32>
    %8 = vector.extract_strided_slice %6 {offsets = [0, 0, 0], sizes = [2, 1, 128], strides = [1, 1, 1]} : vector<2x8x128xf32> to vector<2x1x128xf32>
    %9 = vector.shape_cast %8 : vector<2x1x128xf32> to vector<2x128xf32>
    %10 = arith.truncf %9 : vector<2x128xf32> to vector<2x128xbf16>
    %c0_4 = arith.constant 0 : index
    %c0_5 = arith.constant 0 : index
    %c0_6 = arith.constant 0 : index
    %11 = vector.load %arg6[%c0_4, %c0_5, %c0_6] : memref<8x128x512xbf16, #tpu.memory_space<vmem>>, vector<1x128x512xbf16>
    %12 = vector.shape_cast %11 : vector<1x128x512xbf16> to vector<128x512xbf16>
    %cst = arith.constant dense<0.000000e+00> : vector<2x512xf32>
    %13 = tpu.matmul %10, %12, %cst {dimension_numbers = #tpu.dot_dimension_numbers<[1], [0], [0], [1], [0, 0, 1, 1], [], []>} : vector<2x128xbf16>, vector<128x512xbf16>, vector<2x512xf32> -> vector<2x512xf32>
    %14 = arith.addf %7, %13 : vector<2x512xf32>
    %15 = vector.extract_strided_slice %6 {offsets = [0, 1, 0], sizes = [2, 1, 128], strides = [1, 1, 1]} : vector<2x8x128xf32> to vector<2x1x128xf32>
    %16 = vector.shape_cast %15 : vector<2x1x128xf32> to vector<2x128xf32>
    %17 = arith.truncf %16 : vector<2x128xf32> to vector<2x128xbf16>
    %c1 = arith.constant 1 : index
    %c0_7 = arith.constant 0 : index
    %c0_8 = arith.constant 0 : index
    %18 = vector.load %arg6[%c1, %c0_7, %c0_8] : memref<8x128x512xbf16, #tpu.memory_space<vmem>>, vector<1x128x512xbf16>
    %19 = vector.shape_cast %18 : vector<1x128x512xbf16> to vector<128x512xbf16>
    %cst_9 = arith.constant dense<0.000000e+00> : vector<2x512xf32>
    %20 = tpu.matmul %17, %19, %cst_9 {dimension_numbers = #tpu.dot_dimension_numbers<[1], [0], [0], [1], [0, 0, 1, 1], [], []>} : vector<2x128xbf16>, vector<128x512xbf16>, vector<2x512xf32> -> vector<2x512xf32>
    %21 = arith.addf %14, %20 : vector<2x512xf32>
    %22 = vector.extract_strided_slice %6 {offsets = [0, 2, 0], sizes = [2, 1, 128], strides = [1, 1, 1]} : vector<2x8x128xf32> to vector<2x1x128xf32>
    %23 = vector.shape_cast %22 : vector<2x1x128xf32> to vector<2x128xf32>
    %24 = arith.truncf %23 : vector<2x128xf32> to vector<2x128xbf16>
    %c2 = arith.constant 2 : index
    %c0_10 = arith.constant 0 : index
    %c0_11 = arith.constant 0 : index
    %25 = vector.load %arg6[%c2, %c0_10, %c0_11] : memref<8x128x512xbf16, #tpu.memory_space<vmem>>, vector<1x128x512xbf16>
    %26 = vector.shape_cast %25 : vector<1x128x512xbf16> to vector<128x512xbf16>
    %cst_12 = arith.constant dense<0.000000e+00> : vector<2x512xf32>
    %27 = tpu.matmul %24, %26, %cst_12 {dimension_numbers = #tpu.dot_dimension_numbers<[1], [0], [0], [1], [0, 0, 1, 1], [], []>} : vector<2x128xbf16>, vector<128x512xbf16>, vector<2x512xf32> -> vector<2x512xf32>
    %28 = arith.addf %21, %27 : vector<2x512xf32>
    %29 = vector.extract_strided_slice %6 {offsets = [0, 3, 0], sizes = [2, 1, 128], strides = [1, 1, 1]} : vector<2x8x128xf32> to vector<2x1x128xf32>
    %30 = vector.shape_cast %29 : vector<2x1x128xf32> to vector<2x128xf32>
    %31 = arith.truncf %30 : vector<2x128xf32> to vector<2x128xbf16>
    %c3 = arith.constant 3 : index
    %c0_13 = arith.constant 0 : index
    %c0_14 = arith.constant 0 : index
    %32 = vector.load %arg6[%c3, %c0_13, %c0_14] : memref<8x128x512xbf16, #tpu.memory_space<vmem>>, vector<1x128x512xbf16>
    %33 = vector.shape_cast %32 : vector<1x128x512xbf16> to vector<128x512xbf16>
    %cst_15 = arith.constant dense<0.000000e+00> : vector<2x512xf32>
    %34 = tpu.matmul %31, %33, %cst_15 {dimension_numbers = #tpu.dot_dimension_numbers<[1], [0], [0], [1], [0, 0, 1, 1], [], []>} : vector<2x128xbf16>, vector<128x512xbf16>, vector<2x512xf32> -> vector<2x512xf32>
    %35 = arith.addf %28, %34 : vector<2x512xf32>
    %36 = vector.extract_strided_slice %6 {offsets = [0, 4, 0], sizes = [2, 1, 128], strides = [1, 1, 1]} : vector<2x8x128xf32> to vector<2x1x128xf32>
    %37 = vector.shape_cast %36 : vector<2x1x128xf32> to vector<2x128xf32>
    %38 = arith.truncf %37 : vector<2x128xf32> to vector<2x128xbf16>
    %c4 = arith.constant 4 : index
    %c0_16 = arith.constant 0 : index
    %c0_17 = arith.constant 0 : index
    %39 = vector.load %arg6[%c4, %c0_16, %c0_17] : memref<8x128x512xbf16, #tpu.memory_space<vmem>>, vector<1x128x512xbf16>
    %40 = vector.shape_cast %39 : vector<1x128x512xbf16> to vector<128x512xbf16>
    %cst_18 = arith.constant dense<0.000000e+00> : vector<2x512xf32>
    %41 = tpu.matmul %38, %40, %cst_18 {dimension_numbers = #tpu.dot_dimension_numbers<[1], [0], [0], [1], [0, 0, 1, 1], [], []>} : vector<2x128xbf16>, vector<128x512xbf16>, vector<2x512xf32> -> vector<2x512xf32>
    %42 = arith.addf %35, %41 : vector<2x512xf32>
    %43 = vector.extract_strided_slice %6 {offsets = [0, 5, 0], sizes = [2, 1, 128], strides = [1, 1, 1]} : vector<2x8x128xf32> to vector<2x1x128xf32>
    %44 = vector.shape_cast %43 : vector<2x1x128xf32> to vector<2x128xf32>
    %45 = arith.truncf %44 : vector<2x128xf32> to vector<2x128xbf16>
    %c5 = arith.constant 5 : index
    %c0_19 = arith.constant 0 : index
    %c0_20 = arith.constant 0 : index
    %46 = vector.load %arg6[%c5, %c0_19, %c0_20] : memref<8x128x512xbf16, #tpu.memory_space<vmem>>, vector<1x128x512xbf16>
    %47 = vector.shape_cast %46 : vector<1x128x512xbf16> to vector<128x512xbf16>
    %cst_21 = arith.constant dense<0.000000e+00> : vector<2x512xf32>
    %48 = tpu.matmul %45, %47, %cst_21 {dimension_numbers = #tpu.dot_dimension_numbers<[1], [0], [0], [1], [0, 0, 1, 1], [], []>} : vector<2x128xbf16>, vector<128x512xbf16>, vector<2x512xf32> -> vector<2x512xf32>
    %49 = arith.addf %42, %48 : vector<2x512xf32>
    %50 = vector.extract_strided_slice %6 {offsets = [0, 6, 0], sizes = [2, 1, 128], strides = [1, 1, 1]} : vector<2x8x128xf32> to vector<2x1x128xf32>
    %51 = vector.shape_cast %50 : vector<2x1x128xf32> to vector<2x128xf32>
    %52 = arith.truncf %51 : vector<2x128xf32> to vector<2x128xbf16>
    %c6 = arith.constant 6 : index
    %c0_22 = arith.constant 0 : index
    %c0_23 = arith.constant 0 : index
    %53 = vector.load %arg6[%c6, %c0_22, %c0_23] : memref<8x128x512xbf16, #tpu.memory_space<vmem>>, vector<1x128x512xbf16>
    %54 = vector.shape_cast %53 : vector<1x128x512xbf16> to vector<128x512xbf16>
    %cst_24 = arith.constant dense<0.000000e+00> : vector<2x512xf32>
    %55 = tpu.matmul %52, %54, %cst_24 {dimension_numbers = #tpu.dot_dimension_numbers<[1], [0], [0], [1], [0, 0, 1, 1], [], []>} : vector<2x128xbf16>, vector<128x512xbf16>, vector<2x512xf32> -> vector<2x512xf32>
    %56 = arith.addf %49, %55 : vector<2x512xf32>
    %57 = vector.extract_strided_slice %6 {offsets = [0, 7, 0], sizes = [2, 1, 128], strides = [1, 1, 1]} : vector<2x8x128xf32> to vector<2x1x128xf32>
    %58 = vector.shape_cast %57 : vector<2x1x128xf32> to vector<2x128xf32>
    %59 = arith.truncf %58 : vector<2x128xf32> to vector<2x128xbf16>
    %c7 = arith.constant 7 : index
    %c0_25 = arith.constant 0 : index
    %c0_26 = arith.constant 0 : index
    %60 = vector.load %arg6[%c7, %c0_25, %c0_26] : memref<8x128x512xbf16, #tpu.memory_space<vmem>>, vector<1x128x512xbf16>
    %61 = vector.shape_cast %60 : vector<1x128x512xbf16> to vector<128x512xbf16>
    %cst_27 = arith.constant dense<0.000000e+00> : vector<2x512xf32>
    %62 = tpu.matmul %59, %61, %cst_27 {dimension_numbers = #tpu.dot_dimension_numbers<[1], [0], [0], [1], [0, 0, 1, 1], [], []>} : vector<2x128xbf16>, vector<128x512xbf16>, vector<2x512xf32> -> vector<2x512xf32>
    %63 = arith.addf %56, %62 : vector<2x512xf32>
    %c0_28 = arith.constant 0 : index
    %c0_29 = arith.constant 0 : index
    %64 = vector.load %arg10[%c0_28, %c0_29] : memref<2x512xf32, #tpu.memory_space<vmem>>, vector<2x512xf32>
    tpu.vector_store %arg10[%c0_28, %c0_29], %63 {strides = array<i32>} : memref<2x512xf32, #tpu.memory_space<vmem>>, vector<2x512xf32>,
    %c1_i32 = arith.constant 1 : i32
    %65 = arith.cmpi eq, %arg1, %c1_i32 : i32
    %66 = arith.extui %65 : i1 to i32
    %c0_i32_30 = arith.constant 0 : i32
    %67 = arith.cmpi ne, %66, %c0_i32_30 : i32
    scf.if %67 {
      %c0_31 = arith.constant 0 : index
      %c0_32 = arith.constant 0 : index
      %68 = vector.load %arg10[%c0_31, %c0_32] : memref<2x512xf32, #tpu.memory_space<vmem>>, vector<2x512xf32>
      %c0_33 = arith.constant 0 : index
      %c0_34 = arith.constant 0 : index
      %69 = vector.load %arg7[%c0_33, %c0_34] : memref<1x512xf32, #tpu.memory_space<vmem>>, vector<1x512xf32>
      %70 = vector.broadcast %69 : vector<1x512xf32> to vector<2x512xf32>
      %71 = arith.addf %68, %70 : vector<2x512xf32>
      %cst_35 = arith.constant 0.000000e+00 : f32
      %72 = vector.broadcast %cst_35 : f32 to vector<2x512xf32>
      %73 = arith.maximumf %71, %72 : vector<2x512xf32>
      %c0_36 = arith.constant 0 : index
      %c0_37 = arith.constant 0 : index
      %74 = vector.load %arg8[%c0_36, %c0_37] : memref<2x512xf32, #tpu.memory_space<vmem>>, vector<2x512xf32>
      tpu.vector_store %arg8[%c0_36, %c0_37], %73 {strides = array<i32>} : memref<2x512xf32, #tpu.memory_space<vmem>>, vector<2x512xf32>,
    } else {
    }
    return
  }
  func.func @transform_0(%arg0: i32, %arg1: i32) -> (i32, i32, i32) {
    %c0_i32 = arith.constant 0 : i32
    %c0_i32_0 = arith.constant 0 : i32
    %c0_i32_1 = arith.constant 0 : i32
    %c0_i32_2 = arith.constant 0 : i32
    return %c0_i32, %c0_i32_0, %c0_i32_1 : i32, i32, i32
  }
  func.func @transform_1(%arg0: i32, %arg1: i32) -> (i32, i32) {
    %c0_i32 = arith.constant 0 : i32
    %c0_i32_0 = arith.constant 0 : i32
    %c0_i32_1 = arith.constant 0 : i32
    return %c0_i32, %c0_i32_0 : i32, i32
  }
  func.func @transform_2(%arg0: i32, %arg1: i32) -> (i32, i32) {
    %c0_i32 = arith.constant 0 : i32
    %c0_i32_0 = arith.constant 0 : i32
    %c0_i32_1 = arith.constant 0 : i32
    return %c0_i32, %c0_i32_0 : i32, i32
  }
  func.func @transform_3(%arg0: i32, %arg1: i32) -> (i32, i32) {
    %c0_i32 = arith.constant 0 : i32
    %c0_i32_0 = arith.constant 0 : i32
    %c0_i32_1 = arith.constant 0 : i32
    return %c0_i32, %c0_i32_0 : i32, i32
  }
  func.func @transform_4(%arg0: i32, %arg1: i32) -> (i32, i32, i32) {
    %c0_i32 = arith.constant 0 : i32
    %c0_i32_0 = arith.constant 0 : i32
    return %arg1, %c0_i32, %arg0 : i32, i32, i32
  }
  func.func @transform_5(%arg0: i32, %arg1: i32) -> (i32, i32) {
    %c0_i32 = arith.constant 0 : i32
    %c0_i32_0 = arith.constant 0 : i32
    return %c0_i32, %arg0 : i32, i32
  }
  func.func @transform_6(%arg0: i32, %arg1: i32) -> (i32, i32) {
    %c0_i32 = arith.constant 0 : i32
    %c0_i32_0 = arith.constant 0 : i32
    return %c0_i32, %arg0 : i32, i32
  }
}

</mosaic_0001>

<llo_original>
// kernel: tpu_custom_call.1
$region0: #{tpu_custom_call.1}
  #allocation0 [shape = 'u32[]', space=smem, size = 0x4, offset = 0x4, fixed_abs, tag = 'smem constant byte address 0x4 - core index']
  #allocation1 [shape = 'u32[144,128]{1,0:T(1,128)}', space=vmem, size = 0x12000, scoped, tag = 'internal scratch']
  #allocation2 [shape = 'f32[2,16,128]{2,1,0:T(8,128)}', space=vmem, size = 0x4000, scoped, tag = 'scratch operand']
  #allocation3 [shape = 'f32[2,512]{1,0:T(2,128)}', space=vmem, size = 0x1000, scoped, tag = 'scratch operand']
  %s0 = inlined_call_operand.vmem [shape: f32[2,196,4], index: 0, kind: input, shape index: {}]
  %s1 = inlined_call_operand.hbm [shape: f32[16,196], index: 1, kind: input, shape index: {}]
  %s2 = inlined_call_operand.hbm [shape: f32[4,128], index: 2, kind: input, shape index: {}]
  %s3 = inlined_call_operand.hbm [shape: f32[1,128], index: 3, kind: input, shape index: {}]
  %s4 = inlined_call_operand.hbm [shape: bf16[16,128,1024], index: 4, kind: input, shape index: {}]
  %s5 = inlined_call_operand.hbm [shape: f32[1,1024], index: 5, kind: input, shape index: {}]
  %s6 = inlined_call_operand.hbm [shape: f32[2,1024], index: 6, kind: output, shape index: {}]
  %s7 = sld [smem:[#allocation0]]
  $region85: #{tpu_custom_call.1} parent=0
    _
  %s9 = ssub.s32 1, %s7
  %s10 = scalar_select 0, %s9, %s7
  $region1: #{tpu_custom_call.1} parent=0
    #allocation4 [shape = 'u8[16384]{0}', space=vmem, size = 0x4000, scoped, tag = 'input window, operand 1, single buffered']
    #allocation5 [shape = 's32[2]{0}', space=sflag, size = 0x8, scoped, tag = 'scoped memory for tpu_custom_call.1']
    #allocation6 [shape = 's32[2]{0}', space=sflag, size = 0x8, scoped, tag = 'scoped memory for tpu_custom_call.1']
    #allocation7 [shape = 'u8[2048]{0}', space=vmem, size = 0x800, scoped, tag = 'input window, operand 2, single buffered']
    #allocation8 [shape = 's32[1]{0}', space=sflag, size = 0x4, scoped, tag = 'scoped memory for tpu_custom_call.1']
    #allocation9 [shape = 'u8[512]{0}', space=vmem, size = 0x400, scoped, tag = 'input window, operand 3, single buffered']
    #allocation10 [shape = 'u8[2097152]{0}', space=vmem, size = 0x200000, scoped, tag = 'input window, operand 4']
    #allocation11 [shape = 's32[2]{0}', space=sflag, size = 0x8, scoped, tag = 'scoped memory for tpu_custom_call.1']
    #allocation12 [shape = 'u8[4096]{0}', space=vmem, size = 0x1000, scoped, tag = 'input window, operand 5']
    #allocation13 [shape = 'u8[8192]{0}', space=vmem, size = 0x2000, scoped, tag = 'output window, operand 0']
    %11 = vsyncpa [#allocation5], 0
    %12 = vsyncpa [#allocation8], 0
    %13 = vsyncpa [#allocation11], 0
    %s14 = scalar_lea.sflag [#allocation11], 1
    %15 = vsyncpa %s14, 0
    %16 = vsyncpa [#allocation6], 0
    %s17 = scalar_lea.sflag [#allocation6], 1
    %18 = vsyncpa %s17, 0
    loop: start=0, step=1, limit=6
    $region2: #{tpu_custom_call.1} parent=1 // loop_pre_header
      _
    $region3: #{tpu_custom_call.1} parent=1 // loop_header
      %s20 = sphi 0, %s24
      %p21 = scmp.ge.s32.totalorder %s20, 6
      %s27 = sphi 0, %s39
      %s28 = sphi 0, %s35
      %s29 = sphi 0, %s27
      %s30 = sphi 0, %s28
      %s31 = sphi 0, %s29
      %s32 = sphi 0, %s30
      %s40 = sphi 0, %s40
      %s42 = sphi 0, %s40
      %s43 = sphi 0, %s42
      %s57 = sphi 0, %s43
      %s61 = sphi 0, %s61
      %s63 = sphi 0, %s61
      %s64 = sphi 0, %s63
      %s78 = sphi 0, %s64
      %s82 = sphi 0, %s82
      %s84 = sphi 0, %s82
      %s85 = sphi 0, %s84
      %s99 = sphi 0, %s85
      %s103 = sphi 0, %s103
      %s105 = sphi 0, %s103
      %s106 = sphi 0, %s105
      %s120 = sphi 0, %s106
      %s128 = sphi 0, %s130
      %s131 = sphi 0, %s128
      %s132 = sphi 0, %s131
      %s148 = sphi 0, %s132
      %s154 = sphi 0, %s156
      %s157 = sphi 0, %s154
      %s158 = sphi 0, %s157
      %s174 = sphi 0, %s158
      %s180 = sphi 0, %s182
      %s183 = sphi 0, %s180
      %s184 = sphi 0, %s183
      %s200 = sphi 0, %s184
    $region4: #{tpu_custom_call.1} parent=1 // loop_header_branch
      %23 = sbr.rel (%p21) target = $region8
    $region5: #{tpu_custom_call.1} parent=1 // loop_body
      %s25 = ssub.s32 %s20, 1
      %s26 = ssub.s32 %s20, 2
      %s33 = sadd.s32 1, %s28
      %p34 = scmp.ge.s32.totalorder %s33, 2
      %s35 = scalar_select %p34, 0, %s33
      %s36 = sadd.s32 1, %s27
      %s37 = scalar_select %p34, %s36, %s27
      %p38 = scmp.ge.s32.totalorder %s37, 2
      %s39 = scalar_select %p38, 0, %s37
      %s41 = sadd.s32 %s40, 1
      %p44 = scmp.eq.s32.totalorder %s20, 3
      %p45 = scmp.ne.s32.totalorder %s40, %s42
      %p46 = scmp.eq.s32.totalorder %s20, 0
      %p47 = por %p45, %p46
      %p48 = scmp.ne.s32.totalorder %s40, %s42
      %p49 = scmp.eq.s32.totalorder %s25, 3
      %p50 = por %p48, %p49
      %p51 = scmp.ne.s32.totalorder %s42, %s43
      %p52 = scmp.eq.s32.totalorder %s25, 0
      %p53 = por %p51, %p52
      %p54 = scmp.ne.s32.totalorder %s42, %s43
      %p55 = scmp.eq.s32.totalorder %s26, 3
      %p56 = por %p54, %p55
      %p58 = scmp.ne.s32.totalorder %s43, %s57
      %p59 = scmp.eq.s32.totalorder %s26, 0
      %p60 = por %p58, %p59
      %s62 = sadd.s32 %s61, 1
      %p65 = scmp.eq.s32.totalorder %s20, 3
      %p66 = scmp.ne.s32.totalorder %s61, %s63
      %p67 = scmp.eq.s32.totalorder %s20, 0
      %p68 = por %p66, %p67
      %p69 = scmp.ne.s32.totalorder %s61, %s63
      %p70 = scmp.eq.s32.totalorder %s25, 3
      %p71 = por %p69, %p70
      %p72 = scmp.ne.s32.totalorder %s63, %s64
      %p73 = scmp.eq.s32.totalorder %s25, 0
      %p74 = por %p72, %p73
      %p75 = scmp.ne.s32.totalorder %s63, %s64
      %p76 = scmp.eq.s32.totalorder %s26, 3
      %p77 = por %p75, %p76
      %p79 = scmp.ne.s32.totalorder %s64, %s78
      %p80 = scmp.eq.s32.totalorder %s26, 0
      %p81 = por %p79, %p80
      %s83 = sadd.s32 %s82, 1
      %p86 = scmp.eq.s32.totalorder %s20, 3
      %p87 = scmp.ne.s32.totalorder %s82, %s84
      %p88 = scmp.eq.s32.totalorder %s20, 0
      %p89 = por %p87, %p88
      %p90 = scmp.ne.s32.totalorder %s82, %s84
      %p91 = scmp.eq.s32.totalorder %s25, 3
      %p92 = por %p90, %p91
      %p93 = scmp.ne.s32.totalorder %s84, %s85
      %p94 = scmp.eq.s32.totalorder %s25, 0
      %p95 = por %p93, %p94
      %p96 = scmp.ne.s32.totalorder %s84, %s85
      %p97 = scmp.eq.s32.totalorder %s26, 3
      %p98 = por %p96, %p97
      %p100 = scmp.ne.s32.totalorder %s85, %s99
      %p101 = scmp.eq.s32.totalorder %s26, 0
      %p102 = por %p100, %p101
      %s104 = sadd.s32 %s103, 1
      %p107 = scmp.eq.s32.totalorder %s20, 3
      %p108 = scmp.ne.s32.totalorder %s103, %s105
      %p109 = scmp.eq.s32.totalorder %s20, 0
      %p110 = por %p108, %p109
      %p111 = scmp.ne.s32.totalorder %s103, %s105
      %p112 = scmp.eq.s32.totalorder %s25, 3
      %p113 = por %p111, %p112
      %p114 = scmp.ne.s32.totalorder %s105, %s106
      %p115 = scmp.eq.s32.totalorder %s25, 0
      %p116 = por %p114, %p115
      %p117 = scmp.ne.s32.totalorder %s105, %s106
      %p118 = scmp.eq.s32.totalorder %s26, 3
      %p119 = por %p117, %p118
      %p121 = scmp.ne.s32.totalorder %s106, %s120
      %p122 = scmp.eq.s32.totalorder %s26, 0
      %p123 = por %p121, %p122
      %s124 = ssub.s32 %s28, %s35
      %s125 = ssub.s32 %s27, %s39
      %s126 = sor.u32 %s124, %s125
      %p127 = scmp.eq.s32.totalorder %s126, 0
      %s129 = sadd.s32 %s128, 1
      %s130 = scalar_select %p127, %s128, %s129
      %p133 = pneg %p127
      %p134 = scmp.eq.s32.totalorder %s20, 3
      %p135 = por %p133, %p134
      %p136 = scmp.ne.s32.totalorder %s128, %s131
      %p137 = scmp.eq.s32.totalorder %s20, 0
      %p138 = por %p136, %p137
      %p139 = scmp.ne.s32.totalorder %s128, %s131
      %p140 = scmp.eq.s32.totalorder %s25, 3
      %p141 = por %p139, %p140
      %p142 = scmp.ne.s32.totalorder %s131, %s132
      %p143 = scmp.eq.s32.totalorder %s25, 0
      %p144 = por %p142, %p143
      %p145 = scmp.ne.s32.totalorder %s131, %s132
      %p146 = scmp.eq.s32.totalorder %s26, 3
      %p147 = por %p145, %p146
      %p149 = scmp.ne.s32.totalorder %s132, %s148
      %p150 = scmp.eq.s32.totalorder %s26, 0
      %p151 = por %p149, %p150
      %s152 = ssub.s32 %s27, %s39
      %p153 = scmp.eq.s32.totalorder %s152, 0
      %s155 = sadd.s32 %s154, 1
      %s156 = scalar_select %p153, %s154, %s155
      %p159 = pneg %p153
      %p160 = scmp.eq.s32.totalorder %s20, 3
      %p161 = por %p159, %p160
      %p162 = scmp.ne.s32.totalorder %s154, %s157
      %p163 = scmp.eq.s32.totalorder %s20, 0
      %p164 = por %p162, %p163
      %p165 = scmp.ne.s32.totalorder %s154, %s157
      %p166 = scmp.eq.s32.totalorder %s25, 3
      %p167 = por %p165, %p166
      %p168 = scmp.ne.s32.totalorder %s157, %s158
      %p169 = scmp.eq.s32.totalorder %s25, 0
      %p170 = por %p168, %p169
      %p171 = scmp.ne.s32.totalorder %s157, %s158
      %p172 = scmp.eq.s32.totalorder %s26, 3
      %p173 = por %p171, %p172
      %p175 = scmp.ne.s32.totalorder %s158, %s174
      %p176 = scmp.eq.s32.totalorder %s26, 0
      %p177 = por %p175, %p176
      %s178 = ssub.s32 %s27, %s39
      %p179 = scmp.eq.s32.totalorder %s178, 0
      %s181 = sadd.s32 %s180, 1
      %s182 = scalar_select %p179, %s180, %s181
      %p185 = pneg %p179
      %p186 = scmp.eq.s32.totalorder %s20, 3
      %p187 = por %p185, %p186
      %p188 = scmp.ne.s32.totalorder %s180, %s183
      %p189 = scmp.eq.s32.totalorder %s20, 0
      %p190 = por %p188, %p189
      %p191 = scmp.ne.s32.totalorder %s180, %s183
      %p192 = scmp.eq.s32.totalorder %s25, 3
      %p193 = por %p191, %p192
      %p194 = scmp.ne.s32.totalorder %s183, %s184
      %p195 = scmp.eq.s32.totalorder %s25, 0
      %p196 = por %p194, %p195
      %p197 = scmp.ne.s32.totalorder %s183, %s184
      %p198 = scmp.eq.s32.totalorder %s26, 3
      %p199 = por %p197, %p198
      %p201 = scmp.ne.s32.totalorder %s184, %s200
      %p202 = scmp.eq.s32.totalorder %s26, 0
      %p203 = por %p201, %p202
      %p204 = scmp.le.s32.totalorder 1, %s20
      %p205 = scmp.lt.s32.totalorder %s20, 5
      %p206 = pnand %p204, %p205
      %p207 = pneg %p206
      // Predicated region
      $region9: #{tpu_custom_call.1} parent=5 // pred_check
        _
      $region10: #{tpu_custom_call.1} parent=5 // pred_check_branch
        %209 = sbr.rel (%p206) target = $region12
      $region11: #{tpu_custom_call.1} parent=5 // pred_region
        %s210 = ssub.s32 %s20, 1
        // Predicated region
        $region13: #{tpu_custom_call.1} parent=11 // pred_check
          %p211 = pneg %p53
        $region14: #{tpu_custom_call.1} parent=11 // pred_check_branch
          %213 = sbr.rel (%p211) target = $region16
        $region15: #{tpu_custom_call.1} parent=11 // pred_region
          _
        $region16: #{tpu_custom_call.1} parent=11 // pred_fallthru
          _
        // Predicated region
        $region17: #{tpu_custom_call.1} parent=11 // pred_check
          %p214 = pneg %p74
        $region18: #{tpu_custom_call.1} parent=11 // pred_check_branch
          %216 = sbr.rel (%p214) target = $region20
        $region19: #{tpu_custom_call.1} parent=11 // pred_region
          %s218 = ssub.s32 512, 512
          %219 = vsyncadd [#allocation5], %s218
          %s220 = sshll.u32 [#allocation4], 4
          %s221 = int_to_ptr.vmem [resolvable:$true] %s220
          %226 = dma.hbm_to_vmem [thread:$0]  %s1, 512, %s221, [#allocation5], 256, 256, 16
        $region20: #{tpu_custom_call.1} parent=11 // pred_fallthru
          _
        // Predicated region
        $region21: #{tpu_custom_call.1} parent=11 // pred_check
          %p227 = pneg %p95
        $region22: #{tpu_custom_call.1} parent=11 // pred_check_branch
          %229 = sbr.rel (%p227) target = $region24
        $region23: #{tpu_custom_call.1} parent=11 // pred_region
          %s231 = ssub.s32 64, 64
          %232 = vsyncadd [#allocation8], %s231
          %s234 = sshll.u32 [#allocation7], 4
          %s235 = int_to_ptr.vmem [resolvable:$true] %s234
          %237 = dma.hbm_to_vmem [thread:$0]  %s2, 64, %s235, [#allocation8]
        $region24: #{tpu_custom_call.1} parent=11 // pred_fallthru
          _
        // Predicated region
        $region25: #{tpu_custom_call.1} parent=11 // pred_check
          %p238 = pneg %p116
        $region26: #{tpu_custom_call.1} parent=11 // pred_check_branch
          %240 = sbr.rel (%p238) target = $region28
        $region27: #{tpu_custom_call.1} parent=11 // pred_region
          %s242 = ssub.s32 16, 16
          %243 = vsyncadd [#allocation8], %s242
          %s245 = sshll.u32 [#allocation9], 4
          %s246 = int_to_ptr.vmem [resolvable:$true] %s245
          %248 = dma.hbm_to_vmem [thread:$0]  %s3, 16, %s246, [#allocation8]
        $region28: #{tpu_custom_call.1} parent=11 // pred_fallthru
          _
      $region12: #{tpu_custom_call.1} parent=5 // pred_fallthru
        _
      %p249 = scmp.lt.s32.totalorder %s20, 4
      // Predicated region
      $region29: #{tpu_custom_call.1} parent=5 // pred_check
        %p250 = pneg %p249
      $region30: #{tpu_custom_call.1} parent=5 // pred_check_branch
        %252 = sbr.rel (%p250) target = $region32
      $region31: #{tpu_custom_call.1} parent=5 // pred_region
        // Predicated region
        $region33: #{tpu_custom_call.1} parent=31 // pred_check
          %p253 = pneg %p138
        $region34: #{tpu_custom_call.1} parent=31 // pred_check_branch
          %255 = sbr.rel (%p253) target = $region36
        $region35: #{tpu_custom_call.1} parent=31 // pred_region
          %s256 = sand.u32 %s20, 1
          %s257 = scalar_lea.sflag [#allocation11], %s256
          %s258 = sand.u32 %s128, 1
          %s259 = smul.addr %s258, 2048
          %s260 = scalar_lea.vmem [#allocation10], %s259
          %s261 = smul.u32 8, %s28
          %s262 = smul.u32 4, %s27
          %s264 = ssub.s32 32768, 32768
          %265 = vsyncadd %s257, %s264
          %s266 = smul.addr %s261, 128
          %s267 = sadd.s32 %s262, %s266
          %s268 = smul.addr %s267, 64
          %s269 = scalar_lea.hbm %s4, %s268
          %s270 = sshll.u32 %s260, 4
          %s271 = int_to_ptr.vmem [resolvable:$true] %s270
          %276 = dma.hbm_to_vmem [thread:$0]  %s269, 32768, %s271, %s257, 512, 256, 16
        $region36: #{tpu_custom_call.1} parent=31 // pred_fallthru
          _
        // Predicated region
        $region37: #{tpu_custom_call.1} parent=31 // pred_check
          %p277 = pneg %p164
        $region38: #{tpu_custom_call.1} parent=31 // pred_check_branch
          %279 = sbr.rel (%p277) target = $region40
        $region39: #{tpu_custom_call.1} parent=31 // pred_region
          %s280 = sand.u32 %s20, 1
          %s281 = scalar_lea.sflag [#allocation11], %s280
          %s282 = sand.u32 %s154, 1
          %s283 = smul.addr %s282, 4
          %s284 = scalar_lea.vmem [#allocation12], %s283
          %s285 = smul.u32 4, %s27
          %s287 = ssub.s32 64, 64
          %288 = vsyncadd %s281, %s287
          %s289 = smul.addr %s285, 16
          %s290 = scalar_lea.hbm %s5, %s289
          %s292 = sshll.u32 %s284, 4
          %s293 = int_to_ptr.vmem [resolvable:$true] %s292
          %295 = dma.hbm_to_vmem [thread:$0]  %s290, 64, %s293, %s281
        $region40: #{tpu_custom_call.1} parent=31 // pred_fallthru
          _
      $region32: #{tpu_custom_call.1} parent=5 // pred_fallthru
        _
      %p296 = scmp.le.s32.totalorder 1, %s20
      %p297 = scmp.lt.s32.totalorder %s20, 5
      %p298 = pnand %p296, %p297
      %p299 = pneg %p298
      // Predicated region
      $region41: #{tpu_custom_call.1} parent=5 // pred_check
        _
      $region42: #{tpu_custom_call.1} parent=5 // pred_check_branch
        %301 = sbr.rel (%p298) target = $region44
      $region43: #{tpu_custom_call.1} parent=5 // pred_region
        %s302 = ssub.s32 %s20, 1
        // Predicated region
        $region45: #{tpu_custom_call.1} parent=43 // pred_check
          %p303 = pneg %p74
        $region46: #{tpu_custom_call.1} parent=43 // pred_check_branch
          %305 = sbr.rel (%p303) target = $region48
        $region47: #{tpu_custom_call.1} parent=43 // pred_region
          %306 = dma.done [#allocation5], 512
        $region48: #{tpu_custom_call.1} parent=43 // pred_fallthru
          _
        // Predicated region
        $region49: #{tpu_custom_call.1} parent=43 // pred_check
          %p307 = pneg %p95
        $region50: #{tpu_custom_call.1} parent=43 // pred_check_branch
          %309 = sbr.rel (%p307) target = $region52
        $region51: #{tpu_custom_call.1} parent=43 // pred_region
          %310 = dma.done [#allocation8], 64
        $region52: #{tpu_custom_call.1} parent=43 // pred_fallthru
          _
        // Predicated region
        $region53: #{tpu_custom_call.1} parent=43 // pred_check
          %p311 = pneg %p116
        $region54: #{tpu_custom_call.1} parent=43 // pred_check_branch
          %313 = sbr.rel (%p311) target = $region56
        $region55: #{tpu_custom_call.1} parent=43 // pred_region
          %314 = dma.done [#allocation8], 16
        $region56: #{tpu_custom_call.1} parent=43 // pred_fallthru
          _
        %s315 = sand.u32 %s25, 1
        %s316 = scalar_lea.sflag [#allocation11], %s315
        %s317 = sand.u32 %s131, 1
        %s318 = smul.addr %s317, 2048
        %s319 = scalar_lea.vmem [#allocation10], %s318
        // Predicated region
        $region57: #{tpu_custom_call.1} parent=43 // pred_check
          %p320 = pneg %p144
        $region58: #{tpu_custom_call.1} parent=43 // pred_check_branch
          %322 = sbr.rel (%p320) target = $region60
        $region59: #{tpu_custom_call.1} parent=43 // pred_region
          %323 = dma.done %s316, 32768
        $region60: #{tpu_custom_call.1} parent=43 // pred_fallthru
          _
        %s324 = sand.u32 %s25, 1
        %s325 = scalar_lea.sflag [#allocation11], %s324
        %s326 = sand.u32 %s157, 1
        %s327 = smul.addr %s326, 4
        %s328 = scalar_lea.vmem [#allocation12], %s327
        // Predicated region
        $region61: #{tpu_custom_call.1} parent=43 // pred_check
          %p329 = pneg %p170
        $region62: #{tpu_custom_call.1} parent=43 // pred_check_branch
          %331 = sbr.rel (%p329) target = $region64
        $region63: #{tpu_custom_call.1} parent=43 // pred_region
          %332 = dma.done %s325, 64
        $region64: #{tpu_custom_call.1} parent=43 // pred_fallthru
          _
        %p333 = pneg %p53
        %p334 = pneg %p50
        %p335 = pneg %p74
        %p336 = pneg %p71
        %p337 = pneg %p95
        %p338 = pneg %p92
        %p339 = pneg %p116
        %p340 = pneg %p113
        %s341 = sand.u32 %s25, 1
        %s342 = scalar_lea.sflag [#allocation11], %s341
        %s343 = sand.u32 %s131, 1
        %s344 = smul.addr %s343, 2048
        %s345 = scalar_lea.vmem [#allocation10], %s344
        %p346 = pneg %p144
        %p347 = pneg %p141
        %s348 = sand.u32 %s25, 1
        %s349 = scalar_lea.sflag [#allocation11], %s348
        %s350 = sand.u32 %s157, 1
        %s351 = smul.addr %s350, 4
        %s352 = scalar_lea.vmem [#allocation12], %s351
        %p353 = pneg %p170
        %p354 = pneg %p167
        %p355 = pneg %p196
        %p356 = pneg %p193
        %s357 = sand.u32 %s183, 1
        %s358 = scalar_lea.sflag [#allocation6], %s357
        %s359 = sand.u32 %s183, 1
        %s360 = smul.addr %s359, 8
        %s361 = scalar_lea.vmem [#allocation13], %s360
        %s362 = smul.u32 8, %s30
        %s363 = smul.u32 4, %s29
        %s364 = smul.u32 4, %s29
        %s365 = smul.u32 4, %s29
        %p367 = scmp.eq.s32.totalorder %s30, 0
        // Predicated region
        $region65: #{tpu_custom_call.1} parent=43 // pred_check
          %p368 = pneg %p367
        $region66: #{tpu_custom_call.1} parent=43 // pred_check_branch
          %370 = sbr.rel (%p368) target = $region68
        $region67: #{tpu_custom_call.1} parent=43 // pred_region
          %v371 = vld [vmem:[#allocation4] sm:$0xff]
          %v372 = vld [vmem:[#allocation4 + $0x8] sm:$0xff]
          %v373 = vld [vmem:[#allocation4 + $0x10] sm:$0xff]
          %v374 = vld [vmem:[#allocation4 + $0x18] sm:$0xff]
          %v375 = vld [vmem:[#allocation7] sm:$0xf]
          %v376 = vld [vmem:[#allocation9] sm:$0x1]
          %v377 = vld [vmem:[%s0] sm:$0xff]
          %v378 = vld [vmem:[%s0 + $0x8] sm:$0xff]
          %v379 = vld [vmem:[%s0 + $0x10] sm:$0xff]
          %v380 = vld [vmem:[%s0 + $0x18] sm:$0xff]
          %v381 = vld [vmem:[%s0 + $0x20] sm:$0xff]
          %v382 = vld [vmem:[%s0 + $0x28] sm:$0xff]
          %v383 = vld [vmem:[%s0 + $0x30] sm:$0xff]
          %v384 = vld [vmem:[%s0 + $0x38] sm:$0xff]
          %v385 = vld [vmem:[%s0 + $0x40] sm:$0xff]
          %v386 = vld [vmem:[%s0 + $0x48] sm:$0xff]
          %v387 = vld [vmem:[%s0 + $0x50] sm:$0xff]
          %v388 = vld [vmem:[%s0 + $0x58] sm:$0xff]
          %v389 = vld [vmem:[%s0 + $0x60] sm:$0xff]
          %v390 = vld [vmem:[%s0 + $0x68] sm:$0xff]
          %v391 = vld [vmem:[%s0 + $0x70] sm:$0xff]
          %v392 = vld [vmem:[%s0 + $0x78] sm:$0xff]
          %v393 = vld [vmem:[%s0 + $0x80] sm:$0xff]
          %v394 = vld [vmem:[%s0 + $0x88] sm:$0xff]
          %v395 = vld [vmem:[%s0 + $0x90] sm:$0xff]
          %v396 = vld [vmem:[%s0 + $0x98] sm:$0xff]
          %v397 = vld [vmem:[%s0 + $0xa0] sm:$0xff]
          %v398 = vld [vmem:[%s0 + $0xa8] sm:$0xff]
          %v399 = vld [vmem:[%s0 + $0xb0] sm:$0xff]
          %v400 = vld [vmem:[%s0 + $0xb8] sm:$0xff]
          %v401 = vld [vmem:[%s0 + $0xc0] sm:$0xf]
          %vm402 = vcmask 556032
          %v404 = vsel %vm402, %v372, 0
          %v407 = vsel %vm402, %v374, 0
          %vm409 = vcmask 1043456
          %v411 = vsel %vm409, %v401, 0
          %413 = vmatprep.subr.mxu0 0.0
          %414 = vmatpush1.msra.mxu0 %v392
          %415 = vmatprep.subr.mxu0 0.0
          %416 = vmatpush1.msra.mxu0 %v391
          %417 = vmatprep.subr.mxu0 0.0
          %418 = vmatpush1.msra.mxu0 %v390
          %419 = vmatprep.subr.mxu0 0.0
          %420 = vmatpush1.msra.mxu0 %v389
          %421 = vmatprep.subr.mxu0 0.0
          %422 = vmatpush1.msra.mxu0 %v388
          %423 = vmatprep.subr.mxu0 0.0
          %424 = vmatpush1.msra.mxu0 %v387
          %425 = vmatprep.subr.mxu0 0.0
          %426 = vmatpush1.msra.mxu0 %v386
          %427 = vmatprep.subr.mxu0 0.0
          %428 = vmatpush1.msra.mxu0 %v385
          %429 = vmatprep.subr.mxu0 0.0
          %430 = vmatpush1.msra.mxu0 %v384
          %431 = vmatprep.subr.mxu0 0.0
          %432 = vmatpush1.msra.mxu0 %v383
          %433 = vmatprep.subr.mxu0 0.0
          %434 = vmatpush1.msra.mxu0 %v382
          %435 = vmatprep.subr.mxu0 0.0
          %436 = vmatpush1.msra.mxu0 %v381
          %437 = vmatprep.subr.mxu0 0.0
          %438 = vmatpush1.msra.mxu0 %v380
          %439 = vmatprep.subr.mxu0 0.0
          %440 = vmatpush1.msra.mxu0 %v379
          %441 = vmatprep.subr.mxu0 0.0
          %442 = vmatpush1.msra.mxu0 %v378
          %443 = vmatprep.subr.mxu0 0.0
          %444 = vmatpush1.msra.mxu0 %v377
          %445 = vmatprep.subr.mxu0 0.0
          %446 = vmatpush2.msra.mxu0 0.0
          %447 = vmatprep.subr.mxu0 0.0
          %448 = vmatpush2.msra.mxu0 0.0
          %449 = vmatprep.subr.mxu0 0.0
          %450 = vmatpush2.msra.mxu0 0.0
          %451 = vmatprep.subr.mxu0 0.0
          %452 = vmatpush2.msra.mxu0 0.0
          %453 = vmatprep.subr.mxu0 0.0
          %454 = vmatpush2.msra.mxu0 0.0
          %455 = vmatprep.subr.mxu0 0.0
          %456 = vmatpush2.msra.mxu0 0.0
          %457 = vmatprep.subr.mxu0 0.0
          %458 = vmatpush2.msra.mxu0 0.0
          %459 = vmatprep.subr.mxu0 0.0
          %460 = vmatpush2.msra.mxu0 %v411
          %461 = vmatprep.subr.mxu0 0.0
          %462 = vmatpush2.msra.mxu0 %v400
          %463 = vmatprep.subr.mxu0 0.0
          %464 = vmatpush2.msra.mxu0 %v399
          %465 = vmatprep.subr.mxu0 0.0
          %466 = vmatpush2.msra.mxu0 %v398
          %467 = vmatprep.subr.mxu0 0.0
          %468 = vmatpush2.msra.mxu0 %v397
          %469 = vmatprep.subr.mxu0 0.0
          %470 = vmatpush2.msra.mxu0 %v396
          %471 = vmatprep.subr.mxu0 0.0
          %472 = vmatpush2.msra.mxu0 %v395
          %473 = vmatprep.subr.mxu0 0.0
          %474 = vmatpush2.msra.mxu0 %v394
          %475 = vmatprep.subr.mxu0 0.0
          %476 = vmatpush2.msra.mxu0 %v393
          %477 = vmatprep.mubr.f32.mxu0 %v404
          %478 = vmatmul.mubr.f32.gmra.mxu0 %v371
          %v479 = vpop.f32.mrf.mxu0
          %v480 = vadd.f32 0.0, %v479
          %v481 = vpop.f32.mrf.mxu0
          %482 = vmatprep.mubr.f32.mxu0 %v407
          %483 = vmatmul.mubr.f32.gmra.mxu0 %v373
          %v484 = vpop.f32.mrf.mxu0
          %v485 = vadd.f32 0.0, %v484
          %v486 = vpop.f32.mrf.mxu0
          %487 = vdwg.mxu0
          %v489 = vlaneseq
          %v490 = vshrl.u32 %v489, 7
          %v491 = vsub.s32 0, %v490
          %v492 = vrot.slane %v376, %v491
          %vm494 = vcmask 31744
          %v496 = vsel %vm494, %v480, 0
          %v499 = vsel %vm494, %v485, 0
          %v502 = vsel %vm409, %v375, 0
          %504 = vmatprep.subr.mxu0 0.0
          %505 = vmatpush1.msra.mxu0 0.0
          %506 = vmatprep.subr.mxu0 0.0
          %507 = vmatpush1.msra.mxu0 0.0
          %508 = vmatprep.subr.mxu0 0.0
          %509 = vmatpush1.msra.mxu0 0.0
          %510 = vmatprep.subr.mxu0 0.0
          %511 = vmatpush1.msra.mxu0 0.0
          %512 = vmatprep.subr.mxu0 0.0
          %513 = vmatpush1.msra.mxu0 0.0
          %514 = vmatprep.subr.mxu0 0.0
          %515 = vmatpush1.msra.mxu0 0.0
          %516 = vmatprep.subr.mxu0 0.0
          %517 = vmatpush1.msra.mxu0 0.0
          %518 = vmatprep.subr.mxu0 0.0
          %519 = vmatpush1.msra.mxu0 0.0
          %520 = vmatprep.subr.mxu0 0.0
          %521 = vmatpush1.msra.mxu0 0.0
          %522 = vmatprep.subr.mxu0 0.0
          %523 = vmatpush1.msra.mxu0 0.0
          %524 = vmatprep.subr.mxu0 0.0
          %525 = vmatpush1.msra.mxu0 0.0
          %526 = vmatprep.subr.mxu0 0.0
          %527 = vmatpush1.msra.mxu0 0.0
          %528 = vmatprep.subr.mxu0 0.0
          %529 = vmatpush1.msra.mxu0 0.0
          %530 = vmatprep.subr.mxu0 0.0
          %531 = vmatpush1.msra.mxu0 0.0
          %532 = vmatprep.subr.mxu0 0.0
          %533 = vmatpush1.msra.mxu0 0.0
          %534 = vmatprep.subr.mxu0 0.0
          %535 = vmatpush1.msra.mxu0 %v502
          %536 = vmatprep.subr.mxu0 0.0
          %537 = vmatpush2.msra.mxu0 0.0
          %538 = vmatprep.subr.mxu0 0.0
          %539 = vmatpush2.msra.mxu0 0.0
          %540 = vmatprep.subr.mxu0 0.0
          %541 = vmatpush2.msra.mxu0 0.0
          %542 = vmatprep.subr.mxu0 0.0
          %543 = vmatpush2.msra.mxu0 0.0
          %544 = vmatprep.subr.mxu0 0.0
          %545 = vmatpush2.msra.mxu0 0.0
          %546 = vmatprep.subr.mxu0 0.0
          %547 = vmatpush2.msra.mxu0 0.0
          %548 = vmatprep.subr.mxu0 0.0
          %549 = vmatpush2.msra.mxu0 0.0
          %550 = vmatprep.subr.mxu0 0.0
          %551 = vmatpush2.msra.mxu0 0.0
          %552 = vmatprep.subr.mxu0 0.0
          %553 = vmatpush2.msra.mxu0 0.0
          %554 = vmatprep.subr.mxu0 0.0
          %555 = vmatpush2.msra.mxu0 0.0
          %556 = vmatprep.subr.mxu0 0.0
          %557 = vmatpush2.msra.mxu0 0.0
          %558 = vmatprep.subr.mxu0 0.0
          %559 = vmatpush2.msra.mxu0 0.0
          %560 = vmatprep.subr.mxu0 0.0
          %561 = vmatpush2.msra.mxu0 0.0
          %562 = vmatprep.subr.mxu0 0.0
          %563 = vmatpush2.msra.mxu0 0.0
          %564 = vmatprep.subr.mxu0 0.0
          %565 = vmatpush2.msra.mxu0 0.0
          %566 = vmatprep.subr.mxu0 0.0
          %567 = vmatpush2.msra.mxu0 0.0
          %568 = vmatprep.mubr.f32.mxu0 0.0
          %569 = vmatmul.mubr.f32.gmra.mxu0 %v496
          %v570 = vpop.f32.mrf.mxu0
          %v571 = vadd.f32 %v492, %v570
          %v572 = vpop.f32.mrf.mxu0
          %573 = vmatprep.mubr.f32.mxu0 0.0
          %574 = vmatmul.mubr.f32.gmra.mxu0 %v499
          %v575 = vpop.f32.mrf.mxu0
          %v576 = vadd.f32 %v492, %v575
          %v577 = vpop.f32.mrf.mxu0
          %578 = vdwg.mxu0
          %v579 = vmax.f32 %v571, 0.0
          %v580 = vmax.f32 %v576, 0.0
          %581 = vst [vmem:[#allocation2] sm:$0xff] %v579
          %582 = vst [vmem:[#allocation2 + $0x8] sm:$0xff] %v580
          %s583 = scalar_lea.vmem %s0, 200
          %v584 = vld [vmem:[%s583] sm:$0xff]
          %v585 = vld [vmem:[%s583 + $0x8] sm:$0xff]
          %v586 = vld [vmem:[%s583 + $0x10] sm:$0xff]
          %v587 = vld [vmem:[%s583 + $0x18] sm:$0xff]
          %v588 = vld [vmem:[%s583 + $0x20] sm:$0xff]
          %v589 = vld [vmem:[%s583 + $0x28] sm:$0xff]
          %v590 = vld [vmem:[%s583 + $0x30] sm:$0xff]
          %v591 = vld [vmem:[%s583 + $0x38] sm:$0xff]
          %v592 = vld [vmem:[%s583 + $0x40] sm:$0xff]
          %v593 = vld [vmem:[%s583 + $0x48] sm:$0xff]
          %v594 = vld [vmem:[%s583 + $0x50] sm:$0xff]
          %v595 = vld [vmem:[%s583 + $0x58] sm:$0xff]
          %v596 = vld [vmem:[%s583 + $0x60] sm:$0xff]
          %v597 = vld [vmem:[%s583 + $0x68] sm:$0xff]
          %v598 = vld [vmem:[%s583 + $0x70] sm:$0xff]
          %v599 = vld [vmem:[%s583 + $0x78] sm:$0xff]
          %v600 = vld [vmem:[%s583 + $0x80] sm:$0xff]
          %v601 = vld [vmem:[%s583 + $0x88] sm:$0xff]
          %v602 = vld [vmem:[%s583 + $0x90] sm:$0xff]
          %v603 = vld [vmem:[%s583 + $0x98] sm:$0xff]
          %v604 = vld [vmem:[%s583 + $0xa0] sm:$0xff]
          %v605 = vld [vmem:[%s583 + $0xa8] sm:$0xff]
          %v606 = vld [vmem:[%s583 + $0xb0] sm:$0xff]
          %v607 = vld [vmem:[%s583 + $0xb8] sm:$0xff]
          %v608 = vld [vmem:[%s583 + $0xc0] sm:$0xf]
          %v610 = vsel %vm409, %v608, 0
          %612 = vmatprep.subr.mxu0 0.0
          %613 = vmatpush1.msra.mxu0 %v599
          %614 = vmatprep.subr.mxu0 0.0
          %615 = vmatpush1.msra.mxu0 %v598
          %616 = vmatprep.subr.mxu0 0.0
          %617 = vmatpush1.msra.mxu0 %v597
          %618 = vmatprep.subr.mxu0 0.0
          %619 = vmatpush1.msra.mxu0 %v596
          %620 = vmatprep.subr.mxu0 0.0
          %621 = vmatpush1.msra.mxu0 %v595
          %622 = vmatprep.subr.mxu0 0.0
          %623 = vmatpush1.msra.mxu0 %v594
          %624 = vmatprep.subr.mxu0 0.0
          %625 = vmatpush1.msra.mxu0 %v593
          %626 = vmatprep.subr.mxu0 0.0
          %627 = vmatpush1.msra.mxu0 %v592
          %628 = vmatprep.subr.mxu0 0.0
          %629 = vmatpush1.msra.mxu0 %v591
          %630 = vmatprep.subr.mxu0 0.0
          %631 = vmatpush1.msra.mxu0 %v590
          %632 = vmatprep.subr.mxu0 0.0
          %633 = vmatpush1.msra.mxu0 %v589
          %634 = vmatprep.subr.mxu0 0.0
          %635 = vmatpush1.msra.mxu0 %v588
          %636 = vmatprep.subr.mxu0 0.0
          %637 = vmatpush1.msra.mxu0 %v587
          %638 = vmatprep.subr.mxu0 0.0
          %639 = vmatpush1.msra.mxu0 %v586
          %640 = vmatprep.subr.mxu0 0.0
          %641 = vmatpush1.msra.mxu0 %v585
          %642 = vmatprep.subr.mxu0 0.0
          %643 = vmatpush1.msra.mxu0 %v584
          %644 = vmatprep.subr.mxu0 0.0
          %645 = vmatpush2.msra.mxu0 0.0
          %646 = vmatprep.subr.mxu0 0.0
          %647 = vmatpush2.msra.mxu0 0.0
          %648 = vmatprep.subr.mxu0 0.0
          %649 = vmatpush2.msra.mxu0 0.0
          %650 = vmatprep.subr.mxu0 0.0
          %651 = vmatpush2.msra.mxu0 0.0
          %652 = vmatprep.subr.mxu0 0.0
          %653 = vmatpush2.msra.mxu0 0.0
          %654 = vmatprep.subr.mxu0 0.0
          %655 = vmatpush2.msra.mxu0 0.0
          %656 = vmatprep.subr.mxu0 0.0
          %657 = vmatpush2.msra.mxu0 0.0
          %658 = vmatprep.subr.mxu0 0.0
          %659 = vmatpush2.msra.mxu0 %v610
          %660 = vmatprep.subr.mxu0 0.0
          %661 = vmatpush2.msra.mxu0 %v607
          %662 = vmatprep.subr.mxu0 0.0
          %663 = vmatpush2.msra.mxu0 %v606
          %664 = vmatprep.subr.mxu0 0.0
          %665 = vmatpush2.msra.mxu0 %v605
          %666 = vmatprep.subr.mxu0 0.0
          %667 = vmatpush2.msra.mxu0 %v604
          %668 = vmatprep.subr.mxu0 0.0
          %669 = vmatpush2.msra.mxu0 %v603
          %670 = vmatprep.subr.mxu0 0.0
          %671 = vmatpush2.msra.mxu0 %v602
          %672 = vmatprep.subr.mxu0 0.0
          %673 = vmatpush2.msra.mxu0 %v601
          %674 = vmatprep.subr.mxu0 0.0
          %675 = vmatpush2.msra.mxu0 %v600
          %676 = vmatprep.mubr.f32.mxu0 %v404
          %677 = vmatmul.mubr.f32.gmra.mxu0 %v371
          %v678 = vpop.f32.mrf.mxu0
          %v679 = vadd.f32 0.0, %v678
          %v680 = vpop.f32.mrf.mxu0
          %681 = vmatprep.mubr.f32.mxu0 %v407
          %682 = vmatmul.mubr.f32.gmra.mxu0 %v373
          %v683 = vpop.f32.mrf.mxu0
          %v684 = vadd.f32 0.0, %v683
          %v685 = vpop.f32.mrf.mxu0
          %686 = vdwg.mxu0
          %v688 = vsel %vm494, %v679, 0
          %v691 = vsel %vm494, %v684, 0
          %693 = vmatprep.subr.mxu0 0.0
          %694 = vmatpush1.msra.mxu0 0.0
          %695 = vmatprep.subr.mxu0 0.0
          %696 = vmatpush1.msra.mxu0 0.0
          %697 = vmatprep.subr.mxu0 0.0
          %698 = vmatpush1.msra.mxu0 0.0
          %699 = vmatprep.subr.mxu0 0.0
          %700 = vmatpush1.msra.mxu0 0.0
          %701 = vmatprep.subr.mxu0 0.0
          %702 = vmatpush1.msra.mxu0 0.0
          %703 = vmatprep.subr.mxu0 0.0
          %704 = vmatpush1.msra.mxu0 0.0
          %705 = vmatprep.subr.mxu0 0.0
          %706 = vmatpush1.msra.mxu0 0.0
          %707 = vmatprep.subr.mxu0 0.0
          %708 = vmatpush1.msra.mxu0 0.0
          %709 = vmatprep.subr.mxu0 0.0
          %710 = vmatpush1.msra.mxu0 0.0
          %711 = vmatprep.subr.mxu0 0.0
          %712 = vmatpush1.msra.mxu0 0.0
          %713 = vmatprep.subr.mxu0 0.0
          %714 = vmatpush1.msra.mxu0 0.0
          %715 = vmatprep.subr.mxu0 0.0
          %716 = vmatpush1.msra.mxu0 0.0
          %717 = vmatprep.subr.mxu0 0.0
          %718 = vmatpush1.msra.mxu0 0.0
          %719 = vmatprep.subr.mxu0 0.0
          %720 = vmatpush1.msra.mxu0 0.0
          %721 = vmatprep.subr.mxu0 0.0
          %722 = vmatpush1.msra.mxu0 0.0
          %723 = vmatprep.subr.mxu0 0.0
          %724 = vmatpush1.msra.mxu0 %v502
          %725 = vmatprep.subr.mxu0 0.0
          %726 = vmatpush2.msra.mxu0 0.0
          %727 = vmatprep.subr.mxu0 0.0
          %728 = vmatpush2.msra.mxu0 0.0
          %729 = vmatprep.subr.mxu0 0.0
          %730 = vmatpush2.msra.mxu0 0.0
          %731 = vmatprep.subr.mxu0 0.0
          %732 = vmatpush2.msra.mxu0 0.0
          %733 = vmatprep.subr.mxu0 0.0
          %734 = vmatpush2.msra.mxu0 0.0
          %735 = vmatprep.subr.mxu0 0.0
          %736 = vmatpush2.msra.mxu0 0.0
          %737 = vmatprep.subr.mxu0 0.0
          %738 = vmatpush2.msra.mxu0 0.0
          %739 = vmatprep.subr.mxu0 0.0
          %740 = vmatpush2.msra.mxu0 0.0
          %741 = vmatprep.subr.mxu0 0.0
          %742 = vmatpush2.msra.mxu0 0.0
          %743 = vmatprep.subr.mxu0 0.0
          %744 = vmatpush2.msra.mxu0 0.0
          %745 = vmatprep.subr.mxu0 0.0
          %746 = vmatpush2.msra.mxu0 0.0
          %747 = vmatprep.subr.mxu0 0.0
          %748 = vmatpush2.msra.mxu0 0.0
          %749 = vmatprep.subr.mxu0 0.0
          %750 = vmatpush2.msra.mxu0 0.0
          %751 = vmatprep.subr.mxu0 0.0
          %752 = vmatpush2.msra.mxu0 0.0
          %753 = vmatprep.subr.mxu0 0.0
          %754 = vmatpush2.msra.mxu0 0.0
          %755 = vmatprep.subr.mxu0 0.0
          %756 = vmatpush2.msra.mxu0 0.0
          %757 = vmatprep.mubr.f32.mxu0 0.0
          %758 = vmatmul.mubr.f32.gmra.mxu0 %v688
          %v759 = vpop.f32.mrf.mxu0
          %v760 = vadd.f32 %v492, %v759
          %v761 = vpop.f32.mrf.mxu0
          %762 = vmatprep.mubr.f32.mxu0 0.0
          %763 = vmatmul.mubr.f32.gmra.mxu0 %v691
          %v764 = vpop.f32.mrf.mxu0
          %v765 = vadd.f32 %v492, %v764
          %v766 = vpop.f32.mrf.mxu0
          %767 = vdwg.mxu0
          %v768 = vmax.f32 %v760, 0.0
          %v769 = vmax.f32 %v765, 0.0
          %s770 = scalar_lea.vmem [#allocation2], 16
          %771 = vst [vmem:[%s770] sm:$0xff] %v768
          %772 = vst [vmem:[%s770 + $0x8] sm:$0xff] %v769
          %773 = vst [vmem:[#allocation3] sm:$0xff] 0.0
        $region68: #{tpu_custom_call.1} parent=43 // pred_fallthru
          _
        %s774 = smul.u32 %s30, 8
        %s775 = scalar_lea.vmem [#allocation2], %s774
        %v776 = vld [vmem:[%s775] sm:$0xff]
        %v777 = vld [vmem:[%s775 + $0x10] sm:$0xff]
        %v778 = vld [vmem:[#allocation3] sm:$0xff]
        %v779 = vpack.c.bf16 %v776, %v776
        %v780 = vpack.c.bf16 %v777, %v777
        %v781 = vld [vmem:[%s319] sm:$0xff]
        %v782 = vld [vmem:[%s319 + $0x8] sm:$0xff]
        %v783 = vld [vmem:[%s319 + $0x10] sm:$0xff]
        %v784 = vld [vmem:[%s319 + $0x18] sm:$0xff]
        %v785 = vld [vmem:[%s319 + $0x20] sm:$0xff]
        %v786 = vld [vmem:[%s319 + $0x28] sm:$0xff]
        %v787 = vld [vmem:[%s319 + $0x30] sm:$0xff]
        %v788 = vld [vmem:[%s319 + $0x38] sm:$0xff]
        %v789 = vld [vmem:[%s319 + $0x40] sm:$0xff]
        %v790 = vld [vmem:[%s319 + $0x48] sm:$0xff]
        %v791 = vld [vmem:[%s319 + $0x50] sm:$0xff]
        %v792 = vld [vmem:[%s319 + $0x58] sm:$0xff]
        %v793 = vld [vmem:[%s319 + $0x60] sm:$0xff]
        %v794 = vld [vmem:[%s319 + $0x68] sm:$0xff]
        %v795 = vld [vmem:[%s319 + $0x70] sm:$0xff]
        %v796 = vld [vmem:[%s319 + $0x78] sm:$0xff]
        %v797 = vld [vmem:[%s319 + $0x80] sm:$0xff]
        %v798 = vld [vmem:[%s319 + $0x88] sm:$0xff]
        %v799 = vld [vmem:[%s319 + $0x90] sm:$0xff]
        %v800 = vld [vmem:[%s319 + $0x98] sm:$0xff]
        %v801 = vld [vmem:[%s319 + $0xa0] sm:$0xff]
        %v802 = vld [vmem:[%s319 + $0xa8] sm:$0xff]
        %v803 = vld [vmem:[%s319 + $0xb0] sm:$0xff]
        %v804 = vld [vmem:[%s319 + $0xb8] sm:$0xff]
        %v805 = vld [vmem:[%s319 + $0xc0] sm:$0xff]
        %v806 = vld [vmem:[%s319 + $0xc8] sm:$0xff]
        %v807 = vld [vmem:[%s319 + $0xd0] sm:$0xff]
        %v808 = vld [vmem:[%s319 + $0xd8] sm:$0xff]
        %v809 = vld [vmem:[%s319 + $0xe0] sm:$0xff]
        %v810 = vld [vmem:[%s319 + $0xe8] sm:$0xff]
        %v811 = vld [vmem:[%s319 + $0xf0] sm:$0xff]
        %v812 = vld [vmem:[%s319 + $0xf8] sm:$0xff]
        %v815 = vunpack.c.l.b16 %v779
        %v816 = vunpack.c.l.b16 %v780
        %v817 = vrot.slane %v816, 7
        %vm818 = vcmask 1041409
        %v819 = vsel %vm818, %v817, %v815
        %v820 = vpack.c.b16 %v819, %v819
        %v854 = vunpack.c.l.b16 %v781
        %v855 = vunpack.c.h.b16 %v781
        %v856 = vunpack.c.l.b16 %v782
        %v857 = vunpack.c.h.b16 %v782
        %v858 = vunpack.c.l.b16 %v783
        %v859 = vunpack.c.h.b16 %v783
        %v860 = vunpack.c.l.b16 %v784
        %v861 = vunpack.c.h.b16 %v784
        %v862 = vunpack.c.l.b16 %v785
        %v863 = vunpack.c.h.b16 %v785
        %v864 = vunpack.c.l.b16 %v786
        %v865 = vunpack.c.h.b16 %v786
        %v866 = vunpack.c.l.b16 %v787
        %v867 = vunpack.c.h.b16 %v787
        %v868 = vunpack.c.l.b16 %v788
        %v869 = vunpack.c.h.b16 %v788
        %v870 = vunpack.c.l.b16 %v789
        %v871 = vunpack.c.h.b16 %v789
        %v872 = vunpack.c.l.b16 %v790
        %v873 = vunpack.c.h.b16 %v790
        %v874 = vunpack.c.l.b16 %v791
        %v875 = vunpack.c.h.b16 %v791
        %v876 = vunpack.c.l.b16 %v792
        %v877 = vunpack.c.h.b16 %v792
        %v878 = vunpack.c.l.b16 %v793
        %v879 = vunpack.c.h.b16 %v793
        %v880 = vunpack.c.l.b16 %v794
        %v881 = vunpack.c.h.b16 %v794
        %v882 = vunpack.c.l.b16 %v795
        %v883 = vunpack.c.h.b16 %v795
        %v884 = vunpack.c.l.b16 %v796
        %v885 = vunpack.c.h.b16 %v796
        %v886 = vunpack.c.l.b16 %v797
        %v887 = vunpack.c.h.b16 %v797
        %v888 = vunpack.c.l.b16 %v798
        %v889 = vunpack.c.h.b16 %v798
        %v890 = vunpack.c.l.b16 %v799
        %v891 = vunpack.c.h.b16 %v799
        %v892 = vunpack.c.l.b16 %v800
        %v893 = vunpack.c.h.b16 %v800
        %v894 = vunpack.c.l.b16 %v801
        %v895 = vunpack.c.h.b16 %v801
        %v896 = vunpack.c.l.b16 %v802
        %v897 = vunpack.c.h.b16 %v802
        %v898 = vunpack.c.l.b16 %v803
        %v899 = vunpack.c.h.b16 %v803
        %v900 = vunpack.c.l.b16 %v804
        %v901 = vunpack.c.h.b16 %v804
        %v902 = vunpack.c.l.b16 %v805
        %v903 = vunpack.c.h.b16 %v805
        %v904 = vunpack.c.l.b16 %v806
        %v905 = vunpack.c.h.b16 %v806
        %v906 = vunpack.c.l.b16 %v807
        %v907 = vunpack.c.h.b16 %v807
        %v908 = vunpack.c.l.b16 %v808
        %v909 = vunpack.c.h.b16 %v808
        %v910 = vunpack.c.l.b16 %v809
        %v911 = vunpack.c.h.b16 %v809
        %v912 = vunpack.c.l.b16 %v810
        %v913 = vunpack.c.h.b16 %v810
        %v914 = vunpack.c.l.b16 %v811
        %v915 = vunpack.c.h.b16 %v811
        %v916 = vunpack.c.l.b16 %v812
        %v917 = vunpack.c.h.b16 %v812
        %v918 = vpack.c.b16 %v858, %v854
        %v919 = vpack.c.b16 %v859, %v855
        %v920 = vpack.c.b16 %v860, %v856
        %v921 = vpack.c.b16 %v861, %v857
        %v922 = vpack.c.b16 %v866, %v862
        %v923 = vpack.c.b16 %v867, %v863
        %v924 = vpack.c.b16 %v868, %v864
        %v925 = vpack.c.b16 %v869, %v865
        %v926 = vpack.c.b16 %v874, %v870
        %v927 = vpack.c.b16 %v875, %v871
        %v928 = vpack.c.b16 %v876, %v872
        %v929 = vpack.c.b16 %v877, %v873
        %v930 = vpack.c.b16 %v882, %v878
        %v931 = vpack.c.b16 %v883, %v879
        %v932 = vpack.c.b16 %v884, %v880
        %v933 = vpack.c.b16 %v885, %v881
        %v934 = vpack.c.b16 %v890, %v886
        %v935 = vpack.c.b16 %v891, %v887
        %v936 = vpack.c.b16 %v892, %v888
        %v937 = vpack.c.b16 %v893, %v889
        %v938 = vpack.c.b16 %v898, %v894
        %v939 = vpack.c.b16 %v899, %v895
        %v940 = vpack.c.b16 %v900, %v896
        %v941 = vpack.c.b16 %v901, %v897
        %v942 = vpack.c.b16 %v906, %v902
        %v943 = vpack.c.b16 %v907, %v903
        %v944 = vpack.c.b16 %v908, %v904
        %v945 = vpack.c.b16 %v909, %v905
        %v946 = vpack.c.b16 %v914, %v910
        %v947 = vpack.c.b16 %v915, %v911
        %v948 = vpack.c.b16 %v916, %v912
        %v949 = vpack.c.b16 %v917, %v913
        %982 = vmatprep.subr.bf16.mxu0 %v947
        %983 = vmatpush1.bf16.msra.mxu0 %v946
        %984 = vmatprep.subr.bf16.mxu0 %v943
        %985 = vmatpush1.bf16.msra.mxu0 %v942
        %986 = vmatprep.subr.bf16.mxu0 %v939
        %987 = vmatpush1.bf16.msra.mxu0 %v938
        %988 = vmatprep.subr.bf16.mxu0 %v935
        %989 = vmatpush1.bf16.msra.mxu0 %v934
        %990 = vmatprep.subr.bf16.mxu0 %v931
        %991 = vmatpush1.bf16.msra.mxu0 %v930
        %992 = vmatprep.subr.bf16.mxu0 %v927
        %993 = vmatpush1.bf16.msra.mxu0 %v926
        %994 = vmatprep.subr.bf16.mxu0 %v923
        %995 = vmatpush1.bf16.msra.mxu0 %v922
        %996 = vmatprep.subr.bf16.mxu0 %v919
        %997 = vmatpush1.bf16.msra.mxu0 %v918
        %998 = vmatprep.subr.bf16.mxu0 0
        %999 = vmatpush2.bf16.msra.mxu0 0
        %1000 = vmatprep.subr.bf16.mxu0 0
        %1001 = vmatpush2.bf16.msra.mxu0 0
        %1002 = vmatprep.subr.bf16.mxu0 0
        %1003 = vmatpush2.bf16.msra.mxu0 0
        %1004 = vmatprep.subr.bf16.mxu0 0
        %1005 = vmatpush2.bf16.msra.mxu0 0
        %1006 = vmatprep.subr.bf16.mxu0 0
        %1007 = vmatpush2.bf16.msra.mxu0 0
        %1008 = vmatprep.subr.bf16.mxu0 0
        %1009 = vmatpush2.bf16.msra.mxu0 0
        %1010 = vmatprep.subr.bf16.mxu0 0
        %1011 = vmatpush2.bf16.msra.mxu0 0
        %1012 = vmatprep.subr.bf16.mxu0 0
        %1013 = vmatpush2.bf16.msra.mxu0 0
        %1014 = vmatprep.mubr.bf16.mxu0 0
        %1015 = vmatmul.mubr.bf16.gmra.mxu0 %v820
        %v1016 = vpop.f32.mrf.mxu0
        %v1017 = vadd.f32 0.0, %v1016
        %v1018 = vpop.f32.mrf.mxu0
        %v1019 = vadd.f32 0.0, %v1018
        %v1020 = vpop.f32.mrf.mxu0
        %v1021 = vpop.f32.mrf.mxu0
        %1022 = vdwg.mxu0
        %1023 = vmatprep.subr.bf16.mxu0 %v949
        %1024 = vmatpush1.bf16.msra.mxu0 %v948
        %1025 = vmatprep.subr.bf16.mxu0 %v945
        %1026 = vmatpush1.bf16.msra.mxu0 %v944
        %1027 = vmatprep.subr.bf16.mxu0 %v941
        %1028 = vmatpush1.bf16.msra.mxu0 %v940
        %1029 = vmatprep.subr.bf16.mxu0 %v937
        %1030 = vmatpush1.bf16.msra.mxu0 %v936
        %1031 = vmatprep.subr.bf16.mxu0 %v933
        %1032 = vmatpush1.bf16.msra.mxu0 %v932
        %1033 = vmatprep.subr.bf16.mxu0 %v929
        %1034 = vmatpush1.bf16.msra.mxu0 %v928
        %1035 = vmatprep.subr.bf16.mxu0 %v925
        %1036 = vmatpush1.bf16.msra.mxu0 %v924
        %1037 = vmatprep.subr.bf16.mxu0 %v921
        %1038 = vmatpush1.bf16.msra.mxu0 %v920
        %1039 = vmatprep.subr.bf16.mxu0 0
        %1040 = vmatpush2.bf16.msra.mxu0 0
        %1041 = vmatprep.subr.bf16.mxu0 0
        %1042 = vmatpush2.bf16.msra.mxu0 0
        %1043 = vmatprep.subr.bf16.mxu0 0
        %1044 = vmatpush2.bf16.msra.mxu0 0
        %1045 = vmatprep.subr.bf16.mxu0 0
        %1046 = vmatpush2.bf16.msra.mxu0 0
        %1047 = vmatprep.subr.bf16.mxu0 0
        %1048 = vmatpush2.bf16.msra.mxu0 0
        %1049 = vmatprep.subr.bf16.mxu0 0
        %1050 = vmatpush2.bf16.msra.mxu0 0
        %1051 = vmatprep.subr.bf16.mxu0 0
        %1052 = vmatpush2.bf16.msra.mxu0 0
        %1053 = vmatprep.subr.bf16.mxu0 0
        %1054 = vmatpush2.bf16.msra.mxu0 0
        %1055 = vmatprep.mubr.bf16.mxu0 0
        %1056 = vmatmul.mubr.bf16.gmra.mxu0 %v820
        %v1057 = vpop.f32.mrf.mxu0
        %v1058 = vadd.f32 0.0, %v1057
        %v1059 = vpop.f32.mrf.mxu0
        %v1060 = vadd.f32 0.0, %v1059
        %v1061 = vpop.f32.mrf.mxu0
        %v1062 = vpop.f32.mrf.mxu0
        %1063 = vdwg.mxu0
        %v1068 = vcombine.low %v1017, %v1019
        %v1069 = vcombine.low %v1058, %v1060
        %v1071 = vunpack.c.l.s4 1983009808
        %v1072 = vunpack.c.0.s8 %v1071
        %v1073 = vlaneseq
        %v1074 = vshrl.u32 %v1073, 7
        %v1075 = vsub.s32 %v1072, %v1074
        %v1076 = vrot.slane %v1068, %v1075
        %v1078 = vunpack.c.l.s4 1983009808
        %v1079 = vunpack.c.0.s8 %v1078
        %v1080 = vlaneseq
        %v1081 = vshrl.u32 %v1080, 7
        %v1082 = vsub.s32 %v1079, %v1081
        %v1083 = vrot.slane %v1069, %v1082
        %v1084 = vcombine.low %v1076, %v1083
        %v1086 = vadd.f32 %v778, %v1084
        %s1087 = scalar_lea.vmem %s319, 256 [#allocation10]
        %v1088 = vld [vmem:[%s1087] sm:$0xff]
        %v1089 = vld [vmem:[%s1087 + $0x8] sm:$0xff]
        %v1090 = vld [vmem:[%s1087 + $0x10] sm:$0xff]
        %v1091 = vld [vmem:[%s1087 + $0x18] sm:$0xff]
        %v1092 = vld [vmem:[%s1087 + $0x20] sm:$0xff]
        %v1093 = vld [vmem:[%s1087 + $0x28] sm:$0xff]
        %v1094 = vld [vmem:[%s1087 + $0x30] sm:$0xff]
        %v1095 = vld [vmem:[%s1087 + $0x38] sm:$0xff]
        %v1096 = vld [vmem:[%s1087 + $0x40] sm:$0xff]
        %v1097 = vld [vmem:[%s1087 + $0x48] sm:$0xff]
        %v1098 = vld [vmem:[%s1087 + $0x50] sm:$0xff]
        %v1099 = vld [vmem:[%s1087 + $0x58] sm:$0xff]
        %v1100 = vld [vmem:[%s1087 + $0x60] sm:$0xff]
        %v1101 = vld [vmem:[%s1087 + $0x68] sm:$0xff]
        %v1102 = vld [vmem:[%s1087 + $0x70] sm:$0xff]
        %v1103 = vld [vmem:[%s1087 + $0x78] sm:$0xff]
        %v1104 = vld [vmem:[%s1087 + $0x80] sm:$0xff]
        %v1105 = vld [vmem:[%s1087 + $0x88] sm:$0xff]
        %v1106 = vld [vmem:[%s1087 + $0x90] sm:$0xff]
        %v1107 = vld [vmem:[%s1087 + $0x98] sm:$0xff]
        %v1108 = vld [vmem:[%s1087 + $0xa0] sm:$0xff]
        %v1109 = vld [vmem:[%s1087 + $0xa8] sm:$0xff]
        %v1110 = vld [vmem:[%s1087 + $0xb0] sm:$0xff]
        %v1111 = vld [vmem:[%s1087 + $0xb8] sm:$0xff]
        %v1112 = vld [vmem:[%s1087 + $0xc0] sm:$0xff]
        %v1113 = vld [vmem:[%s1087 + $0xc8] sm:$0xff]
        %v1114 = vld [vmem:[%s1087 + $0xd0] sm:$0xff]
        %v1115 = vld [vmem:[%s1087 + $0xd8] sm:$0xff]
        %v1116 = vld [vmem:[%s1087 + $0xe0] sm:$0xff]
        %v1117 = vld [vmem:[%s1087 + $0xe8] sm:$0xff]
        %v1118 = vld [vmem:[%s1087 + $0xf0] sm:$0xff]
        %v1119 = vld [vmem:[%s1087 + $0xf8] sm:$0xff]
        %v1120 = vrot.slane %v815, 1
        %v1121 = vsel %vm818, %v816, %v1120
        %v1122 = vpack.c.b16 %v1121, %v1121
        %v1156 = vunpack.c.l.b16 %v1088
        %v1157 = vunpack.c.h.b16 %v1088
        %v1158 = vunpack.c.l.b16 %v1089
        %v1159 = vunpack.c.h.b16 %v1089
        %v1160 = vunpack.c.l.b16 %v1090
        %v1161 = vunpack.c.h.b16 %v1090
        %v1162 = vunpack.c.l.b16 %v1091
        %v1163 = vunpack.c.h.b16 %v1091
        %v1164 = vunpack.c.l.b16 %v1092
        %v1165 = vunpack.c.h.b16 %v1092
        %v1166 = vunpack.c.l.b16 %v1093
        %v1167 = vunpack.c.h.b16 %v1093
        %v1168 = vunpack.c.l.b16 %v1094
        %v1169 = vunpack.c.h.b16 %v1094
        %v1170 = vunpack.c.l.b16 %v1095
        %v1171 = vunpack.c.h.b16 %v1095
        %v1172 = vunpack.c.l.b16 %v1096
        %v1173 = vunpack.c.h.b16 %v1096
        %v1174 = vunpack.c.l.b16 %v1097
        %v1175 = vunpack.c.h.b16 %v1097
        %v1176 = vunpack.c.l.b16 %v1098
        %v1177 = vunpack.c.h.b16 %v1098
        %v1178 = vunpack.c.l.b16 %v1099
        %v1179 = vunpack.c.h.b16 %v1099
        %v1180 = vunpack.c.l.b16 %v1100
        %v1181 = vunpack.c.h.b16 %v1100
        %v1182 = vunpack.c.l.b16 %v1101
        %v1183 = vunpack.c.h.b16 %v1101
        %v1184 = vunpack.c.l.b16 %v1102
        %v1185 = vunpack.c.h.b16 %v1102
        %v1186 = vunpack.c.l.b16 %v1103
        %v1187 = vunpack.c.h.b16 %v1103
        %v1188 = vunpack.c.l.b16 %v1104
        %v1189 = vunpack.c.h.b16 %v1104
        %v1190 = vunpack.c.l.b16 %v1105
        %v1191 = vunpack.c.h.b16 %v1105
        %v1192 = vunpack.c.l.b16 %v1106
        %v1193 = vunpack.c.h.b16 %v1106
        %v1194 = vunpack.c.l.b16 %v1107
        %v1195 = vunpack.c.h.b16 %v1107
        %v1196 = vunpack.c.l.b16 %v1108
        %v1197 = vunpack.c.h.b16 %v1108
        %v1198 = vunpack.c.l.b16 %v1109
        %v1199 = vunpack.c.h.b16 %v1109
        %v1200 = vunpack.c.l.b16 %v1110
        %v1201 = vunpack.c.h.b16 %v1110
        %v1202 = vunpack.c.l.b16 %v1111
        %v1203 = vunpack.c.h.b16 %v1111
        %v1204 = vunpack.c.l.b16 %v1112
        %v1205 = vunpack.c.h.b16 %v1112
        %v1206 = vunpack.c.l.b16 %v1113
        %v1207 = vunpack.c.h.b16 %v1113
        %v1208 = vunpack.c.l.b16 %v1114
        %v1209 = vunpack.c.h.b16 %v1114
        %v1210 = vunpack.c.l.b16 %v1115
        %v1211 = vunpack.c.h.b16 %v1115
        %v1212 = vunpack.c.l.b16 %v1116
        %v1213 = vunpack.c.h.b16 %v1116
        %v1214 = vunpack.c.l.b16 %v1117
        %v1215 = vunpack.c.h.b16 %v1117
        %v1216 = vunpack.c.l.b16 %v1118
        %v1217 = vunpack.c.h.b16 %v1118
        %v1218 = vunpack.c.l.b16 %v1119
        %v1219 = vunpack.c.h.b16 %v1119
        %v1220 = vpack.c.b16 %v1160, %v1156
        %v1221 = vpack.c.b16 %v1161, %v1157
        %v1222 = vpack.c.b16 %v1162, %v1158
        %v1223 = vpack.c.b16 %v1163, %v1159
        %v1224 = vpack.c.b16 %v1168, %v1164
        %v1225 = vpack.c.b16 %v1169, %v1165
        %v1226 = vpack.c.b16 %v1170, %v1166
        %v1227 = vpack.c.b16 %v1171, %v1167
        %v1228 = vpack.c.b16 %v1176, %v1172
        %v1229 = vpack.c.b16 %v1177, %v1173
        %v1230 = vpack.c.b16 %v1178, %v1174
        %v1231 = vpack.c.b16 %v1179, %v1175
        %v1232 = vpack.c.b16 %v1184, %v1180
        %v1233 = vpack.c.b16 %v1185, %v1181
        %v1234 = vpack.c.b16 %v1186, %v1182
        %v1235 = vpack.c.b16 %v1187, %v1183
        %v1236 = vpack.c.b16 %v1192, %v1188
        %v1237 = vpack.c.b16 %v1193, %v1189
        %v1238 = vpack.c.b16 %v1194, %v1190
        %v1239 = vpack.c.b16 %v1195, %v1191
        %v1240 = vpack.c.b16 %v1200, %v1196
        %v1241 = vpack.c.b16 %v1201, %v1197
        %v1242 = vpack.c.b16 %v1202, %v1198
        %v1243 = vpack.c.b16 %v1203, %v1199
        %v1244 = vpack.c.b16 %v1208, %v1204
        %v1245 = vpack.c.b16 %v1209, %v1205
        %v1246 = vpack.c.b16 %v1210, %v1206
        %v1247 = vpack.c.b16 %v1211, %v1207
        %v1248 = vpack.c.b16 %v1216, %v1212
        %v1249 = vpack.c.b16 %v1217, %v1213
        %v1250 = vpack.c.b16 %v1218, %v1214
        %v1251 = vpack.c.b16 %v1219, %v1215
        %1284 = vmatprep.subr.bf16.mxu0 %v1249
        %1285 = vmatpush1.bf16.msra.mxu0 %v1248
        %1286 = vmatprep.subr.bf16.mxu0 %v1245
        %1287 = vmatpush1.bf16.msra.mxu0 %v1244
        %1288 = vmatprep.subr.bf16.mxu0 %v1241
        %1289 = vmatpush1.bf16.msra.mxu0 %v1240
        %1290 = vmatprep.subr.bf16.mxu0 %v1237
        %1291 = vmatpush1.bf16.msra.mxu0 %v1236
        %1292 = vmatprep.subr.bf16.mxu0 %v1233
        %1293 = vmatpush1.bf16.msra.mxu0 %v1232
        %1294 = vmatprep.subr.bf16.mxu0 %v1229
        %1295 = vmatpush1.bf16.msra.mxu0 %v1228
        %1296 = vmatprep.subr.bf16.mxu0 %v1225
        %1297 = vmatpush1.bf16.msra.mxu0 %v1224
        %1298 = vmatprep.subr.bf16.mxu0 %v1221
        %1299 = vmatpush1.bf16.msra.mxu0 %v1220
        %1300 = vmatprep.subr.bf16.mxu0 0
        %1301 = vmatpush2.bf16.msra.mxu0 0
        %1302 = vmatprep.subr.bf16.mxu0 0
        %1303 = vmatpush2.bf16.msra.mxu0 0
        %1304 = vmatprep.subr.bf16.mxu0 0
        %1305 = vmatpush2.bf16.msra.mxu0 0
        %1306 = vmatprep.subr.bf16.mxu0 0
        %1307 = vmatpush2.bf16.msra.mxu0 0
        %1308 = vmatprep.subr.bf16.mxu0 0
        %1309 = vmatpush2.bf16.msra.mxu0 0
        %1310 = vmatprep.subr.bf16.mxu0 0
        %1311 = vmatpush2.bf16.msra.mxu0 0
        %1312 = vmatprep.subr.bf16.mxu0 0
        %1313 = vmatpush2.bf16.msra.mxu0 0
        %1314 = vmatprep.subr.bf16.mxu0 0
        %1315 = vmatpush2.bf16.msra.mxu0 0
        %1316 = vmatprep.mubr.bf16.mxu0 0
        %1317 = vmatmul.mubr.bf16.gmra.mxu0 %v1122
        %v1318 = vpop.f32.mrf.mxu0
        %v1319 = vadd.f32 0.0, %v1318
        %v1320 = vpop.f32.mrf.mxu0
        %v1321 = vadd.f32 0.0, %v1320
        %v1322 = vpop.f32.mrf.mxu0
        %v1323 = vpop.f32.mrf.mxu0
        %1324 = vdwg.mxu0
        %1325 = vmatprep.subr.bf16.mxu0 %v1251
        %1326 = vmatpush1.bf16.msra.mxu0 %v1250
        %1327 = vmatprep.subr.bf16.mxu0 %v1247
        %1328 = vmatpush1.bf16.msra.mxu0 %v1246
        %1329 = vmatprep.subr.bf16.mxu0 %v1243
        %1330 = vmatpush1.bf16.msra.mxu0 %v1242
        %1331 = vmatprep.subr.bf16.mxu0 %v1239
        %1332 = vmatpush1.bf16.msra.mxu0 %v1238
        %1333 = vmatprep.subr.bf16.mxu0 %v1235
        %1334 = vmatpush1.bf16.msra.mxu0 %v1234
        %1335 = vmatprep.subr.bf16.mxu0 %v1231
        %1336 = vmatpush1.bf16.msra.mxu0 %v1230
        %1337 = vmatprep.subr.bf16.mxu0 %v1227
        %1338 = vmatpush1.bf16.msra.mxu0 %v1226
        %1339 = vmatprep.subr.bf16.mxu0 %v1223
        %1340 = vmatpush1.bf16.msra.mxu0 %v1222
        %1341 = vmatprep.subr.bf16.mxu0 0
        %1342 = vmatpush2.bf16.msra.mxu0 0
        %1343 = vmatprep.subr.bf16.mxu0 0
        %1344 = vmatpush2.bf16.msra.mxu0 0
        %1345 = vmatprep.subr.bf16.mxu0 0
        %1346 = vmatpush2.bf16.msra.mxu0 0
        %1347 = vmatprep.subr.bf16.mxu0 0
        %1348 = vmatpush2.bf16.msra.mxu0 0
        %1349 = vmatprep.subr.bf16.mxu0 0
        %1350 = vmatpush2.bf16.msra.mxu0 0
        %1351 = vmatprep.subr.bf16.mxu0 0
        %1352 = vmatpush2.bf16.msra.mxu0 0
        %1353 = vmatprep.subr.bf16.mxu0 0
        %1354 = vmatpush2.bf16.msra.mxu0 0
        %1355 = vmatprep.subr.bf16.mxu0 0
        %1356 = vmatpush2.bf16.msra.mxu0 0
        %1357 = vmatprep.mubr.bf16.mxu0 0
        %1358 = vmatmul.mubr.bf16.gmra.mxu0 %v1122
        %v1359 = vpop.f32.mrf.mxu0
        %v1360 = vadd.f32 0.0, %v1359
        %v1361 = vpop.f32.mrf.mxu0
        %v1362 = vadd.f32 0.0, %v1361
        %v1363 = vpop.f32.mrf.mxu0
        %v1364 = vpop.f32.mrf.mxu0
        %1365 = vdwg.mxu0
        %v1370 = vcombine.low %v1319, %v1321
        %v1371 = vcombine.low %v1360, %v1362
        %v1373 = vunpack.c.l.s4 1983009808
        %v1374 = vunpack.c.0.s8 %v1373
        %v1375 = vlaneseq
        %v1376 = vshrl.u32 %v1375, 7
        %v1377 = vsub.s32 %v1374, %v1376
        %v1378 = vrot.slane %v1370, %v1377
        %v1380 = vunpack.c.l.s4 1983009808
        %v1381 = vunpack.c.0.s8 %v1380
        %v1382 = vlaneseq
        %v1383 = vshrl.u32 %v1382, 7
        %v1384 = vsub.s32 %v1381, %v1383
        %v1385 = vrot.slane %v1371, %v1384
        %v1386 = vcombine.low %v1378, %v1385
        %v1388 = vadd.f32 %v1086, %v1386
        %s1389 = scalar_lea.vmem %s319, 512 [#allocation10]
        %v1390 = vld [vmem:[%s1389] sm:$0xff]
        %v1391 = vld [vmem:[%s1389 + $0x8] sm:$0xff]
        %v1392 = vld [vmem:[%s1389 + $0x10] sm:$0xff]
        %v1393 = vld [vmem:[%s1389 + $0x18] sm:$0xff]
        %v1394 = vld [vmem:[%s1389 + $0x20] sm:$0xff]
        %v1395 = vld [vmem:[%s1389 + $0x28] sm:$0xff]
        %v1396 = vld [vmem:[%s1389 + $0x30] sm:$0xff]
        %v1397 = vld [vmem:[%s1389 + $0x38] sm:$0xff]
        %v1398 = vld [vmem:[%s1389 + $0x40] sm:$0xff]
        %v1399 = vld [vmem:[%s1389 + $0x48] sm:$0xff]
        %v1400 = vld [vmem:[%s1389 + $0x50] sm:$0xff]
        %v1401 = vld [vmem:[%s1389 + $0x58] sm:$0xff]
        %v1402 = vld [vmem:[%s1389 + $0x60] sm:$0xff]
        %v1403 = vld [vmem:[%s1389 + $0x68] sm:$0xff]
        %v1404 = vld [vmem:[%s1389 + $0x70] sm:$0xff]
        %v1405 = vld [vmem:[%s1389 + $0x78] sm:$0xff]
        %v1406 = vld [vmem:[%s1389 + $0x80] sm:$0xff]
        %v1407 = vld [vmem:[%s1389 + $0x88] sm:$0xff]
        %v1408 = vld [vmem:[%s1389 + $0x90] sm:$0xff]
        %v1409 = vld [vmem:[%s1389 + $0x98] sm:$0xff]
        %v1410 = vld [vmem:[%s1389 + $0xa0] sm:$0xff]
        %v1411 = vld [vmem:[%s1389 + $0xa8] sm:$0xff]
        %v1412 = vld [vmem:[%s1389 + $0xb0] sm:$0xff]
        %v1413 = vld [vmem:[%s1389 + $0xb8] sm:$0xff]
        %v1414 = vld [vmem:[%s1389 + $0xc0] sm:$0xff]
        %v1415 = vld [vmem:[%s1389 + $0xc8] sm:$0xff]
        %v1416 = vld [vmem:[%s1389 + $0xd0] sm:$0xff]
        %v1417 = vld [vmem:[%s1389 + $0xd8] sm:$0xff]
        %v1418 = vld [vmem:[%s1389 + $0xe0] sm:$0xff]
        %v1419 = vld [vmem:[%s1389 + $0xe8] sm:$0xff]
        %v1420 = vld [vmem:[%s1389 + $0xf0] sm:$0xff]
        %v1421 = vld [vmem:[%s1389 + $0xf8] sm:$0xff]
        %v1422 = vrot.slane %v815, 2
        %v1423 = vrot.slane %v816, 1
        %v1424 = vsel %vm818, %v1423, %v1422
        %v1425 = vpack.c.b16 %v1424, %v1424
        %v1459 = vunpack.c.l.b16 %v1390
        %v1460 = vunpack.c.h.b16 %v1390
        %v1461 = vunpack.c.l.b16 %v1391
        %v1462 = vunpack.c.h.b16 %v1391
        %v1463 = vunpack.c.l.b16 %v1392
        %v1464 = vunpack.c.h.b16 %v1392
        %v1465 = vunpack.c.l.b16 %v1393
        %v1466 = vunpack.c.h.b16 %v1393
        %v1467 = vunpack.c.l.b16 %v1394
        %v1468 = vunpack.c.h.b16 %v1394
        %v1469 = vunpack.c.l.b16 %v1395
        %v1470 = vunpack.c.h.b16 %v1395
        %v1471 = vunpack.c.l.b16 %v1396
        %v1472 = vunpack.c.h.b16 %v1396
        %v1473 = vunpack.c.l.b16 %v1397
        %v1474 = vunpack.c.h.b16 %v1397
        %v1475 = vunpack.c.l.b16 %v1398
        %v1476 = vunpack.c.h.b16 %v1398
        %v1477 = vunpack.c.l.b16 %v1399
        %v1478 = vunpack.c.h.b16 %v1399
        %v1479 = vunpack.c.l.b16 %v1400
        %v1480 = vunpack.c.h.b16 %v1400
        %v1481 = vunpack.c.l.b16 %v1401
        %v1482 = vunpack.c.h.b16 %v1401
        %v1483 = vunpack.c.l.b16 %v1402
        %v1484 = vunpack.c.h.b16 %v1402
        %v1485 = vunpack.c.l.b16 %v1403
        %v1486 = vunpack.c.h.b16 %v1403
        %v1487 = vunpack.c.l.b16 %v1404
        %v1488 = vunpack.c.h.b16 %v1404
        %v1489 = vunpack.c.l.b16 %v1405
        %v1490 = vunpack.c.h.b16 %v1405
        %v1491 = vunpack.c.l.b16 %v1406
        %v1492 = vunpack.c.h.b16 %v1406
        %v1493 = vunpack.c.l.b16 %v1407
        %v1494 = vunpack.c.h.b16 %v1407
        %v1495 = vunpack.c.l.b16 %v1408
        %v1496 = vunpack.c.h.b16 %v1408
        %v1497 = vunpack.c.l.b16 %v1409
        %v1498 = vunpack.c.h.b16 %v1409
        %v1499 = vunpack.c.l.b16 %v1410
        %v1500 = vunpack.c.h.b16 %v1410
        %v1501 = vunpack.c.l.b16 %v1411
        %v1502 = vunpack.c.h.b16 %v1411
        %v1503 = vunpack.c.l.b16 %v1412
        %v1504 = vunpack.c.h.b16 %v1412
        %v1505 = vunpack.c.l.b16 %v1413
        %v1506 = vunpack.c.h.b16 %v1413
        %v1507 = vunpack.c.l.b16 %v1414
        %v1508 = vunpack.c.h.b16 %v1414
        %v1509 = vunpack.c.l.b16 %v1415
        %v1510 = vunpack.c.h.b16 %v1415
        %v1511 = vunpack.c.l.b16 %v1416
        %v1512 = vunpack.c.h.b16 %v1416
        %v1513 = vunpack.c.l.b16 %v1417
        %v1514 = vunpack.c.h.b16 %v1417
        %v1515 = vunpack.c.l.b16 %v1418
        %v1516 = vunpack.c.h.b16 %v1418
        %v1517 = vunpack.c.l.b16 %v1419
        %v1518 = vunpack.c.h.b16 %v1419
        %v1519 = vunpack.c.l.b16 %v1420
        %v1520 = vunpack.c.h.b16 %v1420
        %v1521 = vunpack.c.l.b16 %v1421
        %v1522 = vunpack.c.h.b16 %v1421
        %v1523 = vpack.c.b16 %v1463, %v1459
        %v1524 = vpack.c.b16 %v1464, %v1460
        %v1525 = vpack.c.b16 %v1465, %v1461
        %v1526 = vpack.c.b16 %v1466, %v1462
        %v1527 = vpack.c.b16 %v1471, %v1467
        %v1528 = vpack.c.b16 %v1472, %v1468
        %v1529 = vpack.c.b16 %v1473, %v1469
        %v1530 = vpack.c.b16 %v1474, %v1470
        %v1531 = vpack.c.b16 %v1479, %v1475
        %v1532 = vpack.c.b16 %v1480, %v1476
        %v1533 = vpack.c.b16 %v1481, %v1477
        %v1534 = vpack.c.b16 %v1482, %v1478
        %v1535 = vpack.c.b16 %v1487, %v1483
        %v1536 = vpack.c.b16 %v1488, %v1484
        %v1537 = vpack.c.b16 %v1489, %v1485
        %v1538 = vpack.c.b16 %v1490, %v1486
        %v1539 = vpack.c.b16 %v1495, %v1491
        %v1540 = vpack.c.b16 %v1496, %v1492
        %v1541 = vpack.c.b16 %v1497, %v1493
        %v1542 = vpack.c.b16 %v1498, %v1494
        %v1543 = vpack.c.b16 %v1503, %v1499
        %v1544 = vpack.c.b16 %v1504, %v1500
        %v1545 = vpack.c.b16 %v1505, %v1501
        %v1546 = vpack.c.b16 %v1506, %v1502
        %v1547 = vpack.c.b16 %v1511, %v1507
        %v1548 = vpack.c.b16 %v1512, %v1508
        %v1549 = vpack.c.b16 %v1513, %v1509
        %v1550 = vpack.c.b16 %v1514, %v1510
        %v1551 = vpack.c.b16 %v1519, %v1515
        %v1552 = vpack.c.b16 %v1520, %v1516
        %v1553 = vpack.c.b16 %v1521, %v1517
        %v1554 = vpack.c.b16 %v1522, %v1518
        %1587 = vmatprep.subr.bf16.mxu0 %v1552
        %1588 = vmatpush1.bf16.msra.mxu0 %v1551
        %1589 = vmatprep.subr.bf16.mxu0 %v1548
        %1590 = vmatpush1.bf16.msra.mxu0 %v1547
        %1591 = vmatprep.subr.bf16.mxu0 %v1544
        %1592 = vmatpush1.bf16.msra.mxu0 %v1543
        %1593 = vmatprep.subr.bf16.mxu0 %v1540
        %1594 = vmatpush1.bf16.msra.mxu0 %v1539
        %1595 = vmatprep.subr.bf16.mxu0 %v1536
        %1596 = vmatpush1.bf16.msra.mxu0 %v1535
        %1597 = vmatprep.subr.bf16.mxu0 %v1532
        %1598 = vmatpush1.bf16.msra.mxu0 %v1531
        %1599 = vmatprep.subr.bf16.mxu0 %v1528
        %1600 = vmatpush1.bf16.msra.mxu0 %v1527
        %1601 = vmatprep.subr.bf16.mxu0 %v1524
        %1602 = vmatpush1.bf16.msra.mxu0 %v1523
        %1603 = vmatprep.subr.bf16.mxu0 0
        %1604 = vmatpush2.bf16.msra.mxu0 0
        %1605 = vmatprep.subr.bf16.mxu0 0
        %1606 = vmatpush2.bf16.msra.mxu0 0
        %1607 = vmatprep.subr.bf16.mxu0 0
        %1608 = vmatpush2.bf16.msra.mxu0 0
        %1609 = vmatprep.subr.bf16.mxu0 0
        %1610 = vmatpush2.bf16.msra.mxu0 0
        %1611 = vmatprep.subr.bf16.mxu0 0
        %1612 = vmatpush2.bf16.msra.mxu0 0
        %1613 = vmatprep.subr.bf16.mxu0 0
        %1614 = vmatpush2.bf16.msra.mxu0 0
        %1615 = vmatprep.subr.bf16.mxu0 0
        %1616 = vmatpush2.bf16.msra.mxu0 0
        %1617 = vmatprep.subr.bf16.mxu0 0
        %1618 = vmatpush2.bf16.msra.mxu0 0
        %1619 = vmatprep.mubr.bf16.mxu0 0
        %1620 = vmatmul.mubr.bf16.gmra.mxu0 %v1425
        %v1621 = vpop.f32.mrf.mxu0
        %v1622 = vadd.f32 0.0, %v1621
        %v1623 = vpop.f32.mrf.mxu0
        %v1624 = vadd.f32 0.0, %v1623
        %v1625 = vpop.f32.mrf.mxu0
        %v1626 = vpop.f32.mrf.mxu0
        %1627 = vdwg.mxu0
        %1628 = vmatprep.subr.bf16.mxu0 %v1554
        %1629 = vmatpush1.bf16.msra.mxu0 %v1553
        %1630 = vmatprep.subr.bf16.mxu0 %v1550
        %1631 = vmatpush1.bf16.msra.mxu0 %v1549
        %1632 = vmatprep.subr.bf16.mxu0 %v1546
        %1633 = vmatpush1.bf16.msra.mxu0 %v1545
        %1634 = vmatprep.subr.bf16.mxu0 %v1542
        %1635 = vmatpush1.bf16.msra.mxu0 %v1541
        %1636 = vmatprep.subr.bf16.mxu0 %v1538
        %1637 = vmatpush1.bf16.msra.mxu0 %v1537
        %1638 = vmatprep.subr.bf16.mxu0 %v1534
        %1639 = vmatpush1.bf16.msra.mxu0 %v1533
        %1640 = vmatprep.subr.bf16.mxu0 %v1530
        %1641 = vmatpush1.bf16.msra.mxu0 %v1529
        %1642 = vmatprep.subr.bf16.mxu0 %v1526
        %1643 = vmatpush1.bf16.msra.mxu0 %v1525
        %1644 = vmatprep.subr.bf16.mxu0 0
        %1645 = vmatpush2.bf16.msra.mxu0 0
        %1646 = vmatprep.subr.bf16.mxu0 0
        %1647 = vmatpush2.bf16.msra.mxu0 0
        %1648 = vmatprep.subr.bf16.mxu0 0
        %1649 = vmatpush2.bf16.msra.mxu0 0
        %1650 = vmatprep.subr.bf16.mxu0 0
        %1651 = vmatpush2.bf16.msra.mxu0 0
        %1652 = vmatprep.subr.bf16.mxu0 0
        %1653 = vmatpush2.bf16.msra.mxu0 0
        %1654 = vmatprep.subr.bf16.mxu0 0
        %1655 = vmatpush2.bf16.msra.mxu0 0
        %1656 = vmatprep.subr.bf16.mxu0 0
        %1657 = vmatpush2.bf16.msra.mxu0 0
        %1658 = vmatprep.subr.bf16.mxu0 0
        %1659 = vmatpush2.bf16.msra.mxu0 0
        %1660 = vmatprep.mubr.bf16.mxu0 0
        %1661 = vmatmul.mubr.bf16.gmra.mxu0 %v1425
        %v1662 = vpop.f32.mrf.mxu0
        %v1663 = vadd.f32 0.0, %v1662
        %v1664 = vpop.f32.mrf.mxu0
        %v1665 = vadd.f32 0.0, %v1664
        %v1666 = vpop.f32.mrf.mxu0
        %v1667 = vpop.f32.mrf.mxu0
        %1668 = vdwg.mxu0
        %v1673 = vcombine.low %v1622, %v1624
        %v1674 = vcombine.low %v1663, %v1665
        %v1676 = vunpack.c.l.s4 1983009808
        %v1677 = vunpack.c.0.s8 %v1676
        %v1678 = vlaneseq
        %v1679 = vshrl.u32 %v1678, 7
        %v1680 = vsub.s32 %v1677, %v1679
        %v1681 = vrot.slane %v1673, %v1680
        %v1683 = vunpack.c.l.s4 1983009808
        %v1684 = vunpack.c.0.s8 %v1683
        %v1685 = vlaneseq
        %v1686 = vshrl.u32 %v1685, 7
        %v1687 = vsub.s32 %v1684, %v1686
        %v1688 = vrot.slane %v1674, %v1687
        %v1689 = vcombine.low %v1681, %v1688
        %v1691 = vadd.f32 %v1388, %v1689
        %s1692 = scalar_lea.vmem %s319, 768 [#allocation10]
        %v1693 = vld [vmem:[%s1692] sm:$0xff]
        %v1694 = vld [vmem:[%s1692 + $0x8] sm:$0xff]
        %v1695 = vld [vmem:[%s1692 + $0x10] sm:$0xff]
        %v1696 = vld [vmem:[%s1692 + $0x18] sm:$0xff]
        %v1697 = vld [vmem:[%s1692 + $0x20] sm:$0xff]
        %v1698 = vld [vmem:[%s1692 + $0x28] sm:$0xff]
        %v1699 = vld [vmem:[%s1692 + $0x30] sm:$0xff]
        %v1700 = vld [vmem:[%s1692 + $0x38] sm:$0xff]
        %v1701 = vld [vmem:[%s1692 + $0x40] sm:$0xff]
        %v1702 = vld [vmem:[%s1692 + $0x48] sm:$0xff]
        %v1703 = vld [vmem:[%s1692 + $0x50] sm:$0xff]
        %v1704 = vld [vmem:[%s1692 + $0x58] sm:$0xff]
        %v1705 = vld [vmem:[%s1692 + $0x60] sm:$0xff]
        %v1706 = vld [vmem:[%s1692 + $0x68] sm:$0xff]
        %v1707 = vld [vmem:[%s1692 + $0x70] sm:$0xff]
        %v1708 = vld [vmem:[%s1692 + $0x78] sm:$0xff]
        %v1709 = vld [vmem:[%s1692 + $0x80] sm:$0xff]
        %v1710 = vld [vmem:[%s1692 + $0x88] sm:$0xff]
        %v1711 = vld [vmem:[%s1692 + $0x90] sm:$0xff]
        %v1712 = vld [vmem:[%s1692 + $0x98] sm:$0xff]
        %v1713 = vld [vmem:[%s1692 + $0xa0] sm:$0xff]
        %v1714 = vld [vmem:[%s1692 + $0xa8] sm:$0xff]
        %v1715 = vld [vmem:[%s1692 + $0xb0] sm:$0xff]
        %v1716 = vld [vmem:[%s1692 + $0xb8] sm:$0xff]
        %v1717 = vld [vmem:[%s1692 + $0xc0] sm:$0xff]
        %v1718 = vld [vmem:[%s1692 + $0xc8] sm:$0xff]
        %v1719 = vld [vmem:[%s1692 + $0xd0] sm:$0xff]
        %v1720 = vld [vmem:[%s1692 + $0xd8] sm:$0xff]
        %v1721 = vld [vmem:[%s1692 + $0xe0] sm:$0xff]
        %v1722 = vld [vmem:[%s1692 + $0xe8] sm:$0xff]
        %v1723 = vld [vmem:[%s1692 + $0xf0] sm:$0xff]
        %v1724 = vld [vmem:[%s1692 + $0xf8] sm:$0xff]
        %v1725 = vrot.slane %v815, 3
        %v1726 = vrot.slane %v816, 2
        %v1727 = vsel %vm818, %v1726, %v1725
        %v1728 = vpack.c.b16 %v1727, %v1727
        %v1762 = vunpack.c.l.b16 %v1693
        %v1763 = vunpack.c.h.b16 %v1693
        %v1764 = vunpack.c.l.b16 %v1694
        %v1765 = vunpack.c.h.b16 %v1694
        %v1766 = vunpack.c.l.b16 %v1695
        %v1767 = vunpack.c.h.b16 %v1695
        %v1768 = vunpack.c.l.b16 %v1696
        %v1769 = vunpack.c.h.b16 %v1696
        %v1770 = vunpack.c.l.b16 %v1697
        %v1771 = vunpack.c.h.b16 %v1697
        %v1772 = vunpack.c.l.b16 %v1698
        %v1773 = vunpack.c.h.b16 %v1698
        %v1774 = vunpack.c.l.b16 %v1699
        %v1775 = vunpack.c.h.b16 %v1699
        %v1776 = vunpack.c.l.b16 %v1700
        %v1777 = vunpack.c.h.b16 %v1700
        %v1778 = vunpack.c.l.b16 %v1701
        %v1779 = vunpack.c.h.b16 %v1701
        %v1780 = vunpack.c.l.b16 %v1702
        %v1781 = vunpack.c.h.b16 %v1702
        %v1782 = vunpack.c.l.b16 %v1703
        %v1783 = vunpack.c.h.b16 %v1703
        %v1784 = vunpack.c.l.b16 %v1704
        %v1785 = vunpack.c.h.b16 %v1704
        %v1786 = vunpack.c.l.b16 %v1705
        %v1787 = vunpack.c.h.b16 %v1705
        %v1788 = vunpack.c.l.b16 %v1706
        %v1789 = vunpack.c.h.b16 %v1706
        %v1790 = vunpack.c.l.b16 %v1707
        %v1791 = vunpack.c.h.b16 %v1707
        %v1792 = vunpack.c.l.b16 %v1708
        %v1793 = vunpack.c.h.b16 %v1708
        %v1794 = vunpack.c.l.b16 %v1709
        %v1795 = vunpack.c.h.b16 %v1709
        %v1796 = vunpack.c.l.b16 %v1710
        %v1797 = vunpack.c.h.b16 %v1710
        %v1798 = vunpack.c.l.b16 %v1711
        %v1799 = vunpack.c.h.b16 %v1711
        %v1800 = vunpack.c.l.b16 %v1712
        %v1801 = vunpack.c.h.b16 %v1712
        %v1802 = vunpack.c.l.b16 %v1713
        %v1803 = vunpack.c.h.b16 %v1713
        %v1804 = vunpack.c.l.b16 %v1714
        %v1805 = vunpack.c.h.b16 %v1714
        %v1806 = vunpack.c.l.b16 %v1715
        %v1807 = vunpack.c.h.b16 %v1715
        %v1808 = vunpack.c.l.b16 %v1716
        %v1809 = vunpack.c.h.b16 %v1716
        %v1810 = vunpack.c.l.b16 %v1717
        %v1811 = vunpack.c.h.b16 %v1717
        %v1812 = vunpack.c.l.b16 %v1718
        %v1813 = vunpack.c.h.b16 %v1718
        %v1814 = vunpack.c.l.b16 %v1719
        %v1815 = vunpack.c.h.b16 %v1719
        %v1816 = vunpack.c.l.b16 %v1720
        %v1817 = vunpack.c.h.b16 %v1720
        %v1818 = vunpack.c.l.b16 %v1721
        %v1819 = vunpack.c.h.b16 %v1721
        %v1820 = vunpack.c.l.b16 %v1722
        %v1821 = vunpack.c.h.b16 %v1722
        %v1822 = vunpack.c.l.b16 %v1723
        %v1823 = vunpack.c.h.b16 %v1723
        %v1824 = vunpack.c.l.b16 %v1724
        %v1825 = vunpack.c.h.b16 %v1724
        %v1826 = vpack.c.b16 %v1766, %v1762
        %v1827 = vpack.c.b16 %v1767, %v1763
        %v1828 = vpack.c.b16 %v1768, %v1764
        %v1829 = vpack.c.b16 %v1769, %v1765
        %v1830 = vpack.c.b16 %v1774, %v1770
        %v1831 = vpack.c.b16 %v1775, %v1771
        %v1832 = vpack.c.b16 %v1776, %v1772
        %v1833 = vpack.c.b16 %v1777, %v1773
        %v1834 = vpack.c.b16 %v1782, %v1778
        %v1835 = vpack.c.b16 %v1783, %v1779
        %v1836 = vpack.c.b16 %v1784, %v1780
        %v1837 = vpack.c.b16 %v1785, %v1781
        %v1838 = vpack.c.b16 %v1790, %v1786
        %v1839 = vpack.c.b16 %v1791, %v1787
        %v1840 = vpack.c.b16 %v1792, %v1788
        %v1841 = vpack.c.b16 %v1793, %v1789
        %v1842 = vpack.c.b16 %v1798, %v1794
        %v1843 = vpack.c.b16 %v1799, %v1795
        %v1844 = vpack.c.b16 %v1800, %v1796
        %v1845 = vpack.c.b16 %v1801, %v1797
        %v1846 = vpack.c.b16 %v1806, %v1802
        %v1847 = vpack.c.b16 %v1807, %v1803
        %v1848 = vpack.c.b16 %v1808, %v1804
        %v1849 = vpack.c.b16 %v1809, %v1805
        %v1850 = vpack.c.b16 %v1814, %v1810
        %v1851 = vpack.c.b16 %v1815, %v1811
        %v1852 = vpack.c.b16 %v1816, %v1812
        %v1853 = vpack.c.b16 %v1817, %v1813
        %v1854 = vpack.c.b16 %v1822, %v1818
        %v1855 = vpack.c.b16 %v1823, %v1819
        %v1856 = vpack.c.b16 %v1824, %v1820
        %v1857 = vpack.c.b16 %v1825, %v1821
        %1890 = vmatprep.subr.bf16.mxu0 %v1855
        %1891 = vmatpush1.bf16.msra.mxu0 %v1854
        %1892 = vmatprep.subr.bf16.mxu0 %v1851
        %1893 = vmatpush1.bf16.msra.mxu0 %v1850
        %1894 = vmatprep.subr.bf16.mxu0 %v1847
        %1895 = vmatpush1.bf16.msra.mxu0 %v1846
        %1896 = vmatprep.subr.bf16.mxu0 %v1843
        %1897 = vmatpush1.bf16.msra.mxu0 %v1842
        %1898 = vmatprep.subr.bf16.mxu0 %v1839
        %1899 = vmatpush1.bf16.msra.mxu0 %v1838
        %1900 = vmatprep.subr.bf16.mxu0 %v1835
        %1901 = vmatpush1.bf16.msra.mxu0 %v1834
        %1902 = vmatprep.subr.bf16.mxu0 %v1831
        %1903 = vmatpush1.bf16.msra.mxu0 %v1830
        %1904 = vmatprep.subr.bf16.mxu0 %v1827
        %1905 = vmatpush1.bf16.msra.mxu0 %v1826
        %1906 = vmatprep.subr.bf16.mxu0 0
        %1907 = vmatpush2.bf16.msra.mxu0 0
        %1908 = vmatprep.subr.bf16.mxu0 0
        %1909 = vmatpush2.bf16.msra.mxu0 0
        %1910 = vmatprep.subr.bf16.mxu0 0
        %1911 = vmatpush2.bf16.msra.mxu0 0
        %1912 = vmatprep.subr.bf16.mxu0 0
        %1913 = vmatpush2.bf16.msra.mxu0 0
        %1914 = vmatprep.subr.bf16.mxu0 0
        %1915 = vmatpush2.bf16.msra.mxu0 0
        %1916 = vmatprep.subr.bf16.mxu0 0
        %1917 = vmatpush2.bf16.msra.mxu0 0
        %1918 = vmatprep.subr.bf16.mxu0 0
        %1919 = vmatpush2.bf16.msra.mxu0 0
        %1920 = vmatprep.subr.bf16.mxu0 0
        %1921 = vmatpush2.bf16.msra.mxu0 0
        %1922 = vmatprep.mubr.bf16.mxu0 0
        %1923 = vmatmul.mubr.bf16.gmra.mxu0 %v1728
        %v1924 = vpop.f32.mrf.mxu0
        %v1925 = vadd.f32 0.0, %v1924
        %v1926 = vpop.f32.mrf.mxu0
        %v1927 = vadd.f32 0.0, %v1926
        %v1928 = vpop.f32.mrf.mxu0
        %v1929 = vpop.f32.mrf.mxu0
        %1930 = vdwg.mxu0
        %1931 = vmatprep.subr.bf16.mxu0 %v1857
        %1932 = vmatpush1.bf16.msra.mxu0 %v1856
        %1933 = vmatprep.subr.bf16.mxu0 %v1853
        %1934 = vmatpush1.bf16.msra.mxu0 %v1852
        %1935 = vmatprep.subr.bf16.mxu0 %v1849
        %1936 = vmatpush1.bf16.msra.mxu0 %v1848
        %1937 = vmatprep.subr.bf16.mxu0 %v1845
        %1938 = vmatpush1.bf16.msra.mxu0 %v1844
        %1939 = vmatprep.subr.bf16.mxu0 %v1841
        %1940 = vmatpush1.bf16.msra.mxu0 %v1840
        %1941 = vmatprep.subr.bf16.mxu0 %v1837
        %1942 = vmatpush1.bf16.msra.mxu0 %v1836
        %1943 = vmatprep.subr.bf16.mxu0 %v1833
        %1944 = vmatpush1.bf16.msra.mxu0 %v1832
        %1945 = vmatprep.subr.bf16.mxu0 %v1829
        %1946 = vmatpush1.bf16.msra.mxu0 %v1828
        %1947 = vmatprep.subr.bf16.mxu0 0
        %1948 = vmatpush2.bf16.msra.mxu0 0
        %1949 = vmatprep.subr.bf16.mxu0 0
        %1950 = vmatpush2.bf16.msra.mxu0 0
        %1951 = vmatprep.subr.bf16.mxu0 0
        %1952 = vmatpush2.bf16.msra.mxu0 0
        %1953 = vmatprep.subr.bf16.mxu0 0
        %1954 = vmatpush2.bf16.msra.mxu0 0
        %1955 = vmatprep.subr.bf16.mxu0 0
        %1956 = vmatpush2.bf16.msra.mxu0 0
        %1957 = vmatprep.subr.bf16.mxu0 0
        %1958 = vmatpush2.bf16.msra.mxu0 0
        %1959 = vmatprep.subr.bf16.mxu0 0
        %1960 = vmatpush2.bf16.msra.mxu0 0
        %1961 = vmatprep.subr.bf16.mxu0 0
        %1962 = vmatpush2.bf16.msra.mxu0 0
        %1963 = vmatprep.mubr.bf16.mxu0 0
        %1964 = vmatmul.mubr.bf16.gmra.mxu0 %v1728
        %v1965 = vpop.f32.mrf.mxu0
        %v1966 = vadd.f32 0.0, %v1965
        %v1967 = vpop.f32.mrf.mxu0
        %v1968 = vadd.f32 0.0, %v1967
        %v1969 = vpop.f32.mrf.mxu0
        %v1970 = vpop.f32.mrf.mxu0
        %1971 = vdwg.mxu0
        %v1976 = vcombine.low %v1925, %v1927
        %v1977 = vcombine.low %v1966, %v1968
        %v1979 = vunpack.c.l.s4 1983009808
        %v1980 = vunpack.c.0.s8 %v1979
        %v1981 = vlaneseq
        %v1982 = vshrl.u32 %v1981, 7
        %v1983 = vsub.s32 %v1980, %v1982
        %v1984 = vrot.slane %v1976, %v1983
        %v1986 = vunpack.c.l.s4 1983009808
        %v1987 = vunpack.c.0.s8 %v1986
        %v1988 = vlaneseq
        %v1989 = vshrl.u32 %v1988, 7
        %v1990 = vsub.s32 %v1987, %v1989
        %v1991 = vrot.slane %v1977, %v1990
        %v1992 = vcombine.low %v1984, %v1991
        %v1994 = vadd.f32 %v1691, %v1992
        %s1995 = scalar_lea.vmem %s319, 1024 [#allocation10]
        %v1996 = vld [vmem:[%s1995] sm:$0xff]
        %v1997 = vld [vmem:[%s1995 + $0x8] sm:$0xff]
        %v1998 = vld [vmem:[%s1995 + $0x10] sm:$0xff]
        %v1999 = vld [vmem:[%s1995 + $0x18] sm:$0xff]
        %v2000 = vld [vmem:[%s1995 + $0x20] sm:$0xff]
        %v2001 = vld [vmem:[%s1995 + $0x28] sm:$0xff]
        %v2002 = vld [vmem:[%s1995 + $0x30] sm:$0xff]
        %v2003 = vld [vmem:[%s1995 + $0x38] sm:$0xff]
        %v2004 = vld [vmem:[%s1995 + $0x40] sm:$0xff]
        %v2005 = vld [vmem:[%s1995 + $0x48] sm:$0xff]
        %v2006 = vld [vmem:[%s1995 + $0x50] sm:$0xff]
        %v2007 = vld [vmem:[%s1995 + $0x58] sm:$0xff]
        %v2008 = vld [vmem:[%s1995 + $0x60] sm:$0xff]
        %v2009 = vld [vmem:[%s1995 + $0x68] sm:$0xff]
        %v2010 = vld [vmem:[%s1995 + $0x70] sm:$0xff]
        %v2011 = vld [vmem:[%s1995 + $0x78] sm:$0xff]
        %v2012 = vld [vmem:[%s1995 + $0x80] sm:$0xff]
        %v2013 = vld [vmem:[%s1995 + $0x88] sm:$0xff]
        %v2014 = vld [vmem:[%s1995 + $0x90] sm:$0xff]
        %v2015 = vld [vmem:[%s1995 + $0x98] sm:$0xff]
        %v2016 = vld [vmem:[%s1995 + $0xa0] sm:$0xff]
        %v2017 = vld [vmem:[%s1995 + $0xa8] sm:$0xff]
        %v2018 = vld [vmem:[%s1995 + $0xb0] sm:$0xff]
        %v2019 = vld [vmem:[%s1995 + $0xb8] sm:$0xff]
        %v2020 = vld [vmem:[%s1995 + $0xc0] sm:$0xff]
        %v2021 = vld [vmem:[%s1995 + $0xc8] sm:$0xff]
        %v2022 = vld [vmem:[%s1995 + $0xd0] sm:$0xff]
        %v2023 = vld [vmem:[%s1995 + $0xd8] sm:$0xff]
        %v2024 = vld [vmem:[%s1995 + $0xe0] sm:$0xff]
        %v2025 = vld [vmem:[%s1995 + $0xe8] sm:$0xff]
        %v2026 = vld [vmem:[%s1995 + $0xf0] sm:$0xff]
        %v2027 = vld [vmem:[%s1995 + $0xf8] sm:$0xff]
        %v2028 = vrot.slane %v815, 4
        %v2029 = vrot.slane %v816, 3
        %v2030 = vsel %vm818, %v2029, %v2028
        %v2031 = vpack.c.b16 %v2030, %v2030
        %v2065 = vunpack.c.l.b16 %v1996
        %v2066 = vunpack.c.h.b16 %v1996
        %v2067 = vunpack.c.l.b16 %v1997
        %v2068 = vunpack.c.h.b16 %v1997
        %v2069 = vunpack.c.l.b16 %v1998
        %v2070 = vunpack.c.h.b16 %v1998
        %v2071 = vunpack.c.l.b16 %v1999
        %v2072 = vunpack.c.h.b16 %v1999
        %v2073 = vunpack.c.l.b16 %v2000
        %v2074 = vunpack.c.h.b16 %v2000
        %v2075 = vunpack.c.l.b16 %v2001
        %v2076 = vunpack.c.h.b16 %v2001
        %v2077 = vunpack.c.l.b16 %v2002
        %v2078 = vunpack.c.h.b16 %v2002
        %v2079 = vunpack.c.l.b16 %v2003
        %v2080 = vunpack.c.h.b16 %v2003
        %v2081 = vunpack.c.l.b16 %v2004
        %v2082 = vunpack.c.h.b16 %v2004
        %v2083 = vunpack.c.l.b16 %v2005
        %v2084 = vunpack.c.h.b16 %v2005
        %v2085 = vunpack.c.l.b16 %v2006
        %v2086 = vunpack.c.h.b16 %v2006
        %v2087 = vunpack.c.l.b16 %v2007
        %v2088 = vunpack.c.h.b16 %v2007
        %v2089 = vunpack.c.l.b16 %v2008
        %v2090 = vunpack.c.h.b16 %v2008
        %v2091 = vunpack.c.l.b16 %v2009
        %v2092 = vunpack.c.h.b16 %v2009
        %v2093 = vunpack.c.l.b16 %v2010
        %v2094 = vunpack.c.h.b16 %v2010
        %v2095 = vunpack.c.l.b16 %v2011
        %v2096 = vunpack.c.h.b16 %v2011
        %v2097 = vunpack.c.l.b16 %v2012
        %v2098 = vunpack.c.h.b16 %v2012
        %v2099 = vunpack.c.l.b16 %v2013
        %v2100 = vunpack.c.h.b16 %v2013
        %v2101 = vunpack.c.l.b16 %v2014
        %v2102 = vunpack.c.h.b16 %v2014
        %v2103 = vunpack.c.l.b16 %v2015
        %v2104 = vunpack.c.h.b16 %v2015
        %v2105 = vunpack.c.l.b16 %v2016
        %v2106 = vunpack.c.h.b16 %v2016
        %v2107 = vunpack.c.l.b16 %v2017
        %v2108 = vunpack.c.h.b16 %v2017
        %v2109 = vunpack.c.l.b16 %v2018
        %v2110 = vunpack.c.h.b16 %v2018
        %v2111 = vunpack.c.l.b16 %v2019
        %v2112 = vunpack.c.h.b16 %v2019
        %v2113 = vunpack.c.l.b16 %v2020
        %v2114 = vunpack.c.h.b16 %v2020
        %v2115 = vunpack.c.l.b16 %v2021
        %v2116 = vunpack.c.h.b16 %v2021
        %v2117 = vunpack.c.l.b16 %v2022
        %v2118 = vunpack.c.h.b16 %v2022
        %v2119 = vunpack.c.l.b16 %v2023
        %v2120 = vunpack.c.h.b16 %v2023
        %v2121 = vunpack.c.l.b16 %v2024
        %v2122 = vunpack.c.h.b16 %v2024
        %v2123 = vunpack.c.l.b16 %v2025
        %v2124 = vunpack.c.h.b16 %v2025
        %v2125 = vunpack.c.l.b16 %v2026
        %v2126 = vunpack.c.h.b16 %v2026
        %v2127 = vunpack.c.l.b16 %v2027
        %v2128 = vunpack.c.h.b16 %v2027
        %v2129 = vpack.c.b16 %v2069, %v2065
        %v2130 = vpack.c.b16 %v2070, %v2066
        %v2131 = vpack.c.b16 %v2071, %v2067
        %v2132 = vpack.c.b16 %v2072, %v2068
        %v2133 = vpack.c.b16 %v2077, %v2073
        %v2134 = vpack.c.b16 %v2078, %v2074
        %v2135 = vpack.c.b16 %v2079, %v2075
        %v2136 = vpack.c.b16 %v2080, %v2076
        %v2137 = vpack.c.b16 %v2085, %v2081
        %v2138 = vpack.c.b16 %v2086, %v2082
        %v2139 = vpack.c.b16 %v2087, %v2083
        %v2140 = vpack.c.b16 %v2088, %v2084
        %v2141 = vpack.c.b16 %v2093, %v2089
        %v2142 = vpack.c.b16 %v2094, %v2090
        %v2143 = vpack.c.b16 %v2095, %v2091
        %v2144 = vpack.c.b16 %v2096, %v2092
        %v2145 = vpack.c.b16 %v2101, %v2097
        %v2146 = vpack.c.b16 %v2102, %v2098
        %v2147 = vpack.c.b16 %v2103, %v2099
        %v2148 = vpack.c.b16 %v2104, %v2100
        %v2149 = vpack.c.b16 %v2109, %v2105
        %v2150 = vpack.c.b16 %v2110, %v2106
        %v2151 = vpack.c.b16 %v2111, %v2107
        %v2152 = vpack.c.b16 %v2112, %v2108
        %v2153 = vpack.c.b16 %v2117, %v2113
        %v2154 = vpack.c.b16 %v2118, %v2114
        %v2155 = vpack.c.b16 %v2119, %v2115
        %v2156 = vpack.c.b16 %v2120, %v2116
        %v2157 = vpack.c.b16 %v2125, %v2121
        %v2158 = vpack.c.b16 %v2126, %v2122
        %v2159 = vpack.c.b16 %v2127, %v2123
        %v2160 = vpack.c.b16 %v2128, %v2124
        %2193 = vmatprep.subr.bf16.mxu0 %v2158
        %2194 = vmatpush1.bf16.msra.mxu0 %v2157
        %2195 = vmatprep.subr.bf16.mxu0 %v2154
        %2196 = vmatpush1.bf16.msra.mxu0 %v2153
        %2197 = vmatprep.subr.bf16.mxu0 %v2150
        %2198 = vmatpush1.bf16.msra.mxu0 %v2149
        %2199 = vmatprep.subr.bf16.mxu0 %v2146
        %2200 = vmatpush1.bf16.msra.mxu0 %v2145
        %2201 = vmatprep.subr.bf16.mxu0 %v2142
        %2202 = vmatpush1.bf16.msra.mxu0 %v2141
        %2203 = vmatprep.subr.bf16.mxu0 %v2138
        %2204 = vmatpush1.bf16.msra.mxu0 %v2137
        %2205 = vmatprep.subr.bf16.mxu0 %v2134
        %2206 = vmatpush1.bf16.msra.mxu0 %v2133
        %2207 = vmatprep.subr.bf16.mxu0 %v2130
        %2208 = vmatpush1.bf16.msra.mxu0 %v2129
        %2209 = vmatprep.subr.bf16.mxu0 0
        %2210 = vmatpush2.bf16.msra.mxu0 0
        %2211 = vmatprep.subr.bf16.mxu0 0
        %2212 = vmatpush2.bf16.msra.mxu0 0
        %2213 = vmatprep.subr.bf16.mxu0 0
        %2214 = vmatpush2.bf16.msra.mxu0 0
        %2215 = vmatprep.subr.bf16.mxu0 0
        %2216 = vmatpush2.bf16.msra.mxu0 0
        %2217 = vmatprep.subr.bf16.mxu0 0
        %2218 = vmatpush2.bf16.msra.mxu0 0
        %2219 = vmatprep.subr.bf16.mxu0 0
        %2220 = vmatpush2.bf16.msra.mxu0 0
        %2221 = vmatprep.subr.bf16.mxu0 0
        %2222 = vmatpush2.bf16.msra.mxu0 0
        %2223 = vmatprep.subr.bf16.mxu0 0
        %2224 = vmatpush2.bf16.msra.mxu0 0
        %2225 = vmatprep.mubr.bf16.mxu0 0
        %2226 = vmatmul.mubr.bf16.gmra.mxu0 %v2031
        %v2227 = vpop.f32.mrf.mxu0
        %v2228 = vadd.f32 0.0, %v2227
        %v2229 = vpop.f32.mrf.mxu0
        %v2230 = vadd.f32 0.0, %v2229
        %v2231 = vpop.f32.mrf.mxu0
        %v2232 = vpop.f32.mrf.mxu0
        %2233 = vdwg.mxu0
        %2234 = vmatprep.subr.bf16.mxu0 %v2160
        %2235 = vmatpush1.bf16.msra.mxu0 %v2159
        %2236 = vmatprep.subr.bf16.mxu0 %v2156
        %2237 = vmatpush1.bf16.msra.mxu0 %v2155
        %2238 = vmatprep.subr.bf16.mxu0 %v2152
        %2239 = vmatpush1.bf16.msra.mxu0 %v2151
        %2240 = vmatprep.subr.bf16.mxu0 %v2148
        %2241 = vmatpush1.bf16.msra.mxu0 %v2147
        %2242 = vmatprep.subr.bf16.mxu0 %v2144
        %2243 = vmatpush1.bf16.msra.mxu0 %v2143
        %2244 = vmatprep.subr.bf16.mxu0 %v2140
        %2245 = vmatpush1.bf16.msra.mxu0 %v2139
        %2246 = vmatprep.subr.bf16.mxu0 %v2136
        %2247 = vmatpush1.bf16.msra.mxu0 %v2135
        %2248 = vmatprep.subr.bf16.mxu0 %v2132
        %2249 = vmatpush1.bf16.msra.mxu0 %v2131
        %2250 = vmatprep.subr.bf16.mxu0 0
        %2251 = vmatpush2.bf16.msra.mxu0 0
        %2252 = vmatprep.subr.bf16.mxu0 0
        %2253 = vmatpush2.bf16.msra.mxu0 0
        %2254 = vmatprep.subr.bf16.mxu0 0
        %2255 = vmatpush2.bf16.msra.mxu0 0
        %2256 = vmatprep.subr.bf16.mxu0 0
        %2257 = vmatpush2.bf16.msra.mxu0 0
        %2258 = vmatprep.subr.bf16.mxu0 0
        %2259 = vmatpush2.bf16.msra.mxu0 0
        %2260 = vmatprep.subr.bf16.mxu0 0
        %2261 = vmatpush2.bf16.msra.mxu0 0
        %2262 = vmatprep.subr.bf16.mxu0 0
        %2263 = vmatpush2.bf16.msra.mxu0 0
        %2264 = vmatprep.subr.bf16.mxu0 0
        %2265 = vmatpush2.bf16.msra.mxu0 0
        %2266 = vmatprep.mubr.bf16.mxu0 0
        %2267 = vmatmul.mubr.bf16.gmra.mxu0 %v2031
        %v2268 = vpop.f32.mrf.mxu0
        %v2269 = vadd.f32 0.0, %v2268
        %v2270 = vpop.f32.mrf.mxu0
        %v2271 = vadd.f32 0.0, %v2270
        %v2272 = vpop.f32.mrf.mxu0
        %v2273 = vpop.f32.mrf.mxu0
        %2274 = vdwg.mxu0
        %v2279 = vcombine.low %v2228, %v2230
        %v2280 = vcombine.low %v2269, %v2271
        %v2282 = vunpack.c.l.s4 1983009808
        %v2283 = vunpack.c.0.s8 %v2282
        %v2284 = vlaneseq
        %v2285 = vshrl.u32 %v2284, 7
        %v2286 = vsub.s32 %v2283, %v2285
        %v2287 = vrot.slane %v2279, %v2286
        %v2289 = vunpack.c.l.s4 1983009808
        %v2290 = vunpack.c.0.s8 %v2289
        %v2291 = vlaneseq
        %v2292 = vshrl.u32 %v2291, 7
        %v2293 = vsub.s32 %v2290, %v2292
        %v2294 = vrot.slane %v2280, %v2293
        %v2295 = vcombine.low %v2287, %v2294
        %v2297 = vadd.f32 %v1994, %v2295
        %s2298 = scalar_lea.vmem %s319, 1280 [#allocation10]
        %v2299 = vld [vmem:[%s2298] sm:$0xff]
        %v2300 = vld [vmem:[%s2298 + $0x8] sm:$0xff]
        %v2301 = vld [vmem:[%s2298 + $0x10] sm:$0xff]
        %v2302 = vld [vmem:[%s2298 + $0x18] sm:$0xff]
        %v2303 = vld [vmem:[%s2298 + $0x20] sm:$0xff]
        %v2304 = vld [vmem:[%s2298 + $0x28] sm:$0xff]
        %v2305 = vld [vmem:[%s2298 + $0x30] sm:$0xff]
        %v2306 = vld [vmem:[%s2298 + $0x38] sm:$0xff]
        %v2307 = vld [vmem:[%s2298 + $0x40] sm:$0xff]
        %v2308 = vld [vmem:[%s2298 + $0x48] sm:$0xff]
        %v2309 = vld [vmem:[%s2298 + $0x50] sm:$0xff]
        %v2310 = vld [vmem:[%s2298 + $0x58] sm:$0xff]
        %v2311 = vld [vmem:[%s2298 + $0x60] sm:$0xff]
        %v2312 = vld [vmem:[%s2298 + $0x68] sm:$0xff]
        %v2313 = vld [vmem:[%s2298 + $0x70] sm:$0xff]
        %v2314 = vld [vmem:[%s2298 + $0x78] sm:$0xff]
        %v2315 = vld [vmem:[%s2298 + $0x80] sm:$0xff]
        %v2316 = vld [vmem:[%s2298 + $0x88] sm:$0xff]
        %v2317 = vld [vmem:[%s2298 + $0x90] sm:$0xff]
        %v2318 = vld [vmem:[%s2298 + $0x98] sm:$0xff]
        %v2319 = vld [vmem:[%s2298 + $0xa0] sm:$0xff]
        %v2320 = vld [vmem:[%s2298 + $0xa8] sm:$0xff]
        %v2321 = vld [vmem:[%s2298 + $0xb0] sm:$0xff]
        %v2322 = vld [vmem:[%s2298 + $0xb8] sm:$0xff]
        %v2323 = vld [vmem:[%s2298 + $0xc0] sm:$0xff]
        %v2324 = vld [vmem:[%s2298 + $0xc8] sm:$0xff]
        %v2325 = vld [vmem:[%s2298 + $0xd0] sm:$0xff]
        %v2326 = vld [vmem:[%s2298 + $0xd8] sm:$0xff]
        %v2327 = vld [vmem:[%s2298 + $0xe0] sm:$0xff]
        %v2328 = vld [vmem:[%s2298 + $0xe8] sm:$0xff]
        %v2329 = vld [vmem:[%s2298 + $0xf0] sm:$0xff]
        %v2330 = vld [vmem:[%s2298 + $0xf8] sm:$0xff]
        %v2331 = vrot.slane %v815, 5
        %v2332 = vrot.slane %v816, 4
        %v2333 = vsel %vm818, %v2332, %v2331
        %v2334 = vpack.c.b16 %v2333, %v2333
        %v2368 = vunpack.c.l.b16 %v2299
        %v2369 = vunpack.c.h.b16 %v2299
        %v2370 = vunpack.c.l.b16 %v2300
        %v2371 = vunpack.c.h.b16 %v2300
        %v2372 = vunpack.c.l.b16 %v2301
        %v2373 = vunpack.c.h.b16 %v2301
        %v2374 = vunpack.c.l.b16 %v2302
        %v2375 = vunpack.c.h.b16 %v2302
        %v2376 = vunpack.c.l.b16 %v2303
        %v2377 = vunpack.c.h.b16 %v2303
        %v2378 = vunpack.c.l.b16 %v2304
        %v2379 = vunpack.c.h.b16 %v2304
        %v2380 = vunpack.c.l.b16 %v2305
        %v2381 = vunpack.c.h.b16 %v2305
        %v2382 = vunpack.c.l.b16 %v2306
        %v2383 = vunpack.c.h.b16 %v2306
        %v2384 = vunpack.c.l.b16 %v2307
        %v2385 = vunpack.c.h.b16 %v2307
        %v2386 = vunpack.c.l.b16 %v2308
        %v2387 = vunpack.c.h.b16 %v2308
        %v2388 = vunpack.c.l.b16 %v2309
        %v2389 = vunpack.c.h.b16 %v2309
        %v2390 = vunpack.c.l.b16 %v2310
        %v2391 = vunpack.c.h.b16 %v2310
        %v2392 = vunpack.c.l.b16 %v2311
        %v2393 = vunpack.c.h.b16 %v2311
        %v2394 = vunpack.c.l.b16 %v2312
        %v2395 = vunpack.c.h.b16 %v2312
        %v2396 = vunpack.c.l.b16 %v2313
        %v2397 = vunpack.c.h.b16 %v2313
        %v2398 = vunpack.c.l.b16 %v2314
        %v2399 = vunpack.c.h.b16 %v2314
        %v2400 = vunpack.c.l.b16 %v2315
        %v2401 = vunpack.c.h.b16 %v2315
        %v2402 = vunpack.c.l.b16 %v2316
        %v2403 = vunpack.c.h.b16 %v2316
        %v2404 = vunpack.c.l.b16 %v2317
        %v2405 = vunpack.c.h.b16 %v2317
        %v2406 = vunpack.c.l.b16 %v2318
        %v2407 = vunpack.c.h.b16 %v2318
        %v2408 = vunpack.c.l.b16 %v2319
        %v2409 = vunpack.c.h.b16 %v2319
        %v2410 = vunpack.c.l.b16 %v2320
        %v2411 = vunpack.c.h.b16 %v2320
        %v2412 = vunpack.c.l.b16 %v2321
        %v2413 = vunpack.c.h.b16 %v2321
        %v2414 = vunpack.c.l.b16 %v2322
        %v2415 = vunpack.c.h.b16 %v2322
        %v2416 = vunpack.c.l.b16 %v2323
        %v2417 = vunpack.c.h.b16 %v2323
        %v2418 = vunpack.c.l.b16 %v2324
        %v2419 = vunpack.c.h.b16 %v2324
        %v2420 = vunpack.c.l.b16 %v2325
        %v2421 = vunpack.c.h.b16 %v2325
        %v2422 = vunpack.c.l.b16 %v2326
        %v2423 = vunpack.c.h.b16 %v2326
        %v2424 = vunpack.c.l.b16 %v2327
        %v2425 = vunpack.c.h.b16 %v2327
        %v2426 = vunpack.c.l.b16 %v2328
        %v2427 = vunpack.c.h.b16 %v2328
        %v2428 = vunpack.c.l.b16 %v2329
        %v2429 = vunpack.c.h.b16 %v2329
        %v2430 = vunpack.c.l.b16 %v2330
        %v2431 = vunpack.c.h.b16 %v2330
        %v2432 = vpack.c.b16 %v2372, %v2368
        %v2433 = vpack.c.b16 %v2373, %v2369
        %v2434 = vpack.c.b16 %v2374, %v2370
        %v2435 = vpack.c.b16 %v2375, %v2371
        %v2436 = vpack.c.b16 %v2380, %v2376
        %v2437 = vpack.c.b16 %v2381, %v2377
        %v2438 = vpack.c.b16 %v2382, %v2378
        %v2439 = vpack.c.b16 %v2383, %v2379
        %v2440 = vpack.c.b16 %v2388, %v2384
        %v2441 = vpack.c.b16 %v2389, %v2385
        %v2442 = vpack.c.b16 %v2390, %v2386
        %v2443 = vpack.c.b16 %v2391, %v2387
        %v2444 = vpack.c.b16 %v2396, %v2392
        %v2445 = vpack.c.b16 %v2397, %v2393
        %v2446 = vpack.c.b16 %v2398, %v2394
        %v2447 = vpack.c.b16 %v2399, %v2395
        %v2448 = vpack.c.b16 %v2404, %v2400
        %v2449 = vpack.c.b16 %v2405, %v2401
        %v2450 = vpack.c.b16 %v2406, %v2402
        %v2451 = vpack.c.b16 %v2407, %v2403
        %v2452 = vpack.c.b16 %v2412, %v2408
        %v2453 = vpack.c.b16 %v2413, %v2409
        %v2454 = vpack.c.b16 %v2414, %v2410
        %v2455 = vpack.c.b16 %v2415, %v2411
        %v2456 = vpack.c.b16 %v2420, %v2416
        %v2457 = vpack.c.b16 %v2421, %v2417
        %v2458 = vpack.c.b16 %v2422, %v2418
        %v2459 = vpack.c.b16 %v2423, %v2419
        %v2460 = vpack.c.b16 %v2428, %v2424
        %v2461 = vpack.c.b16 %v2429, %v2425
        %v2462 = vpack.c.b16 %v2430, %v2426
        %v2463 = vpack.c.b16 %v2431, %v2427
        %2496 = vmatprep.subr.bf16.mxu0 %v2461
        %2497 = vmatpush1.bf16.msra.mxu0 %v2460
        %2498 = vmatprep.subr.bf16.mxu0 %v2457
        %2499 = vmatpush1.bf16.msra.mxu0 %v2456
        %2500 = vmatprep.subr.bf16.mxu0 %v2453
        %2501 = vmatpush1.bf16.msra.mxu0 %v2452
        %2502 = vmatprep.subr.bf16.mxu0 %v2449
        %2503 = vmatpush1.bf16.msra.mxu0 %v2448
        %2504 = vmatprep.subr.bf16.mxu0 %v2445
        %2505 = vmatpush1.bf16.msra.mxu0 %v2444
        %2506 = vmatprep.subr.bf16.mxu0 %v2441
        %2507 = vmatpush1.bf16.msra.mxu0 %v2440
        %2508 = vmatprep.subr.bf16.mxu0 %v2437
        %2509 = vmatpush1.bf16.msra.mxu0 %v2436
        %2510 = vmatprep.subr.bf16.mxu0 %v2433
        %2511 = vmatpush1.bf16.msra.mxu0 %v2432
        %2512 = vmatprep.subr.bf16.mxu0 0
        %2513 = vmatpush2.bf16.msra.mxu0 0
        %2514 = vmatprep.subr.bf16.mxu0 0
        %2515 = vmatpush2.bf16.msra.mxu0 0
        %2516 = vmatprep.subr.bf16.mxu0 0
        %2517 = vmatpush2.bf16.msra.mxu0 0
        %2518 = vmatprep.subr.bf16.mxu0 0
        %2519 = vmatpush2.bf16.msra.mxu0 0
        %2520 = vmatprep.subr.bf16.mxu0 0
        %2521 = vmatpush2.bf16.msra.mxu0 0
        %2522 = vmatprep.subr.bf16.mxu0 0
        %2523 = vmatpush2.bf16.msra.mxu0 0
        %2524 = vmatprep.subr.bf16.mxu0 0
        %2525 = vmatpush2.bf16.msra.mxu0 0
        %2526 = vmatprep.subr.bf16.mxu0 0
        %2527 = vmatpush2.bf16.msra.mxu0 0
        %2528 = vmatprep.mubr.bf16.mxu0 0
        %2529 = vmatmul.mubr.bf16.gmra.mxu0 %v2334
        %v2530 = vpop.f32.mrf.mxu0
        %v2531 = vadd.f32 0.0, %v2530
        %v2532 = vpop.f32.mrf.mxu0
        %v2533 = vadd.f32 0.0, %v2532
        %v2534 = vpop.f32.mrf.mxu0
        %v2535 = vpop.f32.mrf.mxu0
        %2536 = vdwg.mxu0
        %2537 = vmatprep.subr.bf16.mxu0 %v2463
        %2538 = vmatpush1.bf16.msra.mxu0 %v2462
        %2539 = vmatprep.subr.bf16.mxu0 %v2459
        %2540 = vmatpush1.bf16.msra.mxu0 %v2458
        %2541 = vmatprep.subr.bf16.mxu0 %v2455
        %2542 = vmatpush1.bf16.msra.mxu0 %v2454
        %2543 = vmatprep.subr.bf16.mxu0 %v2451
        %2544 = vmatpush1.bf16.msra.mxu0 %v2450
        %2545 = vmatprep.subr.bf16.mxu0 %v2447
        %2546 = vmatpush1.bf16.msra.mxu0 %v2446
        %2547 = vmatprep.subr.bf16.mxu0 %v2443
        %2548 = vmatpush1.bf16.msra.mxu0 %v2442
        %2549 = vmatprep.subr.bf16.mxu0 %v2439
        %2550 = vmatpush1.bf16.msra.mxu0 %v2438
        %2551 = vmatprep.subr.bf16.mxu0 %v2435
        %2552 = vmatpush1.bf16.msra.mxu0 %v2434
        %2553 = vmatprep.subr.bf16.mxu0 0
        %2554 = vmatpush2.bf16.msra.mxu0 0
        %2555 = vmatprep.subr.bf16.mxu0 0
        %2556 = vmatpush2.bf16.msra.mxu0 0
        %2557 = vmatprep.subr.bf16.mxu0 0
        %2558 = vmatpush2.bf16.msra.mxu0 0
        %2559 = vmatprep.subr.bf16.mxu0 0
        %2560 = vmatpush2.bf16.msra.mxu0 0
        %2561 = vmatprep.subr.bf16.mxu0 0
        %2562 = vmatpush2.bf16.msra.mxu0 0
        %2563 = vmatprep.subr.bf16.mxu0 0
        %2564 = vmatpush2.bf16.msra.mxu0 0
        %2565 = vmatprep.subr.bf16.mxu0 0
        %2566 = vmatpush2.bf16.msra.mxu0 0
        %2567 = vmatprep.subr.bf16.mxu0 0
        %2568 = vmatpush2.bf16.msra.mxu0 0
        %2569 = vmatprep.mubr.bf16.mxu0 0
        %2570 = vmatmul.mubr.bf16.gmra.mxu0 %v2334
        %v2571 = vpop.f32.mrf.mxu0
        %v2572 = vadd.f32 0.0, %v2571
        %v2573 = vpop.f32.mrf.mxu0
        %v2574 = vadd.f32 0.0, %v2573
        %v2575 = vpop.f32.mrf.mxu0
        %v2576 = vpop.f32.mrf.mxu0
        %2577 = vdwg.mxu0
        %v2582 = vcombine.low %v2531, %v2533
        %v2583 = vcombine.low %v2572, %v2574
        %v2585 = vunpack.c.l.s4 1983009808
        %v2586 = vunpack.c.0.s8 %v2585
        %v2587 = vlaneseq
        %v2588 = vshrl.u32 %v2587, 7
        %v2589 = vsub.s32 %v2586, %v2588
        %v2590 = vrot.slane %v2582, %v2589
        %v2592 = vunpack.c.l.s4 1983009808
        %v2593 = vunpack.c.0.s8 %v2592
        %v2594 = vlaneseq
        %v2595 = vshrl.u32 %v2594, 7
        %v2596 = vsub.s32 %v2593, %v2595
        %v2597 = vrot.slane %v2583, %v2596
        %v2598 = vcombine.low %v2590, %v2597
        %v2600 = vadd.f32 %v2297, %v2598
        %s2601 = scalar_lea.vmem %s319, 1536 [#allocation10]
        %v2602 = vld [vmem:[%s2601] sm:$0xff]
        %v2603 = vld [vmem:[%s2601 + $0x8] sm:$0xff]
        %v2604 = vld [vmem:[%s2601 + $0x10] sm:$0xff]
        %v2605 = vld [vmem:[%s2601 + $0x18] sm:$0xff]
        %v2606 = vld [vmem:[%s2601 + $0x20] sm:$0xff]
        %v2607 = vld [vmem:[%s2601 + $0x28] sm:$0xff]
        %v2608 = vld [vmem:[%s2601 + $0x30] sm:$0xff]
        %v2609 = vld [vmem:[%s2601 + $0x38] sm:$0xff]
        %v2610 = vld [vmem:[%s2601 + $0x40] sm:$0xff]
        %v2611 = vld [vmem:[%s2601 + $0x48] sm:$0xff]
        %v2612 = vld [vmem:[%s2601 + $0x50] sm:$0xff]
        %v2613 = vld [vmem:[%s2601 + $0x58] sm:$0xff]
        %v2614 = vld [vmem:[%s2601 + $0x60] sm:$0xff]
        %v2615 = vld [vmem:[%s2601 + $0x68] sm:$0xff]
        %v2616 = vld [vmem:[%s2601 + $0x70] sm:$0xff]
        %v2617 = vld [vmem:[%s2601 + $0x78] sm:$0xff]
        %v2618 = vld [vmem:[%s2601 + $0x80] sm:$0xff]
        %v2619 = vld [vmem:[%s2601 + $0x88] sm:$0xff]
        %v2620 = vld [vmem:[%s2601 + $0x90] sm:$0xff]
        %v2621 = vld [vmem:[%s2601 + $0x98] sm:$0xff]
        %v2622 = vld [vmem:[%s2601 + $0xa0] sm:$0xff]
        %v2623 = vld [vmem:[%s2601 + $0xa8] sm:$0xff]
        %v2624 = vld [vmem:[%s2601 + $0xb0] sm:$0xff]
        %v2625 = vld [vmem:[%s2601 + $0xb8] sm:$0xff]
        %v2626 = vld [vmem:[%s2601 + $0xc0] sm:$0xff]
        %v2627 = vld [vmem:[%s2601 + $0xc8] sm:$0xff]
        %v2628 = vld [vmem:[%s2601 + $0xd0] sm:$0xff]
        %v2629 = vld [vmem:[%s2601 + $0xd8] sm:$0xff]
        %v2630 = vld [vmem:[%s2601 + $0xe0] sm:$0xff]
        %v2631 = vld [vmem:[%s2601 + $0xe8] sm:$0xff]
        %v2632 = vld [vmem:[%s2601 + $0xf0] sm:$0xff]
        %v2633 = vld [vmem:[%s2601 + $0xf8] sm:$0xff]
        %v2634 = vrot.slane %v815, 6
        %v2635 = vrot.slane %v816, 5
        %v2636 = vsel %vm818, %v2635, %v2634
        %v2637 = vpack.c.b16 %v2636, %v2636
        %v2671 = vunpack.c.l.b16 %v2602
        %v2672 = vunpack.c.h.b16 %v2602
        %v2673 = vunpack.c.l.b16 %v2603
        %v2674 = vunpack.c.h.b16 %v2603
        %v2675 = vunpack.c.l.b16 %v2604
        %v2676 = vunpack.c.h.b16 %v2604
        %v2677 = vunpack.c.l.b16 %v2605
        %v2678 = vunpack.c.h.b16 %v2605
        %v2679 = vunpack.c.l.b16 %v2606
        %v2680 = vunpack.c.h.b16 %v2606
        %v2681 = vunpack.c.l.b16 %v2607
        %v2682 = vunpack.c.h.b16 %v2607
        %v2683 = vunpack.c.l.b16 %v2608
        %v2684 = vunpack.c.h.b16 %v2608
        %v2685 = vunpack.c.l.b16 %v2609
        %v2686 = vunpack.c.h.b16 %v2609
        %v2687 = vunpack.c.l.b16 %v2610
        %v2688 = vunpack.c.h.b16 %v2610
        %v2689 = vunpack.c.l.b16 %v2611
        %v2690 = vunpack.c.h.b16 %v2611
        %v2691 = vunpack.c.l.b16 %v2612
        %v2692 = vunpack.c.h.b16 %v2612
        %v2693 = vunpack.c.l.b16 %v2613
        %v2694 = vunpack.c.h.b16 %v2613
        %v2695 = vunpack.c.l.b16 %v2614
        %v2696 = vunpack.c.h.b16 %v2614
        %v2697 = vunpack.c.l.b16 %v2615
        %v2698 = vunpack.c.h.b16 %v2615
        %v2699 = vunpack.c.l.b16 %v2616
        %v2700 = vunpack.c.h.b16 %v2616
        %v2701 = vunpack.c.l.b16 %v2617
        %v2702 = vunpack.c.h.b16 %v2617
        %v2703 = vunpack.c.l.b16 %v2618
        %v2704 = vunpack.c.h.b16 %v2618
        %v2705 = vunpack.c.l.b16 %v2619
        %v2706 = vunpack.c.h.b16 %v2619
        %v2707 = vunpack.c.l.b16 %v2620
        %v2708 = vunpack.c.h.b16 %v2620
        %v2709 = vunpack.c.l.b16 %v2621
        %v2710 = vunpack.c.h.b16 %v2621
        %v2711 = vunpack.c.l.b16 %v2622
        %v2712 = vunpack.c.h.b16 %v2622
        %v2713 = vunpack.c.l.b16 %v2623
        %v2714 = vunpack.c.h.b16 %v2623
        %v2715 = vunpack.c.l.b16 %v2624
        %v2716 = vunpack.c.h.b16 %v2624
        %v2717 = vunpack.c.l.b16 %v2625
        %v2718 = vunpack.c.h.b16 %v2625
        %v2719 = vunpack.c.l.b16 %v2626
        %v2720 = vunpack.c.h.b16 %v2626
        %v2721 = vunpack.c.l.b16 %v2627
        %v2722 = vunpack.c.h.b16 %v2627
        %v2723 = vunpack.c.l.b16 %v2628
        %v2724 = vunpack.c.h.b16 %v2628
        %v2725 = vunpack.c.l.b16 %v2629
        %v2726 = vunpack.c.h.b16 %v2629
        %v2727 = vunpack.c.l.b16 %v2630
        %v2728 = vunpack.c.h.b16 %v2630
        %v2729 = vunpack.c.l.b16 %v2631
        %v2730 = vunpack.c.h.b16 %v2631
        %v2731 = vunpack.c.l.b16 %v2632
        %v2732 = vunpack.c.h.b16 %v2632
        %v2733 = vunpack.c.l.b16 %v2633
        %v2734 = vunpack.c.h.b16 %v2633
        %v2735 = vpack.c.b16 %v2675, %v2671
        %v2736 = vpack.c.b16 %v2676, %v2672
        %v2737 = vpack.c.b16 %v2677, %v2673
        %v2738 = vpack.c.b16 %v2678, %v2674
        %v2739 = vpack.c.b16 %v2683, %v2679
        %v2740 = vpack.c.b16 %v2684, %v2680
        %v2741 = vpack.c.b16 %v2685, %v2681
        %v2742 = vpack.c.b16 %v2686, %v2682
        %v2743 = vpack.c.b16 %v2691, %v2687
        %v2744 = vpack.c.b16 %v2692, %v2688
        %v2745 = vpack.c.b16 %v2693, %v2689
        %v2746 = vpack.c.b16 %v2694, %v2690
        %v2747 = vpack.c.b16 %v2699, %v2695
        %v2748 = vpack.c.b16 %v2700, %v2696
        %v2749 = vpack.c.b16 %v2701, %v2697
        %v2750 = vpack.c.b16 %v2702, %v2698
        %v2751 = vpack.c.b16 %v2707, %v2703
        %v2752 = vpack.c.b16 %v2708, %v2704
        %v2753 = vpack.c.b16 %v2709, %v2705
        %v2754 = vpack.c.b16 %v2710, %v2706
        %v2755 = vpack.c.b16 %v2715, %v2711
        %v2756 = vpack.c.b16 %v2716, %v2712
        %v2757 = vpack.c.b16 %v2717, %v2713
        %v2758 = vpack.c.b16 %v2718, %v2714
        %v2759 = vpack.c.b16 %v2723, %v2719
        %v2760 = vpack.c.b16 %v2724, %v2720
        %v2761 = vpack.c.b16 %v2725, %v2721
        %v2762 = vpack.c.b16 %v2726, %v2722
        %v2763 = vpack.c.b16 %v2731, %v2727
        %v2764 = vpack.c.b16 %v2732, %v2728
        %v2765 = vpack.c.b16 %v2733, %v2729
        %v2766 = vpack.c.b16 %v2734, %v2730
        %2799 = vmatprep.subr.bf16.mxu0 %v2764
        %2800 = vmatpush1.bf16.msra.mxu0 %v2763
        %2801 = vmatprep.subr.bf16.mxu0 %v2760
        %2802 = vmatpush1.bf16.msra.mxu0 %v2759
        %2803 = vmatprep.subr.bf16.mxu0 %v2756
        %2804 = vmatpush1.bf16.msra.mxu0 %v2755
        %2805 = vmatprep.subr.bf16.mxu0 %v2752
        %2806 = vmatpush1.bf16.msra.mxu0 %v2751
        %2807 = vmatprep.subr.bf16.mxu0 %v2748
        %2808 = vmatpush1.bf16.msra.mxu0 %v2747
        %2809 = vmatprep.subr.bf16.mxu0 %v2744
        %2810 = vmatpush1.bf16.msra.mxu0 %v2743
        %2811 = vmatprep.subr.bf16.mxu0 %v2740
        %2812 = vmatpush1.bf16.msra.mxu0 %v2739
        %2813 = vmatprep.subr.bf16.mxu0 %v2736
        %2814 = vmatpush1.bf16.msra.mxu0 %v2735
        %2815 = vmatprep.subr.bf16.mxu0 0
        %2816 = vmatpush2.bf16.msra.mxu0 0
        %2817 = vmatprep.subr.bf16.mxu0 0
        %2818 = vmatpush2.bf16.msra.mxu0 0
        %2819 = vmatprep.subr.bf16.mxu0 0
        %2820 = vmatpush2.bf16.msra.mxu0 0
        %2821 = vmatprep.subr.bf16.mxu0 0
        %2822 = vmatpush2.bf16.msra.mxu0 0
        %2823 = vmatprep.subr.bf16.mxu0 0
        %2824 = vmatpush2.bf16.msra.mxu0 0
        %2825 = vmatprep.subr.bf16.mxu0 0
        %2826 = vmatpush2.bf16.msra.mxu0 0
        %2827 = vmatprep.subr.bf16.mxu0 0
        %2828 = vmatpush2.bf16.msra.mxu0 0
        %2829 = vmatprep.subr.bf16.mxu0 0
        %2830 = vmatpush2.bf16.msra.mxu0 0
        %2831 = vmatprep.mubr.bf16.mxu0 0
        %2832 = vmatmul.mubr.bf16.gmra.mxu0 %v2637
        %v2833 = vpop.f32.mrf.mxu0
        %v2834 = vadd.f32 0.0, %v2833
        %v2835 = vpop.f32.mrf.mxu0
        %v2836 = vadd.f32 0.0, %v2835
        %v2837 = vpop.f32.mrf.mxu0
        %v2838 = vpop.f32.mrf.mxu0
        %2839 = vdwg.mxu0
        %2840 = vmatprep.subr.bf16.mxu0 %v2766
        %2841 = vmatpush1.bf16.msra.mxu0 %v2765
        %2842 = vmatprep.subr.bf16.mxu0 %v2762
        %2843 = vmatpush1.bf16.msra.mxu0 %v2761
        %2844 = vmatprep.subr.bf16.mxu0 %v2758
        %2845 = vmatpush1.bf16.msra.mxu0 %v2757
        %2846 = vmatprep.subr.bf16.mxu0 %v2754
        %2847 = vmatpush1.bf16.msra.mxu0 %v2753
        %2848 = vmatprep.subr.bf16.mxu0 %v2750
        %2849 = vmatpush1.bf16.msra.mxu0 %v2749
        %2850 = vmatprep.subr.bf16.mxu0 %v2746
        %2851 = vmatpush1.bf16.msra.mxu0 %v2745
        %2852 = vmatprep.subr.bf16.mxu0 %v2742
        %2853 = vmatpush1.bf16.msra.mxu0 %v2741
        %2854 = vmatprep.subr.bf16.mxu0 %v2738
        %2855 = vmatpush1.bf16.msra.mxu0 %v2737
        %2856 = vmatprep.subr.bf16.mxu0 0
        %2857 = vmatpush2.bf16.msra.mxu0 0
        %2858 = vmatprep.subr.bf16.mxu0 0
        %2859 = vmatpush2.bf16.msra.mxu0 0
        %2860 = vmatprep.subr.bf16.mxu0 0
        %2861 = vmatpush2.bf16.msra.mxu0 0
        %2862 = vmatprep.subr.bf16.mxu0 0
        %2863 = vmatpush2.bf16.msra.mxu0 0
        %2864 = vmatprep.subr.bf16.mxu0 0
        %2865 = vmatpush2.bf16.msra.mxu0 0
        %2866 = vmatprep.subr.bf16.mxu0 0
        %2867 = vmatpush2.bf16.msra.mxu0 0
        %2868 = vmatprep.subr.bf16.mxu0 0
        %2869 = vmatpush2.bf16.msra.mxu0 0
        %2870 = vmatprep.subr.bf16.mxu0 0
        %2871 = vmatpush2.bf16.msra.mxu0 0
        %2872 = vmatprep.mubr.bf16.mxu0 0
        %2873 = vmatmul.mubr.bf16.gmra.mxu0 %v2637
        %v2874 = vpop.f32.mrf.mxu0
        %v2875 = vadd.f32 0.0, %v2874
        %v2876 = vpop.f32.mrf.mxu0
        %v2877 = vadd.f32 0.0, %v2876
        %v2878 = vpop.f32.mrf.mxu0
        %v2879 = vpop.f32.mrf.mxu0
        %2880 = vdwg.mxu0
        %v2885 = vcombine.low %v2834, %v2836
        %v2886 = vcombine.low %v2875, %v2877
        %v2888 = vunpack.c.l.s4 1983009808
        %v2889 = vunpack.c.0.s8 %v2888
        %v2890 = vlaneseq
        %v2891 = vshrl.u32 %v2890, 7
        %v2892 = vsub.s32 %v2889, %v2891
        %v2893 = vrot.slane %v2885, %v2892
        %v2895 = vunpack.c.l.s4 1983009808
        %v2896 = vunpack.c.0.s8 %v2895
        %v2897 = vlaneseq
        %v2898 = vshrl.u32 %v2897, 7
        %v2899 = vsub.s32 %v2896, %v2898
        %v2900 = vrot.slane %v2886, %v2899
        %v2901 = vcombine.low %v2893, %v2900
        %v2903 = vadd.f32 %v2600, %v2901
        %s2904 = scalar_lea.vmem %s319, 1792 [#allocation10]
        %v2905 = vld [vmem:[%s2904] sm:$0xff]
        %v2906 = vld [vmem:[%s2904 + $0x8] sm:$0xff]
        %v2907 = vld [vmem:[%s2904 + $0x10] sm:$0xff]
        %v2908 = vld [vmem:[%s2904 + $0x18] sm:$0xff]
        %v2909 = vld [vmem:[%s2904 + $0x20] sm:$0xff]
        %v2910 = vld [vmem:[%s2904 + $0x28] sm:$0xff]
        %v2911 = vld [vmem:[%s2904 + $0x30] sm:$0xff]
        %v2912 = vld [vmem:[%s2904 + $0x38] sm:$0xff]
        %v2913 = vld [vmem:[%s2904 + $0x40] sm:$0xff]
        %v2914 = vld [vmem:[%s2904 + $0x48] sm:$0xff]
        %v2915 = vld [vmem:[%s2904 + $0x50] sm:$0xff]
        %v2916 = vld [vmem:[%s2904 + $0x58] sm:$0xff]
        %v2917 = vld [vmem:[%s2904 + $0x60] sm:$0xff]
        %v2918 = vld [vmem:[%s2904 + $0x68] sm:$0xff]
        %v2919 = vld [vmem:[%s2904 + $0x70] sm:$0xff]
        %v2920 = vld [vmem:[%s2904 + $0x78] sm:$0xff]
        %v2921 = vld [vmem:[%s2904 + $0x80] sm:$0xff]
        %v2922 = vld [vmem:[%s2904 + $0x88] sm:$0xff]
        %v2923 = vld [vmem:[%s2904 + $0x90] sm:$0xff]
        %v2924 = vld [vmem:[%s2904 + $0x98] sm:$0xff]
        %v2925 = vld [vmem:[%s2904 + $0xa0] sm:$0xff]
        %v2926 = vld [vmem:[%s2904 + $0xa8] sm:$0xff]
        %v2927 = vld [vmem:[%s2904 + $0xb0] sm:$0xff]
        %v2928 = vld [vmem:[%s2904 + $0xb8] sm:$0xff]
        %v2929 = vld [vmem:[%s2904 + $0xc0] sm:$0xff]
        %v2930 = vld [vmem:[%s2904 + $0xc8] sm:$0xff]
        %v2931 = vld [vmem:[%s2904 + $0xd0] sm:$0xff]
        %v2932 = vld [vmem:[%s2904 + $0xd8] sm:$0xff]
        %v2933 = vld [vmem:[%s2904 + $0xe0] sm:$0xff]
        %v2934 = vld [vmem:[%s2904 + $0xe8] sm:$0xff]
        %v2935 = vld [vmem:[%s2904 + $0xf0] sm:$0xff]
        %v2936 = vld [vmem:[%s2904 + $0xf8] sm:$0xff]
        %v2937 = vrot.slane %v815, 7
        %v2938 = vrot.slane %v816, 6
        %v2939 = vsel %vm818, %v2938, %v2937
        %v2940 = vpack.c.b16 %v2939, %v2939
        %v2974 = vunpack.c.l.b16 %v2905
        %v2975 = vunpack.c.h.b16 %v2905
        %v2976 = vunpack.c.l.b16 %v2906
        %v2977 = vunpack.c.h.b16 %v2906
        %v2978 = vunpack.c.l.b16 %v2907
        %v2979 = vunpack.c.h.b16 %v2907
        %v2980 = vunpack.c.l.b16 %v2908
        %v2981 = vunpack.c.h.b16 %v2908
        %v2982 = vunpack.c.l.b16 %v2909
        %v2983 = vunpack.c.h.b16 %v2909
        %v2984 = vunpack.c.l.b16 %v2910
        %v2985 = vunpack.c.h.b16 %v2910
        %v2986 = vunpack.c.l.b16 %v2911
        %v2987 = vunpack.c.h.b16 %v2911
        %v2988 = vunpack.c.l.b16 %v2912
        %v2989 = vunpack.c.h.b16 %v2912
        %v2990 = vunpack.c.l.b16 %v2913
        %v2991 = vunpack.c.h.b16 %v2913
        %v2992 = vunpack.c.l.b16 %v2914
        %v2993 = vunpack.c.h.b16 %v2914
        %v2994 = vunpack.c.l.b16 %v2915
        %v2995 = vunpack.c.h.b16 %v2915
        %v2996 = vunpack.c.l.b16 %v2916
        %v2997 = vunpack.c.h.b16 %v2916
        %v2998 = vunpack.c.l.b16 %v2917
        %v2999 = vunpack.c.h.b16 %v2917
        %v3000 = vunpack.c.l.b16 %v2918
        %v3001 = vunpack.c.h.b16 %v2918
        %v3002 = vunpack.c.l.b16 %v2919
        %v3003 = vunpack.c.h.b16 %v2919
        %v3004 = vunpack.c.l.b16 %v2920
        %v3005 = vunpack.c.h.b16 %v2920
        %v3006 = vunpack.c.l.b16 %v2921
        %v3007 = vunpack.c.h.b16 %v2921
        %v3008 = vunpack.c.l.b16 %v2922
        %v3009 = vunpack.c.h.b16 %v2922
        %v3010 = vunpack.c.l.b16 %v2923
        %v3011 = vunpack.c.h.b16 %v2923
        %v3012 = vunpack.c.l.b16 %v2924
        %v3013 = vunpack.c.h.b16 %v2924
        %v3014 = vunpack.c.l.b16 %v2925
        %v3015 = vunpack.c.h.b16 %v2925
        %v3016 = vunpack.c.l.b16 %v2926
        %v3017 = vunpack.c.h.b16 %v2926
        %v3018 = vunpack.c.l.b16 %v2927
        %v3019 = vunpack.c.h.b16 %v2927
        %v3020 = vunpack.c.l.b16 %v2928
        %v3021 = vunpack.c.h.b16 %v2928
        %v3022 = vunpack.c.l.b16 %v2929
        %v3023 = vunpack.c.h.b16 %v2929
        %v3024 = vunpack.c.l.b16 %v2930
        %v3025 = vunpack.c.h.b16 %v2930
        %v3026 = vunpack.c.l.b16 %v2931
        %v3027 = vunpack.c.h.b16 %v2931
        %v3028 = vunpack.c.l.b16 %v2932
        %v3029 = vunpack.c.h.b16 %v2932
        %v3030 = vunpack.c.l.b16 %v2933
        %v3031 = vunpack.c.h.b16 %v2933
        %v3032 = vunpack.c.l.b16 %v2934
        %v3033 = vunpack.c.h.b16 %v2934
        %v3034 = vunpack.c.l.b16 %v2935
        %v3035 = vunpack.c.h.b16 %v2935
        %v3036 = vunpack.c.l.b16 %v2936
        %v3037 = vunpack.c.h.b16 %v2936
        %v3038 = vpack.c.b16 %v2978, %v2974
        %v3039 = vpack.c.b16 %v2979, %v2975
        %v3040 = vpack.c.b16 %v2980, %v2976
        %v3041 = vpack.c.b16 %v2981, %v2977
        %v3042 = vpack.c.b16 %v2986, %v2982
        %v3043 = vpack.c.b16 %v2987, %v2983
        %v3044 = vpack.c.b16 %v2988, %v2984
        %v3045 = vpack.c.b16 %v2989, %v2985
        %v3046 = vpack.c.b16 %v2994, %v2990
        %v3047 = vpack.c.b16 %v2995, %v2991
        %v3048 = vpack.c.b16 %v2996, %v2992
        %v3049 = vpack.c.b16 %v2997, %v2993
        %v3050 = vpack.c.b16 %v3002, %v2998
        %v3051 = vpack.c.b16 %v3003, %v2999
        %v3052 = vpack.c.b16 %v3004, %v3000
        %v3053 = vpack.c.b16 %v3005, %v3001
        %v3054 = vpack.c.b16 %v3010, %v3006
        %v3055 = vpack.c.b16 %v3011, %v3007
        %v3056 = vpack.c.b16 %v3012, %v3008
        %v3057 = vpack.c.b16 %v3013, %v3009
        %v3058 = vpack.c.b16 %v3018, %v3014
        %v3059 = vpack.c.b16 %v3019, %v3015
        %v3060 = vpack.c.b16 %v3020, %v3016
        %v3061 = vpack.c.b16 %v3021, %v3017
        %v3062 = vpack.c.b16 %v3026, %v3022
        %v3063 = vpack.c.b16 %v3027, %v3023
        %v3064 = vpack.c.b16 %v3028, %v3024
        %v3065 = vpack.c.b16 %v3029, %v3025
        %v3066 = vpack.c.b16 %v3034, %v3030
        %v3067 = vpack.c.b16 %v3035, %v3031
        %v3068 = vpack.c.b16 %v3036, %v3032
        %v3069 = vpack.c.b16 %v3037, %v3033
        %3102 = vmatprep.subr.bf16.mxu0 %v3067
        %3103 = vmatpush1.bf16.msra.mxu0 %v3066
        %3104 = vmatprep.subr.bf16.mxu0 %v3063
        %3105 = vmatpush1.bf16.msra.mxu0 %v3062
        %3106 = vmatprep.subr.bf16.mxu0 %v3059
        %3107 = vmatpush1.bf16.msra.mxu0 %v3058
        %3108 = vmatprep.subr.bf16.mxu0 %v3055
        %3109 = vmatpush1.bf16.msra.mxu0 %v3054
        %3110 = vmatprep.subr.bf16.mxu0 %v3051
        %3111 = vmatpush1.bf16.msra.mxu0 %v3050
        %3112 = vmatprep.subr.bf16.mxu0 %v3047
        %3113 = vmatpush1.bf16.msra.mxu0 %v3046
        %3114 = vmatprep.subr.bf16.mxu0 %v3043
        %3115 = vmatpush1.bf16.msra.mxu0 %v3042
        %3116 = vmatprep.subr.bf16.mxu0 %v3039
        %3117 = vmatpush1.bf16.msra.mxu0 %v3038
        %3118 = vmatprep.subr.bf16.mxu0 0
        %3119 = vmatpush2.bf16.msra.mxu0 0
        %3120 = vmatprep.subr.bf16.mxu0 0
        %3121 = vmatpush2.bf16.msra.mxu0 0
        %3122 = vmatprep.subr.bf16.mxu0 0
        %3123 = vmatpush2.bf16.msra.mxu0 0
        %3124 = vmatprep.subr.bf16.mxu0 0
        %3125 = vmatpush2.bf16.msra.mxu0 0
        %3126 = vmatprep.subr.bf16.mxu0 0
        %3127 = vmatpush2.bf16.msra.mxu0 0
        %3128 = vmatprep.subr.bf16.mxu0 0
        %3129 = vmatpush2.bf16.msra.mxu0 0
        %3130 = vmatprep.subr.bf16.mxu0 0
        %3131 = vmatpush2.bf16.msra.mxu0 0
        %3132 = vmatprep.subr.bf16.mxu0 0
        %3133 = vmatpush2.bf16.msra.mxu0 0
        %3134 = vmatprep.mubr.bf16.mxu0 0
        %3135 = vmatmul.mubr.bf16.gmra.mxu0 %v2940
        %v3136 = vpop.f32.mrf.mxu0
        %v3137 = vadd.f32 0.0, %v3136
        %v3138 = vpop.f32.mrf.mxu0
        %v3139 = vadd.f32 0.0, %v3138
        %v3140 = vpop.f32.mrf.mxu0
        %v3141 = vpop.f32.mrf.mxu0
        %3142 = vdwg.mxu0
        %3143 = vmatprep.subr.bf16.mxu0 %v3069
        %3144 = vmatpush1.bf16.msra.mxu0 %v3068
        %3145 = vmatprep.subr.bf16.mxu0 %v3065
        %3146 = vmatpush1.bf16.msra.mxu0 %v3064
        %3147 = vmatprep.subr.bf16.mxu0 %v3061
        %3148 = vmatpush1.bf16.msra.mxu0 %v3060
        %3149 = vmatprep.subr.bf16.mxu0 %v3057
        %3150 = vmatpush1.bf16.msra.mxu0 %v3056
        %3151 = vmatprep.subr.bf16.mxu0 %v3053
        %3152 = vmatpush1.bf16.msra.mxu0 %v3052
        %3153 = vmatprep.subr.bf16.mxu0 %v3049
        %3154 = vmatpush1.bf16.msra.mxu0 %v3048
        %3155 = vmatprep.subr.bf16.mxu0 %v3045
        %3156 = vmatpush1.bf16.msra.mxu0 %v3044
        %3157 = vmatprep.subr.bf16.mxu0 %v3041
        %3158 = vmatpush1.bf16.msra.mxu0 %v3040
        %3159 = vmatprep.subr.bf16.mxu0 0
        %3160 = vmatpush2.bf16.msra.mxu0 0
        %3161 = vmatprep.subr.bf16.mxu0 0
        %3162 = vmatpush2.bf16.msra.mxu0 0
        %3163 = vmatprep.subr.bf16.mxu0 0
        %3164 = vmatpush2.bf16.msra.mxu0 0
        %3165 = vmatprep.subr.bf16.mxu0 0
        %3166 = vmatpush2.bf16.msra.mxu0 0
        %3167 = vmatprep.subr.bf16.mxu0 0
        %3168 = vmatpush2.bf16.msra.mxu0 0
        %3169 = vmatprep.subr.bf16.mxu0 0
        %3170 = vmatpush2.bf16.msra.mxu0 0
        %3171 = vmatprep.subr.bf16.mxu0 0
        %3172 = vmatpush2.bf16.msra.mxu0 0
        %3173 = vmatprep.subr.bf16.mxu0 0
        %3174 = vmatpush2.bf16.msra.mxu0 0
        %3175 = vmatprep.mubr.bf16.mxu0 0
        %3176 = vmatmul.mubr.bf16.gmra.mxu0 %v2940
        %v3177 = vpop.f32.mrf.mxu0
        %v3178 = vadd.f32 0.0, %v3177
        %v3179 = vpop.f32.mrf.mxu0
        %v3180 = vadd.f32 0.0, %v3179
        %v3181 = vpop.f32.mrf.mxu0
        %v3182 = vpop.f32.mrf.mxu0
        %3183 = vdwg.mxu0
        %v3188 = vcombine.low %v3137, %v3139
        %v3189 = vcombine.low %v3178, %v3180
        %v3191 = vunpack.c.l.s4 1983009808
        %v3192 = vunpack.c.0.s8 %v3191
        %v3193 = vlaneseq
        %v3194 = vshrl.u32 %v3193, 7
        %v3195 = vsub.s32 %v3192, %v3194
        %v3196 = vrot.slane %v3188, %v3195
        %v3198 = vunpack.c.l.s4 1983009808
        %v3199 = vunpack.c.0.s8 %v3198
        %v3200 = vlaneseq
        %v3201 = vshrl.u32 %v3200, 7
        %v3202 = vsub.s32 %v3199, %v3201
        %v3203 = vrot.slane %v3189, %v3202
        %v3204 = vcombine.low %v3196, %v3203
        %v3206 = vadd.f32 %v2903, %v3204
        %3207 = vst [vmem:[#allocation3] sm:$0xff] %v3206
        %p3208 = scmp.eq.s32.totalorder %s30, 1
        // Predicated region
        $region69: #{tpu_custom_call.1} parent=43 // pred_check
          %p3209 = pneg %p3208
        $region70: #{tpu_custom_call.1} parent=43 // pred_check_branch
          %3211 = sbr.rel (%p3209) target = $region72
        $region71: #{tpu_custom_call.1} parent=43 // pred_region
          %v3212 = vld [vmem:[#allocation3] sm:$0xff]
          %v3213 = vld [vmem:[%s328] sm:$0xf]
          %v3215 = vlaneseq
          %v3216 = vshrl.u32 %v3215, 7
          %v3217 = vsub.s32 0, %v3216
          %v3218 = vrot.slane %v3213, %v3217
          %v3219 = vlaneseq
          %v3220 = vshrl.u32 %v3219, 7
          %v3221 = vsub.s32 1, %v3220
          %v3222 = vrot.slane %v3213, %v3221
          %v3223 = vlaneseq
          %v3224 = vshrl.u32 %v3223, 7
          %v3225 = vsub.s32 2, %v3224
          %v3226 = vrot.slane %v3213, %v3225
          %v3227 = vlaneseq
          %v3228 = vshrl.u32 %v3227, 7
          %v3229 = vsub.s32 3, %v3228
          %v3230 = vrot.slane %v3213, %v3229
          %v3231 = vcombine.low %v3218, %v3222
          %v3232 = vcombine.low %v3226, %v3230
          %v3234 = vunpack.c.l.s4 1983009808
          %v3235 = vunpack.c.0.s8 %v3234
          %v3236 = vlaneseq
          %v3237 = vshrl.u32 %v3236, 7
          %v3238 = vsub.s32 %v3235, %v3237
          %v3239 = vrot.slane %v3231, %v3238
          %v3241 = vunpack.c.l.s4 1983009808
          %v3242 = vunpack.c.0.s8 %v3241
          %v3243 = vlaneseq
          %v3244 = vshrl.u32 %v3243, 7
          %v3245 = vsub.s32 %v3242, %v3244
          %v3246 = vrot.slane %v3232, %v3245
          %v3247 = vcombine.low %v3239, %v3246
          %v3249 = vadd.f32 %v3212, %v3247
          %v3250 = vmax.f32 %v3249, 0.0
          %3251 = vst [vmem:[%s361] sm:$0xff] %v3250
        $region72: #{tpu_custom_call.1} parent=43 // pred_fallthru
          _
        %s3252 = sand.u32 %s183, 1
        %s3253 = scalar_lea.sflag [#allocation6], %s3252
        %s3254 = sand.u32 %s183, 1
        %s3255 = smul.addr %s3254, 8
        %s3256 = scalar_lea.vmem [#allocation13], %s3255
        // Predicated region
        $region73: #{tpu_custom_call.1} parent=43 // pred_check
          %p3257 = pneg %p193
        $region74: #{tpu_custom_call.1} parent=43 // pred_check_branch
          %3259 = sbr.rel (%p3257) target = $region76
        $region75: #{tpu_custom_call.1} parent=43 // pred_region
          %s3260 = smul.u32 4, %s29
          %s3262 = ssub.s32 128, 128
          %3263 = vsyncadd %s3253, %s3262
          %s3264 = smul.addr %s3260, 32
          %s3265 = scalar_lea.hbm %s6, %s3264
          %s3267 = sshll.u32 %s3256, 4
          %s3268 = int_to_ptr.vmem [resolvable:$true] %s3267
          %3270 = dma.vmem_to_hbm [thread:$0]  %s3268, 128, %s3265, %s3253
        $region76: #{tpu_custom_call.1} parent=43 // pred_fallthru
          _
      $region44: #{tpu_custom_call.1} parent=5 // pred_fallthru
        _
      %p3271 = scmp.le.s32.totalorder 2, %s20
      // Predicated region
      $region77: #{tpu_custom_call.1} parent=5 // pred_check
        %p3272 = pneg %p3271
      $region78: #{tpu_custom_call.1} parent=5 // pred_check_branch
        %3274 = sbr.rel (%p3272) target = $region80
      $region79: #{tpu_custom_call.1} parent=5 // pred_region
        %s3275 = ssub.s32 %s20, 2
        // Predicated region
        $region81: #{tpu_custom_call.1} parent=79 // pred_check
          %p3276 = pneg %p199
        $region82: #{tpu_custom_call.1} parent=79 // pred_check_branch
          %3278 = sbr.rel (%p3276) target = $region84
        $region83: #{tpu_custom_call.1} parent=79 // pred_region
          %s3279 = sand.u32 %s184, 1
          %s3280 = scalar_lea.sflag [#allocation6], %s3279
          %s3281 = sand.u32 %s184, 1
          %s3282 = smul.addr %s3281, 8
          %s3283 = scalar_lea.vmem [#allocation13], %s3282
          %3284 = dma.done %s3280, 128
        $region84: #{tpu_custom_call.1} parent=79 // pred_fallthru
          _
      $region80: #{tpu_custom_call.1} parent=5 // pred_fallthru
        _
    $region6: #{tpu_custom_call.1} parent=1 // loop_footer
      %s24 = sadd.s32 1, %s20
    $region7: #{tpu_custom_call.1} parent=1 // loop_footer_branch
      %19 = sbr.rel target = $region3
    $region8: #{tpu_custom_call.1} parent=1 // loop_exit
      _
    %3285 = vsyncpa [#allocation5], 1
    %s3286 = scalar_lea.sflag [#allocation5], 1
    %3287 = vsyncpa %s3286, 1
    %3288 = vsyncpa [#allocation8], 1
    %3289 = vsyncpa [#allocation11], 1
    %s3290 = scalar_lea.sflag [#allocation11], 1
    %3291 = vsyncpa %s3290, 1
    %3292 = vsyncpa [#allocation6], 1
    %s3293 = scalar_lea.sflag [#allocation6], 1
    %3294 = vsyncpa %s3293, 1

</llo_original>
